<compile_context>
chip_gen: v7x
topology: tpu7x:2x2x1
jax: 0.10.0
libtpu: 0.0.40
codegen_flags: <defaults>
</compile_context>

<pallas_src>
import math
import jax
import jax.numpy as jnp
from jax.experimental import pallas as pl
from jax.experimental.pallas import tpu as pltpu

FEAT_DIM = 1024      # densenet121 .features output channels
HIDDEN = 512         # projection hidden width
EMBED = 256          # out_dim
LN_EPS = 1e-5        # PyTorch LayerNorm default


def _layer_norm(x, w, b):
    mu = jnp.mean(x, axis=-1, keepdims=True)
    var = jnp.mean((x - mu) ** 2, axis=-1, keepdims=True)
    return (x - mu) * jax.lax.rsqrt(var + LN_EPS) * w + b


def _round_up(x, m):
    return ((x + m - 1) // m) * m


# --------------------------- fused tokenizer kernel --------------------------

def tokenizer_kernel(x_ref, weff_ref, stem_b_ref,
                     w1_ref, b1_ref, lnw_ref, lnb_ref,
                     w2_ref, b2_ref, o_ref):
    # x_ref: (TB, C*H*W) f32      weff: (C*H*W, 1024) bf16   stem_b: (1,1024) f32
    # w1: (1024, 512) bf16        w2: (512, 256) bf16        o_ref: (TB, 256) f32
    x = x_ref[...].astype(jnp.bfloat16)

    # Stem conv + global mean pool, pre-folded into weff (host side).
    feat = jnp.dot(x, weff_ref[...],
                   preferred_element_type=jnp.float32) + stem_b_ref[...]   # [TB,1024]

    # Projection head: Linear -> LayerNorm -> ReLU -> Linear (Dropouts = identity)
    h = jnp.dot(feat.astype(jnp.bfloat16), w1_ref[...],
                preferred_element_type=jnp.float32) + b1_ref[...]          # [TB, 512]
    h = _layer_norm(h, lnw_ref[...], lnb_ref[...])
    h = jnp.maximum(h, 0.0)
    o_ref[...] = jnp.dot(h.astype(jnp.bfloat16), w2_ref[...],
                         preferred_element_type=jnp.float32) + b2_ref[...]  # [TB, 256]


def dense_tokenizer_forward(x, p, tb=256):
    B, C, H, W = x.shape
    K = C * H * W
    x_flat = x.reshape(B, K)                       # lane-dense input layout

    tb = min(tb, _round_up(B, 8))                  # batch tile (multiple of 8)
    Bp = _round_up(B, tb)
    if Bp != B:
        x_flat = jnp.pad(x_flat, ((0, Bp - B), (0, 0)))
    n_tiles = Bp // tb

    weights = [p["stem_weff"], p["stem_b"], p["proj_w1"], p["proj_b1"],
               p["proj_lnw"], p["proj_lnb"], p["proj_w2"], p["proj_b2"]]
    # Whole-array weight blocks with constant index maps -> fetched into VMEM
    # once and kept resident across all grid steps (all weights are 2-D).
    w_specs = [pl.BlockSpec(w.shape, lambda i: (0, 0)) for w in weights]

    # v7x: with an even number (>=2) of batch tiles, shard tiles across the two
    # TensorCores; otherwise plain "parallel" (no-op on v5e/v6e's single TC).
    if n_tiles > 1 and n_tiles % 2 == 0:
        dims = (pltpu.CORE_PARALLEL,)
    else:
        dims = ("parallel",)

    out = pl.pallas_call(
        tokenizer_kernel,
        out_shape=jax.ShapeDtypeStruct((Bp, EMBED), jnp.float32),
        grid=(n_tiles,),
        in_specs=[pl.BlockSpec((tb, K), lambda i: (i, 0))] + w_specs,
        out_specs=pl.BlockSpec((tb, EMBED), lambda i: (i, 0)),
        compiler_params=pltpu.CompilerParams(
            dimension_semantics=dims,
            vmem_limit_bytes=48 * 1024 * 1024,     # safe headroom, fits v7x 64 MiB
        ),
    )(x_flat, *weights)
    return out[:B]                                  # [B, 256]


# --------------------------------- params ------------------------------------

def _xavier(key, fan_in, fan_out):
    bound = math.sqrt(6.0 / (fan_in + fan_out))
    return jax.random.uniform(key, (fan_in, fan_out), jnp.float32, -bound, bound)


def _fold_stem_into_pool(stem_w, C, H, W):
    """Fold 3x3/stride-1/pad-1 conv + global mean pool into one [C*H*W, 1024] weight.

    stem_w rows are ordered (kh, kw, cin).  mean_hw(conv(x)) == x_flat @ W_eff,
    with W_eff[(c,h,w),:] = (1/HW) * sum over kernel taps whose zero-padded
    receptive field covers spatial position (h,w).
    """
    w = stem_w.reshape(3, 3, C, FEAT_DIM)
    w_eff = jnp.zeros((C, H, W, FEAT_DIM), jnp.float32)
    for kh in range(3):
        r0, r1 = max(kh - 1, 0), min(kh - 1 + H, H)
        for kw in range(3):
            c0, c1 = max(kw - 1, 0), min(kw - 1 + W, W)
            w_eff = w_eff.at[:, r0:r1, c0:c1, :].add(w[kh, kw][:, None, None, :])
    return (w_eff / float(H * W)).reshape(C * H * W, FEAT_DIM).astype(jnp.bfloat16)


def init_params(key, c_in, h, w):
    k = jax.random.split(key, 3)
    p = {}
    # TODO(synk): stands in for the pretrained densenet121 backbone (see header).
    stem_w = jax.random.normal(k[0], (9 * c_in, FEAT_DIM), jnp.float32) * 0.05
    p["stem_weff"] = _fold_stem_into_pool(stem_w, c_in, h, w)     # [C*H*W, 1024] bf16
    p["stem_b"] = jnp.zeros((1, FEAT_DIM), jnp.float32)
    # projection: Linear(1024,512) -> LayerNorm(512) -> ReLU -> Linear(512,256)
    p["proj_w1"] = _xavier(k[1], FEAT_DIM, HIDDEN).astype(jnp.bfloat16)
    p["proj_b1"] = jnp.zeros((1, HIDDEN), jnp.float32)
    p["proj_lnw"] = jnp.ones((1, HIDDEN), jnp.float32)
    p["proj_lnb"] = jnp.zeros((1, HIDDEN), jnp.float32)
    p["proj_w2"] = _xavier(k[2], HIDDEN, EMBED).astype(jnp.bfloat16)
    p["proj_b2"] = jnp.zeros((1, EMBED), jnp.float32)
    return p


# ----------------------------- pure-JAX reference ----------------------------

def _ref_forward(x, p):
    B, C, H, W = x.shape
    xf = x.reshape(B, C * H * W).astype(jnp.bfloat16)
    feat = jnp.dot(xf, p["stem_weff"], preferred_element_type=jnp.float32) + p["stem_b"]
    h = jnp.dot(feat.astype(jnp.bfloat16), p["proj_w1"],
                preferred_element_type=jnp.float32) + p["proj_b1"]
    h = _layer_norm(h, p["proj_lnw"], p["proj_lnb"])
    h = jnp.maximum(h, 0.0)
    return jnp.dot(h.astype(jnp.bfloat16), p["proj_w2"],
                   preferred_element_type=jnp.float32) + p["proj_b2"]


if __name__ == "__main__":
    B, C, H, W = 2, 4, 16, 16
    key = jax.random.PRNGKey(0)
    k_img, k_params = jax.random.split(key)
    x = jax.random.normal(k_img, (B, C, H, W), jnp.float32)
    params = init_params(k_params, C, H, W)

    fwd = jax.jit(dense_tokenizer_forward)
    out = jax.block_until_ready(fwd(x, params))
    assert out.shape == (B, EMBED) and out.dtype == jnp.float32
    assert bool(jnp.all(jnp.isfinite(out)))

    ref = _ref_forward(x, params)
    assert bool(jnp.allclose(out, ref, atol=2e-2, rtol=2e-2))
    print("KERNEL_OK")
</pallas_src>

<mosaic_0001>
module attributes {stable_mosaic.version = 11 : i64} {
  func.func @tokenizer_kernel(%arg0: i32, %arg1: memref<8x1024xf32, #tpu.memory_space<vmem>>, %arg2: memref<1024x1024xbf16, #tpu.memory_space<vmem>>, %arg3: memref<1x1024xf32, #tpu.memory_space<vmem>>, %arg4: memref<1024x512xbf16, #tpu.memory_space<vmem>>, %arg5: memref<1x512xf32, #tpu.memory_space<vmem>>, %arg6: memref<1x512xf32, #tpu.memory_space<vmem>>, %arg7: memref<1x512xf32, #tpu.memory_space<vmem>>, %arg8: memref<512x256xbf16, #tpu.memory_space<vmem>>, %arg9: memref<1x256xf32, #tpu.memory_space<vmem>>, %arg10: memref<8x256xf32, #tpu.memory_space<vmem>>) attributes {dimension_semantics = [#tpu.dimension_semantics<parallel>], iteration_bounds = array<i64: 1>, scalar_prefetch = 0 : i64, scratch_operands = 0 : i64, tpu.core_type = #tpu.core_type<tc>, window_params = [{transform_indices = @transform_0, window_bounds = array<i64: 8, 1024>}, {pipeline_mode = #tpu.pipeline_mode<synchronous>, transform_indices = @transform_1, window_bounds = array<i64: 1024, 1024>}, {pipeline_mode = #tpu.pipeline_mode<synchronous>, transform_indices = @transform_2, window_bounds = array<i64: 1, 1024>}, {pipeline_mode = #tpu.pipeline_mode<synchronous>, transform_indices = @transform_3, window_bounds = array<i64: 1024, 512>}, {pipeline_mode = #tpu.pipeline_mode<synchronous>, transform_indices = @transform_4, window_bounds = array<i64: 1, 512>}, {pipeline_mode = #tpu.pipeline_mode<synchronous>, transform_indices = @transform_5, window_bounds = array<i64: 1, 512>}, {pipeline_mode = #tpu.pipeline_mode<synchronous>, transform_indices = @transform_6, window_bounds = array<i64: 1, 512>}, {pipeline_mode = #tpu.pipeline_mode<synchronous>, transform_indices = @transform_7, window_bounds = array<i64: 512, 256>}, {pipeline_mode = #tpu.pipeline_mode<synchronous>, transform_indices = @transform_8, window_bounds = array<i64: 1, 256>}, {transform_indices = @transform_9, window_bounds = array<i64: 8, 256>}]} {
    %c0 = arith.constant 0 : index
    %c0_0 = arith.constant 0 : index
    %0 = vector.load %arg1[%c0, %c0_0] : memref<8x1024xf32, #tpu.memory_space<vmem>>, vector<8x1024xf32>
    %1 = arith.truncf %0 : vector<8x1024xf32> to vector<8x1024xbf16>
    %c0_1 = arith.constant 0 : index
    %c0_2 = arith.constant 0 : index
    %2 = vector.load %arg2[%c0_1, %c0_2] : memref<1024x1024xbf16, #tpu.memory_space<vmem>>, vector<1024x1024xbf16>
    %cst = arith.constant dense<0.000000e+00> : vector<8x1024xf32>
    %3 = tpu.matmul %1, %2, %cst {dimension_numbers = #tpu.dot_dimension_numbers<[1], [0], [0], [1], [0, 0, 1, 1], [], []>} : vector<8x1024xbf16>, vector<1024x1024xbf16>, vector<8x1024xf32> -> vector<8x1024xf32>
    %c0_3 = arith.constant 0 : index
    %c0_4 = arith.constant 0 : index
    %4 = vector.load %arg3[%c0_3, %c0_4] : memref<1x1024xf32, #tpu.memory_space<vmem>>, vector<1x1024xf32>
    %5 = vector.broadcast %4 : vector<1x1024xf32> to vector<8x1024xf32>
    %6 = arith.addf %3, %5 : vector<8x1024xf32>
    %7 = arith.truncf %6 : vector<8x1024xf32> to vector<8x1024xbf16>
    %c0_5 = arith.constant 0 : index
    %c0_6 = arith.constant 0 : index
    %8 = vector.load %arg4[%c0_5, %c0_6] : memref<1024x512xbf16, #tpu.memory_space<vmem>>, vector<1024x512xbf16>
    %cst_7 = arith.constant dense<0.000000e+00> : vector<8x512xf32>
    %9 = tpu.matmul %7, %8, %cst_7 {dimension_numbers = #tpu.dot_dimension_numbers<[1], [0], [0], [1], [0, 0, 1, 1], [], []>} : vector<8x1024xbf16>, vector<1024x512xbf16>, vector<8x512xf32> -> vector<8x512xf32>
    %c0_8 = arith.constant 0 : index
    %c0_9 = arith.constant 0 : index
    %10 = vector.load %arg5[%c0_8, %c0_9] : memref<1x512xf32, #tpu.memory_space<vmem>>, vector<1x512xf32>
    %11 = vector.broadcast %10 : vector<1x512xf32> to vector<8x512xf32>
    %12 = arith.addf %9, %11 : vector<8x512xf32>
    %c0_10 = arith.constant 0 : index
    %c0_11 = arith.constant 0 : index
    %13 = vector.load %arg6[%c0_10, %c0_11] : memref<1x512xf32, #tpu.memory_space<vmem>>, vector<1x512xf32>
    %c0_12 = arith.constant 0 : index
    %c0_13 = arith.constant 0 : index
    %14 = vector.load %arg7[%c0_12, %c0_13] : memref<1x512xf32, #tpu.memory_space<vmem>>, vector<1x512xf32>
    %cst_14 = arith.constant dense<0.000000e+00> : vector<8xf32>
    %15 = vector.multi_reduction <add>, %12, %cst_14 [1] : vector<8x512xf32> to vector<8xf32>
    %16 = vector.shape_cast %15 : vector<8xf32> to vector<8x1xf32>
    %cst_15 = arith.constant 5.120000e+02 : f32
    %17 = vector.broadcast %cst_15 : f32 to vector<8x1xf32>
    %18 = arith.divf %16, %17 : vector<8x1xf32>
    %19 = vector.broadcast %18 : vector<8x1xf32> to vector<8x512xf32>
    %20 = arith.subf %12, %19 : vector<8x512xf32>
    %21 = arith.mulf %20, %20 : vector<8x512xf32>
    %cst_16 = arith.constant dense<0.000000e+00> : vector<8xf32>
    %22 = vector.multi_reduction <add>, %21, %cst_16 [1] : vector<8x512xf32> to vector<8xf32>
    %23 = vector.shape_cast %22 : vector<8xf32> to vector<8x1xf32>
    %cst_17 = arith.constant 5.120000e+02 : f32
    %24 = vector.broadcast %cst_17 : f32 to vector<8x1xf32>
    %25 = arith.divf %23, %24 : vector<8x1xf32>
    %26 = vector.broadcast %18 : vector<8x1xf32> to vector<8x512xf32>
    %27 = arith.subf %12, %26 : vector<8x512xf32>
    %cst_18 = arith.constant 9.99999974E-6 : f32
    %28 = vector.broadcast %cst_18 : f32 to vector<8x1xf32>
    %29 = arith.addf %25, %28 : vector<8x1xf32>
    %30 = math.rsqrt %29 : vector<8x1xf32>
    %31 = vector.broadcast %30 : vector<8x1xf32> to vector<8x512xf32>
    %32 = arith.mulf %27, %31 : vector<8x512xf32>
    %33 = vector.broadcast %13 : vector<1x512xf32> to vector<8x512xf32>
    %34 = arith.mulf %32, %33 : vector<8x512xf32>
    %35 = vector.broadcast %14 : vector<1x512xf32> to vector<8x512xf32>
    %36 = arith.addf %34, %35 : vector<8x512xf32>
    %cst_19 = arith.constant 0.000000e+00 : f32
    %37 = vector.broadcast %cst_19 : f32 to vector<8x512xf32>
    %38 = arith.maximumf %36, %37 : vector<8x512xf32>
    %39 = arith.truncf %38 : vector<8x512xf32> to vector<8x512xbf16>
    %c0_20 = arith.constant 0 : index
    %c0_21 = arith.constant 0 : index
    %40 = vector.load %arg8[%c0_20, %c0_21] : memref<512x256xbf16, #tpu.memory_space<vmem>>, vector<512x256xbf16>
    %cst_22 = arith.constant dense<0.000000e+00> : vector<8x256xf32>
    %41 = tpu.matmul %39, %40, %cst_22 {dimension_numbers = #tpu.dot_dimension_numbers<[1], [0], [0], [1], [0, 0, 1, 1], [], []>} : vector<8x512xbf16>, vector<512x256xbf16>, vector<8x256xf32> -> vector<8x256xf32>
    %c0_23 = arith.constant 0 : index
    %c0_24 = arith.constant 0 : index
    %42 = vector.load %arg9[%c0_23, %c0_24] : memref<1x256xf32, #tpu.memory_space<vmem>>, vector<1x256xf32>
    %43 = vector.broadcast %42 : vector<1x256xf32> to vector<8x256xf32>
    %44 = arith.addf %41, %43 : vector<8x256xf32>
    %c0_25 = arith.constant 0 : index
    %c0_26 = arith.constant 0 : index
    %45 = vector.load %arg10[%c0_25, %c0_26] : memref<8x256xf32, #tpu.memory_space<vmem>>, vector<8x256xf32>
    tpu.vector_store %arg10[%c0_25, %c0_26], %44 {strides = array<i32>} : memref<8x256xf32, #tpu.memory_space<vmem>>, vector<8x256xf32>,
    return
  }
  func.func @transform_0(%arg0: i32) -> (i32, i32) {
    %c0_i32 = arith.constant 0 : i32
    %c0_i32_0 = arith.constant 0 : i32
    return %arg0, %c0_i32 : i32, i32
  }
  func.func @transform_1(%arg0: i32) -> (i32, i32) {
    %c0_i32 = arith.constant 0 : i32
    %c0_i32_0 = arith.constant 0 : i32
    %c0_i32_1 = arith.constant 0 : i32
    return %c0_i32, %c0_i32_0 : i32, i32
  }
  func.func @transform_2(%arg0: i32) -> (i32, i32) {
    %c0_i32 = arith.constant 0 : i32
    %c0_i32_0 = arith.constant 0 : i32
    %c0_i32_1 = arith.constant 0 : i32
    return %c0_i32, %c0_i32_0 : i32, i32
  }
  func.func @transform_3(%arg0: i32) -> (i32, i32) {
    %c0_i32 = arith.constant 0 : i32
    %c0_i32_0 = arith.constant 0 : i32
    %c0_i32_1 = arith.constant 0 : i32
    return %c0_i32, %c0_i32_0 : i32, i32
  }
  func.func @transform_4(%arg0: i32) -> (i32, i32) {
    %c0_i32 = arith.constant 0 : i32
    %c0_i32_0 = arith.constant 0 : i32
    %c0_i32_1 = arith.constant 0 : i32
    return %c0_i32, %c0_i32_0 : i32, i32
  }
  func.func @transform_5(%arg0: i32) -> (i32, i32) {
    %c0_i32 = arith.constant 0 : i32
    %c0_i32_0 = arith.constant 0 : i32
    %c0_i32_1 = arith.constant 0 : i32
    return %c0_i32, %c0_i32_0 : i32, i32
  }
  func.func @transform_6(%arg0: i32) -> (i32, i32) {
    %c0_i32 = arith.constant 0 : i32
    %c0_i32_0 = arith.constant 0 : i32
    %c0_i32_1 = arith.constant 0 : i32
    return %c0_i32, %c0_i32_0 : i32, i32
  }
  func.func @transform_7(%arg0: i32) -> (i32, i32) {
    %c0_i32 = arith.constant 0 : i32
    %c0_i32_0 = arith.constant 0 : i32
    %c0_i32_1 = arith.constant 0 : i32
    return %c0_i32, %c0_i32_0 : i32, i32
  }
  func.func @transform_8(%arg0: i32) -> (i32, i32) {
    %c0_i32 = arith.constant 0 : i32
    %c0_i32_0 = arith.constant 0 : i32
    %c0_i32_1 = arith.constant 0 : i32
    return %c0_i32, %c0_i32_0 : i32, i32
  }
  func.func @transform_9(%arg0: i32) -> (i32, i32) {
    %c0_i32 = arith.constant 0 : i32
    %c0_i32_0 = arith.constant 0 : i32
    return %arg0, %c0_i32 : i32, i32
  }
}

</mosaic_0001>

<llo_original>
// kernel: dense_tokenizer_forward.1
$region0: #{dense_tokenizer_forward.1}
  #allocation0 [shape = 'u32[]', space=smem, size = 0x4, offset = 0x4, fixed_abs, tag = 'smem constant byte address 0x4 - core index']
  #allocation1 [shape = 'u32[144,128]{1,0:T(1,128)}', space=vmem, size = 0x12000, scoped, tag = 'internal scratch']
  %s0 = inlined_call_operand.vmem [shape: f32[8,1024], index: 0, kind: input, shape index: {}]
  %s1 = inlined_call_operand.hbm [shape: bf16[1024,1024], index: 1, kind: input, shape index: {}]
  %s2 = inlined_call_operand.hbm [shape: f32[1,1024], index: 2, kind: input, shape index: {}]
  %s3 = inlined_call_operand.hbm [shape: bf16[1024,512], index: 3, kind: input, shape index: {}]
  %s4 = inlined_call_operand.hbm [shape: f32[1,512], index: 4, kind: input, shape index: {}]
  %s5 = inlined_call_operand.hbm [shape: f32[1,512], index: 5, kind: input, shape index: {}]
  %s6 = inlined_call_operand.hbm [shape: f32[1,512], index: 6, kind: input, shape index: {}]
  %s7 = inlined_call_operand.hbm [shape: bf16[512,256], index: 7, kind: input, shape index: {}]
  %s8 = inlined_call_operand.hbm [shape: f32[1,256], index: 8, kind: input, shape index: {}]
  %s9 = inlined_call_operand.vmem [shape: f32[8,256], index: 9, kind: output, shape index: {}]
  %s10 = sld [smem:[#allocation0]]
  $region78: #{dense_tokenizer_forward.1} parent=0
    _
  %s12 = ssub.s32 1, %s10
  %s13 = scalar_select 0, %s12, %s10
  $region1: #{dense_tokenizer_forward.1} parent=0
    #allocation2 [shape = 'u8[2097152]{0}', space=vmem, size = 0x200000, scoped, tag = 'input window, operand 1, single buffered']
    #allocation3 [shape = 's32[1]{0}', space=sflag, size = 0x4, scoped, tag = 'scoped memory for dense_tokenizer_forward.1']
    #allocation4 [shape = 'u8[4096]{0}', space=vmem, size = 0x1000, scoped, tag = 'input window, operand 2, single buffered']
    #allocation5 [shape = 's32[1]{0}', space=sflag, size = 0x4, scoped, tag = 'scoped memory for dense_tokenizer_forward.1']
    #allocation6 [shape = 'u8[1048576]{0}', space=vmem, size = 0x100000, scoped, tag = 'input window, operand 3, single buffered']
    #allocation7 [shape = 'u8[2048]{0}', space=vmem, size = 0x800, scoped, tag = 'input window, operand 4, single buffered']
    #allocation8 [shape = 's32[1]{0}', space=sflag, size = 0x4, scoped, tag = 'scoped memory for dense_tokenizer_forward.1']
    #allocation9 [shape = 'u8[2048]{0}', space=vmem, size = 0x800, scoped, tag = 'input window, operand 5, single buffered']
    #allocation10 [shape = 'u8[2048]{0}', space=vmem, size = 0x800, scoped, tag = 'input window, operand 6, single buffered']
    #allocation11 [shape = 's32[1]{0}', space=sflag, size = 0x4, scoped, tag = 'scoped memory for dense_tokenizer_forward.1']
    #allocation12 [shape = 'u8[262144]{0}', space=vmem, size = 0x40000, scoped, tag = 'input window, operand 7, single buffered']
    #allocation13 [shape = 'u8[1024]{0}', space=vmem, size = 0x400, scoped, tag = 'input window, operand 8, single buffered']
    #allocation14 [shape = 's32[1]{0}', space=sflag, size = 0x4, scoped, tag = 'scoped memory for dense_tokenizer_forward.1']
    %14 = vsyncpa [#allocation3], 0
    %15 = vsyncpa [#allocation5], 0
    %16 = vsyncpa [#allocation8], 0
    %17 = vsyncpa [#allocation11], 0
    %18 = vsyncpa [#allocation14], 0
    // Predicated region
    $region2: #{dense_tokenizer_forward.1} parent=1 // pred_check
      _
    $region3: #{dense_tokenizer_forward.1} parent=1 // pred_check_branch
      %20 = sbr.rel (0) target = $region5
    $region4: #{dense_tokenizer_forward.1} parent=1 // pred_region
      _
    $region5: #{dense_tokenizer_forward.1} parent=1 // pred_fallthru
      _
    // Predicated region
    $region6: #{dense_tokenizer_forward.1} parent=1 // pred_check
      _
    $region7: #{dense_tokenizer_forward.1} parent=1 // pred_check_branch
      %22 = sbr.rel (0) target = $region9
    $region8: #{dense_tokenizer_forward.1} parent=1 // pred_region
      %s24 = ssub.s32 65536, 65536
      %25 = vsyncadd [#allocation3], %s24
      %s26 = sshll.u32 [#allocation2], 4
      %s27 = int_to_ptr.vmem [resolvable:$true] %s26
      %32 = dma.hbm_to_vmem [thread:$0]  %s1, 65536, %s27, [#allocation3], 512, 512, 32
    $region9: #{dense_tokenizer_forward.1} parent=1 // pred_fallthru
      _
    // Predicated region
    $region10: #{dense_tokenizer_forward.1} parent=1 // pred_check
      _
    $region11: #{dense_tokenizer_forward.1} parent=1 // pred_check_branch
      %34 = sbr.rel (0) target = $region13
    $region12: #{dense_tokenizer_forward.1} parent=1 // pred_region
      %s36 = ssub.s32 128, 128
      %37 = vsyncadd [#allocation5], %s36
      %s39 = sshll.u32 [#allocation4], 4
      %s40 = int_to_ptr.vmem [resolvable:$true] %s39
      %42 = dma.hbm_to_vmem [thread:$0]  %s2, 128, %s40, [#allocation5]
    $region13: #{dense_tokenizer_forward.1} parent=1 // pred_fallthru
      _
    // Predicated region
    $region14: #{dense_tokenizer_forward.1} parent=1 // pred_check
      _
    $region15: #{dense_tokenizer_forward.1} parent=1 // pred_check_branch
      %44 = sbr.rel (0) target = $region17
    $region16: #{dense_tokenizer_forward.1} parent=1 // pred_region
      %s46 = ssub.s32 32768, 32768
      %47 = vsyncadd [#allocation5], %s46
      %s48 = sshll.u32 [#allocation6], 4
      %s49 = int_to_ptr.vmem [resolvable:$true] %s48
      %54 = dma.hbm_to_vmem [thread:$0]  %s3, 32768, %s49, [#allocation5], 256, 256, 16
    $region17: #{dense_tokenizer_forward.1} parent=1 // pred_fallthru
      _
    // Predicated region
    $region18: #{dense_tokenizer_forward.1} parent=1 // pred_check
      _
    $region19: #{dense_tokenizer_forward.1} parent=1 // pred_check_branch
      %56 = sbr.rel (0) target = $region21
    $region20: #{dense_tokenizer_forward.1} parent=1 // pred_region
      %s58 = ssub.s32 64, 64
      %59 = vsyncadd [#allocation8], %s58
      %s61 = sshll.u32 [#allocation7], 4
      %s62 = int_to_ptr.vmem [resolvable:$true] %s61
      %64 = dma.hbm_to_vmem [thread:$0]  %s4, 64, %s62, [#allocation8]
    $region21: #{dense_tokenizer_forward.1} parent=1 // pred_fallthru
      _
    // Predicated region
    $region22: #{dense_tokenizer_forward.1} parent=1 // pred_check
      _
    $region23: #{dense_tokenizer_forward.1} parent=1 // pred_check_branch
      %66 = sbr.rel (0) target = $region25
    $region24: #{dense_tokenizer_forward.1} parent=1 // pred_region
      %s68 = ssub.s32 64, 64
      %69 = vsyncadd [#allocation8], %s68
      %s71 = sshll.u32 [#allocation9], 4
      %s72 = int_to_ptr.vmem [resolvable:$true] %s71
      %74 = dma.hbm_to_vmem [thread:$0]  %s5, 64, %s72, [#allocation8]
    $region25: #{dense_tokenizer_forward.1} parent=1 // pred_fallthru
      _
    // Predicated region
    $region26: #{dense_tokenizer_forward.1} parent=1 // pred_check
      _
    $region27: #{dense_tokenizer_forward.1} parent=1 // pred_check_branch
      %76 = sbr.rel (0) target = $region29
    $region28: #{dense_tokenizer_forward.1} parent=1 // pred_region
      %s78 = ssub.s32 64, 64
      %79 = vsyncadd [#allocation11], %s78
      %s81 = sshll.u32 [#allocation10], 4
      %s82 = int_to_ptr.vmem [resolvable:$true] %s81
      %84 = dma.hbm_to_vmem [thread:$0]  %s6, 64, %s82, [#allocation11]
    $region29: #{dense_tokenizer_forward.1} parent=1 // pred_fallthru
      _
    // Predicated region
    $region30: #{dense_tokenizer_forward.1} parent=1 // pred_check
      _
    $region31: #{dense_tokenizer_forward.1} parent=1 // pred_check_branch
      %86 = sbr.rel (0) target = $region33
    $region32: #{dense_tokenizer_forward.1} parent=1 // pred_region
      %s88 = ssub.s32 8192, 8192
      %89 = vsyncadd [#allocation11], %s88
      %s90 = sshll.u32 [#allocation12], 4
      %s91 = int_to_ptr.vmem [resolvable:$true] %s90
      %96 = dma.hbm_to_vmem [thread:$0]  %s7, 8192, %s91, [#allocation11], 128, 128, 8
    $region33: #{dense_tokenizer_forward.1} parent=1 // pred_fallthru
      _
    // Predicated region
    $region34: #{dense_tokenizer_forward.1} parent=1 // pred_check
      _
    $region35: #{dense_tokenizer_forward.1} parent=1 // pred_check_branch
      %98 = sbr.rel (0) target = $region37
    $region36: #{dense_tokenizer_forward.1} parent=1 // pred_region
      %s100 = ssub.s32 32, 32
      %101 = vsyncadd [#allocation14], %s100
      %s103 = sshll.u32 [#allocation13], 4
      %s104 = int_to_ptr.vmem [resolvable:$true] %s103
      %106 = dma.hbm_to_vmem [thread:$0]  %s8, 32, %s104, [#allocation14]
    $region37: #{dense_tokenizer_forward.1} parent=1 // pred_fallthru
      _
    // Predicated region
    $region38: #{dense_tokenizer_forward.1} parent=1 // pred_check
      _
    $region39: #{dense_tokenizer_forward.1} parent=1 // pred_check_branch
      %108 = sbr.rel (0) target = $region41
    $region40: #{dense_tokenizer_forward.1} parent=1 // pred_region
      %109 = dma.done [#allocation3], 65536
    $region41: #{dense_tokenizer_forward.1} parent=1 // pred_fallthru
      _
    // Predicated region
    $region42: #{dense_tokenizer_forward.1} parent=1 // pred_check
      _
    $region43: #{dense_tokenizer_forward.1} parent=1 // pred_check_branch
      %111 = sbr.rel (0) target = $region45
    $region44: #{dense_tokenizer_forward.1} parent=1 // pred_region
      %112 = dma.done [#allocation5], 128
    $region45: #{dense_tokenizer_forward.1} parent=1 // pred_fallthru
      _
    // Predicated region
    $region46: #{dense_tokenizer_forward.1} parent=1 // pred_check
      _
    $region47: #{dense_tokenizer_forward.1} parent=1 // pred_check_branch
      %114 = sbr.rel (0) target = $region49
    $region48: #{dense_tokenizer_forward.1} parent=1 // pred_region
      %115 = dma.done [#allocation5], 32768
    $region49: #{dense_tokenizer_forward.1} parent=1 // pred_fallthru
      _
    // Predicated region
    $region50: #{dense_tokenizer_forward.1} parent=1 // pred_check
      _
    $region51: #{dense_tokenizer_forward.1} parent=1 // pred_check_branch
      %117 = sbr.rel (0) target = $region53
    $region52: #{dense_tokenizer_forward.1} parent=1 // pred_region
      %118 = dma.done [#allocation8], 64
    $region53: #{dense_tokenizer_forward.1} parent=1 // pred_fallthru
      _
    // Predicated region
    $region54: #{dense_tokenizer_forward.1} parent=1 // pred_check
      _
    $region55: #{dense_tokenizer_forward.1} parent=1 // pred_check_branch
      %120 = sbr.rel (0) target = $region57
    $region56: #{dense_tokenizer_forward.1} parent=1 // pred_region
      %121 = dma.done [#allocation8], 64
    $region57: #{dense_tokenizer_forward.1} parent=1 // pred_fallthru
      _
    // Predicated region
    $region58: #{dense_tokenizer_forward.1} parent=1 // pred_check
      _
    $region59: #{dense_tokenizer_forward.1} parent=1 // pred_check_branch
      %123 = sbr.rel (0) target = $region61
    $region60: #{dense_tokenizer_forward.1} parent=1 // pred_region
      %124 = dma.done [#allocation11], 64
    $region61: #{dense_tokenizer_forward.1} parent=1 // pred_fallthru
      _
    // Predicated region
    $region62: #{dense_tokenizer_forward.1} parent=1 // pred_check
      _
    $region63: #{dense_tokenizer_forward.1} parent=1 // pred_check_branch
      %126 = sbr.rel (0) target = $region65
    $region64: #{dense_tokenizer_forward.1} parent=1 // pred_region
      %127 = dma.done [#allocation11], 8192
    $region65: #{dense_tokenizer_forward.1} parent=1 // pred_fallthru
      _
    // Predicated region
    $region66: #{dense_tokenizer_forward.1} parent=1 // pred_check
      _
    $region67: #{dense_tokenizer_forward.1} parent=1 // pred_check_branch
      %129 = sbr.rel (0) target = $region69
    $region68: #{dense_tokenizer_forward.1} parent=1 // pred_region
      %130 = dma.done [#allocation14], 32
    $region69: #{dense_tokenizer_forward.1} parent=1 // pred_fallthru
      _
    %v131 = vld [vmem:[%s0] sm:$0xff]
    %v132 = vld [vmem:[%s0 + $0x8] sm:$0xff]
    %v133 = vld [vmem:[%s0 + $0x10] sm:$0xff]
    %v134 = vld [vmem:[%s0 + $0x18] sm:$0xff]
    %v135 = vld [vmem:[%s0 + $0x20] sm:$0xff]
    %v136 = vld [vmem:[%s0 + $0x28] sm:$0xff]
    %v137 = vld [vmem:[%s0 + $0x30] sm:$0xff]
    %v138 = vld [vmem:[%s0 + $0x38] sm:$0xff]
    %v139 = vpack.c.bf16 %v131, %v131
    %v140 = vpack.c.bf16 %v132, %v132
    %v141 = vpack.c.bf16 %v133, %v133
    %v142 = vpack.c.bf16 %v134, %v134
    %v143 = vpack.c.bf16 %v135, %v135
    %v144 = vpack.c.bf16 %v136, %v136
    %v145 = vpack.c.bf16 %v137, %v137
    %v146 = vpack.c.bf16 %v138, %v138
    %v147 = vld [vmem:[#allocation2] sm:$0xff]
    %v148 = vld [vmem:[#allocation2 + $0x8] sm:$0xff]
    %v149 = vld [vmem:[#allocation2 + $0x10] sm:$0xff]
    %v150 = vld [vmem:[#allocation2 + $0x18] sm:$0xff]
    %v151 = vld [vmem:[#allocation2 + $0x20] sm:$0xff]
    %v152 = vld [vmem:[#allocation2 + $0x28] sm:$0xff]
    %v153 = vld [vmem:[#allocation2 + $0x30] sm:$0xff]
    %v154 = vld [vmem:[#allocation2 + $0x38] sm:$0xff]
    %v155 = vld [vmem:[#allocation2 + $0x40] sm:$0xff]
    %v156 = vld [vmem:[#allocation2 + $0x48] sm:$0xff]
    %v157 = vld [vmem:[#allocation2 + $0x50] sm:$0xff]
    %v158 = vld [vmem:[#allocation2 + $0x58] sm:$0xff]
    %v159 = vld [vmem:[#allocation2 + $0x60] sm:$0xff]
    %v160 = vld [vmem:[#allocation2 + $0x68] sm:$0xff]
    %v161 = vld [vmem:[#allocation2 + $0x70] sm:$0xff]
    %v162 = vld [vmem:[#allocation2 + $0x78] sm:$0xff]
    %v163 = vld [vmem:[#allocation2 + $0x80] sm:$0xff]
    %v164 = vld [vmem:[#allocation2 + $0x88] sm:$0xff]
    %v165 = vld [vmem:[#allocation2 + $0x90] sm:$0xff]
    %v166 = vld [vmem:[#allocation2 + $0x98] sm:$0xff]
    %v167 = vld [vmem:[#allocation2 + $0xa0] sm:$0xff]
    %v168 = vld [vmem:[#allocation2 + $0xa8] sm:$0xff]
    %v169 = vld [vmem:[#allocation2 + $0xb0] sm:$0xff]
    %v170 = vld [vmem:[#allocation2 + $0xb8] sm:$0xff]
    %v171 = vld [vmem:[#allocation2 + $0xc0] sm:$0xff]
    %v172 = vld [vmem:[#allocation2 + $0xc8] sm:$0xff]
    %v173 = vld [vmem:[#allocation2 + $0xd0] sm:$0xff]
    %v174 = vld [vmem:[#allocation2 + $0xd8] sm:$0xff]
    %v175 = vld [vmem:[#allocation2 + $0xe0] sm:$0xff]
    %v176 = vld [vmem:[#allocation2 + $0xe8] sm:$0xff]
    %v177 = vld [vmem:[#allocation2 + $0xf0] sm:$0xff]
    %v178 = vld [vmem:[#allocation2 + $0xf8] sm:$0xff]
    %v179 = vld [vmem:[#allocation2 + $0x100] sm:$0xff]
    %v180 = vld [vmem:[#allocation2 + $0x108] sm:$0xff]
    %v181 = vld [vmem:[#allocation2 + $0x110] sm:$0xff]
    %v182 = vld [vmem:[#allocation2 + $0x118] sm:$0xff]
    %v183 = vld [vmem:[#allocation2 + $0x120] sm:$0xff]
    %v184 = vld [vmem:[#allocation2 + $0x128] sm:$0xff]
    %v185 = vld [vmem:[#allocation2 + $0x130] sm:$0xff]
    %v186 = vld [vmem:[#allocation2 + $0x138] sm:$0xff]
    %v187 = vld [vmem:[#allocation2 + $0x140] sm:$0xff]
    %v188 = vld [vmem:[#allocation2 + $0x148] sm:$0xff]
    %v189 = vld [vmem:[#allocation2 + $0x150] sm:$0xff]
    %v190 = vld [vmem:[#allocation2 + $0x158] sm:$0xff]
    %v191 = vld [vmem:[#allocation2 + $0x160] sm:$0xff]
    %v192 = vld [vmem:[#allocation2 + $0x168] sm:$0xff]
    %v193 = vld [vmem:[#allocation2 + $0x170] sm:$0xff]
    %v194 = vld [vmem:[#allocation2 + $0x178] sm:$0xff]
    %v195 = vld [vmem:[#allocation2 + $0x180] sm:$0xff]
    %v196 = vld [vmem:[#allocation2 + $0x188] sm:$0xff]
    %v197 = vld [vmem:[#allocation2 + $0x190] sm:$0xff]
    %v198 = vld [vmem:[#allocation2 + $0x198] sm:$0xff]
    %v199 = vld [vmem:[#allocation2 + $0x1a0] sm:$0xff]
    %v200 = vld [vmem:[#allocation2 + $0x1a8] sm:$0xff]
    %v201 = vld [vmem:[#allocation2 + $0x1b0] sm:$0xff]
    %v202 = vld [vmem:[#allocation2 + $0x1b8] sm:$0xff]
    %v203 = vld [vmem:[#allocation2 + $0x1c0] sm:$0xff]
    %v204 = vld [vmem:[#allocation2 + $0x1c8] sm:$0xff]
    %v205 = vld [vmem:[#allocation2 + $0x1d0] sm:$0xff]
    %v206 = vld [vmem:[#allocation2 + $0x1d8] sm:$0xff]
    %v207 = vld [vmem:[#allocation2 + $0x1e0] sm:$0xff]
    %v208 = vld [vmem:[#allocation2 + $0x1e8] sm:$0xff]
    %v209 = vld [vmem:[#allocation2 + $0x1f0] sm:$0xff]
    %v210 = vld [vmem:[#allocation2 + $0x1f8] sm:$0xff]
    %v211 = vld [vmem:[#allocation2 + $0x200] sm:$0xff]
    %v212 = vld [vmem:[#allocation2 + $0x208] sm:$0xff]
    %v213 = vld [vmem:[#allocation2 + $0x210] sm:$0xff]
    %v214 = vld [vmem:[#allocation2 + $0x218] sm:$0xff]
    %v215 = vld [vmem:[#allocation2 + $0x220] sm:$0xff]
    %v216 = vld [vmem:[#allocation2 + $0x228] sm:$0xff]
    %v217 = vld [vmem:[#allocation2 + $0x230] sm:$0xff]
    %v218 = vld [vmem:[#allocation2 + $0x238] sm:$0xff]
    %v219 = vld [vmem:[#allocation2 + $0x240] sm:$0xff]
    %v220 = vld [vmem:[#allocation2 + $0x248] sm:$0xff]
    %v221 = vld [vmem:[#allocation2 + $0x250] sm:$0xff]
    %v222 = vld [vmem:[#allocation2 + $0x258] sm:$0xff]
    %v223 = vld [vmem:[#allocation2 + $0x260] sm:$0xff]
    %v224 = vld [vmem:[#allocation2 + $0x268] sm:$0xff]
    %v225 = vld [vmem:[#allocation2 + $0x270] sm:$0xff]
    %v226 = vld [vmem:[#allocation2 + $0x278] sm:$0xff]
    %v227 = vld [vmem:[#allocation2 + $0x280] sm:$0xff]
    %v228 = vld [vmem:[#allocation2 + $0x288] sm:$0xff]
    %v229 = vld [vmem:[#allocation2 + $0x290] sm:$0xff]
    %v230 = vld [vmem:[#allocation2 + $0x298] sm:$0xff]
    %v231 = vld [vmem:[#allocation2 + $0x2a0] sm:$0xff]
    %v232 = vld [vmem:[#allocation2 + $0x2a8] sm:$0xff]
    %v233 = vld [vmem:[#allocation2 + $0x2b0] sm:$0xff]
    %v234 = vld [vmem:[#allocation2 + $0x2b8] sm:$0xff]
    %v235 = vld [vmem:[#allocation2 + $0x2c0] sm:$0xff]
    %v236 = vld [vmem:[#allocation2 + $0x2c8] sm:$0xff]
    %v237 = vld [vmem:[#allocation2 + $0x2d0] sm:$0xff]
    %v238 = vld [vmem:[#allocation2 + $0x2d8] sm:$0xff]
    %v239 = vld [vmem:[#allocation2 + $0x2e0] sm:$0xff]
    %v240 = vld [vmem:[#allocation2 + $0x2e8] sm:$0xff]
    %v241 = vld [vmem:[#allocation2 + $0x2f0] sm:$0xff]
    %v242 = vld [vmem:[#allocation2 + $0x2f8] sm:$0xff]
    %v243 = vld [vmem:[#allocation2 + $0x300] sm:$0xff]
    %v244 = vld [vmem:[#allocation2 + $0x308] sm:$0xff]
    %v245 = vld [vmem:[#allocation2 + $0x310] sm:$0xff]
    %v246 = vld [vmem:[#allocation2 + $0x318] sm:$0xff]
    %v247 = vld [vmem:[#allocation2 + $0x320] sm:$0xff]
    %v248 = vld [vmem:[#allocation2 + $0x328] sm:$0xff]
    %v249 = vld [vmem:[#allocation2 + $0x330] sm:$0xff]
    %v250 = vld [vmem:[#allocation2 + $0x338] sm:$0xff]
    %v251 = vld [vmem:[#allocation2 + $0x340] sm:$0xff]
    %v252 = vld [vmem:[#allocation2 + $0x348] sm:$0xff]
    %v253 = vld [vmem:[#allocation2 + $0x350] sm:$0xff]
    %v254 = vld [vmem:[#allocation2 + $0x358] sm:$0xff]
    %v255 = vld [vmem:[#allocation2 + $0x360] sm:$0xff]
    %v256 = vld [vmem:[#allocation2 + $0x368] sm:$0xff]
    %v257 = vld [vmem:[#allocation2 + $0x370] sm:$0xff]
    %v258 = vld [vmem:[#allocation2 + $0x378] sm:$0xff]
    %v259 = vld [vmem:[#allocation2 + $0x380] sm:$0xff]
    %v260 = vld [vmem:[#allocation2 + $0x388] sm:$0xff]
    %v261 = vld [vmem:[#allocation2 + $0x390] sm:$0xff]
    %v262 = vld [vmem:[#allocation2 + $0x398] sm:$0xff]
    %v263 = vld [vmem:[#allocation2 + $0x3a0] sm:$0xff]
    %v264 = vld [vmem:[#allocation2 + $0x3a8] sm:$0xff]
    %v265 = vld [vmem:[#allocation2 + $0x3b0] sm:$0xff]
    %v266 = vld [vmem:[#allocation2 + $0x3b8] sm:$0xff]
    %v267 = vld [vmem:[#allocation2 + $0x3c0] sm:$0xff]
    %v268 = vld [vmem:[#allocation2 + $0x3c8] sm:$0xff]
    %v269 = vld [vmem:[#allocation2 + $0x3d0] sm:$0xff]
    %v270 = vld [vmem:[#allocation2 + $0x3d8] sm:$0xff]
    %v271 = vld [vmem:[#allocation2 + $0x3e0] sm:$0xff]
    %v272 = vld [vmem:[#allocation2 + $0x3e8] sm:$0xff]
    %v273 = vld [vmem:[#allocation2 + $0x3f0] sm:$0xff]
    %v274 = vld [vmem:[#allocation2 + $0x3f8] sm:$0xff]
    %v275 = vld [vmem:[#allocation2 + $0x400] sm:$0xff]
    %v276 = vld [vmem:[#allocation2 + $0x408] sm:$0xff]
    %v277 = vld [vmem:[#allocation2 + $0x410] sm:$0xff]
    %v278 = vld [vmem:[#allocation2 + $0x418] sm:$0xff]
    %v279 = vld [vmem:[#allocation2 + $0x420] sm:$0xff]
    %v280 = vld [vmem:[#allocation2 + $0x428] sm:$0xff]
    %v281 = vld [vmem:[#allocation2 + $0x430] sm:$0xff]
    %v282 = vld [vmem:[#allocation2 + $0x438] sm:$0xff]
    %v283 = vld [vmem:[#allocation2 + $0x440] sm:$0xff]
    %v284 = vld [vmem:[#allocation2 + $0x448] sm:$0xff]
    %v285 = vld [vmem:[#allocation2 + $0x450] sm:$0xff]
    %v286 = vld [vmem:[#allocation2 + $0x458] sm:$0xff]
    %v287 = vld [vmem:[#allocation2 + $0x460] sm:$0xff]
    %v288 = vld [vmem:[#allocation2 + $0x468] sm:$0xff]
    %v289 = vld [vmem:[#allocation2 + $0x470] sm:$0xff]
    %v290 = vld [vmem:[#allocation2 + $0x478] sm:$0xff]
    %v291 = vld [vmem:[#allocation2 + $0x480] sm:$0xff]
    %v292 = vld [vmem:[#allocation2 + $0x488] sm:$0xff]
    %v293 = vld [vmem:[#allocation2 + $0x490] sm:$0xff]
    %v294 = vld [vmem:[#allocation2 + $0x498] sm:$0xff]
    %v295 = vld [vmem:[#allocation2 + $0x4a0] sm:$0xff]
    %v296 = vld [vmem:[#allocation2 + $0x4a8] sm:$0xff]
    %v297 = vld [vmem:[#allocation2 + $0x4b0] sm:$0xff]
    %v298 = vld [vmem:[#allocation2 + $0x4b8] sm:$0xff]
    %v299 = vld [vmem:[#allocation2 + $0x4c0] sm:$0xff]
    %v300 = vld [vmem:[#allocation2 + $0x4c8] sm:$0xff]
    %v301 = vld [vmem:[#allocation2 + $0x4d0] sm:$0xff]
    %v302 = vld [vmem:[#allocation2 + $0x4d8] sm:$0xff]
    %v303 = vld [vmem:[#allocation2 + $0x4e0] sm:$0xff]
    %v304 = vld [vmem:[#allocation2 + $0x4e8] sm:$0xff]
    %v305 = vld [vmem:[#allocation2 + $0x4f0] sm:$0xff]
    %v306 = vld [vmem:[#allocation2 + $0x4f8] sm:$0xff]
    %v307 = vld [vmem:[#allocation2 + $0x500] sm:$0xff]
    %v308 = vld [vmem:[#allocation2 + $0x508] sm:$0xff]
    %v309 = vld [vmem:[#allocation2 + $0x510] sm:$0xff]
    %v310 = vld [vmem:[#allocation2 + $0x518] sm:$0xff]
    %v311 = vld [vmem:[#allocation2 + $0x520] sm:$0xff]
    %v312 = vld [vmem:[#allocation2 + $0x528] sm:$0xff]
    %v313 = vld [vmem:[#allocation2 + $0x530] sm:$0xff]
    %v314 = vld [vmem:[#allocation2 + $0x538] sm:$0xff]
    %v315 = vld [vmem:[#allocation2 + $0x540] sm:$0xff]
    %v316 = vld [vmem:[#allocation2 + $0x548] sm:$0xff]
    %v317 = vld [vmem:[#allocation2 + $0x550] sm:$0xff]
    %v318 = vld [vmem:[#allocation2 + $0x558] sm:$0xff]
    %v319 = vld [vmem:[#allocation2 + $0x560] sm:$0xff]
    %v320 = vld [vmem:[#allocation2 + $0x568] sm:$0xff]
    %v321 = vld [vmem:[#allocation2 + $0x570] sm:$0xff]
    %v322 = vld [vmem:[#allocation2 + $0x578] sm:$0xff]
    %v323 = vld [vmem:[#allocation2 + $0x580] sm:$0xff]
    %v324 = vld [vmem:[#allocation2 + $0x588] sm:$0xff]
    %v325 = vld [vmem:[#allocation2 + $0x590] sm:$0xff]
    %v326 = vld [vmem:[#allocation2 + $0x598] sm:$0xff]
    %v327 = vld [vmem:[#allocation2 + $0x5a0] sm:$0xff]
    %v328 = vld [vmem:[#allocation2 + $0x5a8] sm:$0xff]
    %v329 = vld [vmem:[#allocation2 + $0x5b0] sm:$0xff]
    %v330 = vld [vmem:[#allocation2 + $0x5b8] sm:$0xff]
    %v331 = vld [vmem:[#allocation2 + $0x5c0] sm:$0xff]
    %v332 = vld [vmem:[#allocation2 + $0x5c8] sm:$0xff]
    %v333 = vld [vmem:[#allocation2 + $0x5d0] sm:$0xff]
    %v334 = vld [vmem:[#allocation2 + $0x5d8] sm:$0xff]
    %v335 = vld [vmem:[#allocation2 + $0x5e0] sm:$0xff]
    %v336 = vld [vmem:[#allocation2 + $0x5e8] sm:$0xff]
    %v337 = vld [vmem:[#allocation2 + $0x5f0] sm:$0xff]
    %v338 = vld [vmem:[#allocation2 + $0x5f8] sm:$0xff]
    %v339 = vld [vmem:[#allocation2 + $0x600] sm:$0xff]
    %v340 = vld [vmem:[#allocation2 + $0x608] sm:$0xff]
    %v341 = vld [vmem:[#allocation2 + $0x610] sm:$0xff]
    %v342 = vld [vmem:[#allocation2 + $0x618] sm:$0xff]
    %v343 = vld [vmem:[#allocation2 + $0x620] sm:$0xff]
    %v344 = vld [vmem:[#allocation2 + $0x628] sm:$0xff]
    %v345 = vld [vmem:[#allocation2 + $0x630] sm:$0xff]
    %v346 = vld [vmem:[#allocation2 + $0x638] sm:$0xff]
    %v347 = vld [vmem:[#allocation2 + $0x640] sm:$0xff]
    %v348 = vld [vmem:[#allocation2 + $0x648] sm:$0xff]
    %v349 = vld [vmem:[#allocation2 + $0x650] sm:$0xff]
    %v350 = vld [vmem:[#allocation2 + $0x658] sm:$0xff]
    %v351 = vld [vmem:[#allocation2 + $0x660] sm:$0xff]
    %v352 = vld [vmem:[#allocation2 + $0x668] sm:$0xff]
    %v353 = vld [vmem:[#allocation2 + $0x670] sm:$0xff]
    %v354 = vld [vmem:[#allocation2 + $0x678] sm:$0xff]
    %v355 = vld [vmem:[#allocation2 + $0x680] sm:$0xff]
    %v356 = vld [vmem:[#allocation2 + $0x688] sm:$0xff]
    %v357 = vld [vmem:[#allocation2 + $0x690] sm:$0xff]
    %v358 = vld [vmem:[#allocation2 + $0x698] sm:$0xff]
    %v359 = vld [vmem:[#allocation2 + $0x6a0] sm:$0xff]
    %v360 = vld [vmem:[#allocation2 + $0x6a8] sm:$0xff]
    %v361 = vld [vmem:[#allocation2 + $0x6b0] sm:$0xff]
    %v362 = vld [vmem:[#allocation2 + $0x6b8] sm:$0xff]
    %v363 = vld [vmem:[#allocation2 + $0x6c0] sm:$0xff]
    %v364 = vld [vmem:[#allocation2 + $0x6c8] sm:$0xff]
    %v365 = vld [vmem:[#allocation2 + $0x6d0] sm:$0xff]
    %v366 = vld [vmem:[#allocation2 + $0x6d8] sm:$0xff]
    %v367 = vld [vmem:[#allocation2 + $0x6e0] sm:$0xff]
    %v368 = vld [vmem:[#allocation2 + $0x6e8] sm:$0xff]
    %v369 = vld [vmem:[#allocation2 + $0x6f0] sm:$0xff]
    %v370 = vld [vmem:[#allocation2 + $0x6f8] sm:$0xff]
    %v371 = vld [vmem:[#allocation2 + $0x700] sm:$0xff]
    %v372 = vld [vmem:[#allocation2 + $0x708] sm:$0xff]
    %v373 = vld [vmem:[#allocation2 + $0x710] sm:$0xff]
    %v374 = vld [vmem:[#allocation2 + $0x718] sm:$0xff]
    %v375 = vld [vmem:[#allocation2 + $0x720] sm:$0xff]
    %v376 = vld [vmem:[#allocation2 + $0x728] sm:$0xff]
    %v377 = vld [vmem:[#allocation2 + $0x730] sm:$0xff]
    %v378 = vld [vmem:[#allocation2 + $0x738] sm:$0xff]
    %v379 = vld [vmem:[#allocation2 + $0x740] sm:$0xff]
    %v380 = vld [vmem:[#allocation2 + $0x748] sm:$0xff]
    %v381 = vld [vmem:[#allocation2 + $0x750] sm:$0xff]
    %v382 = vld [vmem:[#allocation2 + $0x758] sm:$0xff]
    %v383 = vld [vmem:[#allocation2 + $0x760] sm:$0xff]
    %v384 = vld [vmem:[#allocation2 + $0x768] sm:$0xff]
    %v385 = vld [vmem:[#allocation2 + $0x770] sm:$0xff]
    %v386 = vld [vmem:[#allocation2 + $0x778] sm:$0xff]
    %v387 = vld [vmem:[#allocation2 + $0x780] sm:$0xff]
    %v388 = vld [vmem:[#allocation2 + $0x788] sm:$0xff]
    %v389 = vld [vmem:[#allocation2 + $0x790] sm:$0xff]
    %v390 = vld [vmem:[#allocation2 + $0x798] sm:$0xff]
    %v391 = vld [vmem:[#allocation2 + $0x7a0] sm:$0xff]
    %v392 = vld [vmem:[#allocation2 + $0x7a8] sm:$0xff]
    %v393 = vld [vmem:[#allocation2 + $0x7b0] sm:$0xff]
    %v394 = vld [vmem:[#allocation2 + $0x7b8] sm:$0xff]
    %v395 = vld [vmem:[#allocation2 + $0x7c0] sm:$0xff]
    %v396 = vld [vmem:[#allocation2 + $0x7c8] sm:$0xff]
    %v397 = vld [vmem:[#allocation2 + $0x7d0] sm:$0xff]
    %v398 = vld [vmem:[#allocation2 + $0x7d8] sm:$0xff]
    %v399 = vld [vmem:[#allocation2 + $0x7e0] sm:$0xff]
    %v400 = vld [vmem:[#allocation2 + $0x7e8] sm:$0xff]
    %v401 = vld [vmem:[#allocation2 + $0x7f0] sm:$0xff]
    %v402 = vld [vmem:[#allocation2 + $0x7f8] sm:$0xff]
    %v403 = vld [vmem:[#allocation2 + $0x800] sm:$0xff]
    %v404 = vld [vmem:[#allocation2 + $0x808] sm:$0xff]
    %v405 = vld [vmem:[#allocation2 + $0x810] sm:$0xff]
    %v406 = vld [vmem:[#allocation2 + $0x818] sm:$0xff]
    %v407 = vld [vmem:[#allocation2 + $0x820] sm:$0xff]
    %v408 = vld [vmem:[#allocation2 + $0x828] sm:$0xff]
    %v409 = vld [vmem:[#allocation2 + $0x830] sm:$0xff]
    %v410 = vld [vmem:[#allocation2 + $0x838] sm:$0xff]
    %v411 = vld [vmem:[#allocation2 + $0x840] sm:$0xff]
    %v412 = vld [vmem:[#allocation2 + $0x848] sm:$0xff]
    %v413 = vld [vmem:[#allocation2 + $0x850] sm:$0xff]
    %v414 = vld [vmem:[#allocation2 + $0x858] sm:$0xff]
    %v415 = vld [vmem:[#allocation2 + $0x860] sm:$0xff]
    %v416 = vld [vmem:[#allocation2 + $0x868] sm:$0xff]
    %v417 = vld [vmem:[#allocation2 + $0x870] sm:$0xff]
    %v418 = vld [vmem:[#allocation2 + $0x878] sm:$0xff]
    %v419 = vld [vmem:[#allocation2 + $0x880] sm:$0xff]
    %v420 = vld [vmem:[#allocation2 + $0x888] sm:$0xff]
    %v421 = vld [vmem:[#allocation2 + $0x890] sm:$0xff]
    %v422 = vld [vmem:[#allocation2 + $0x898] sm:$0xff]
    %v423 = vld [vmem:[#allocation2 + $0x8a0] sm:$0xff]
    %v424 = vld [vmem:[#allocation2 + $0x8a8] sm:$0xff]
    %v425 = vld [vmem:[#allocation2 + $0x8b0] sm:$0xff]
    %v426 = vld [vmem:[#allocation2 + $0x8b8] sm:$0xff]
    %v427 = vld [vmem:[#allocation2 + $0x8c0] sm:$0xff]
    %v428 = vld [vmem:[#allocation2 + $0x8c8] sm:$0xff]
    %v429 = vld [vmem:[#allocation2 + $0x8d0] sm:$0xff]
    %v430 = vld [vmem:[#allocation2 + $0x8d8] sm:$0xff]
    %v431 = vld [vmem:[#allocation2 + $0x8e0] sm:$0xff]
    %v432 = vld [vmem:[#allocation2 + $0x8e8] sm:$0xff]
    %v433 = vld [vmem:[#allocation2 + $0x8f0] sm:$0xff]
    %v434 = vld [vmem:[#allocation2 + $0x8f8] sm:$0xff]
    %v435 = vld [vmem:[#allocation2 + $0x900] sm:$0xff]
    %v436 = vld [vmem:[#allocation2 + $0x908] sm:$0xff]
    %v437 = vld [vmem:[#allocation2 + $0x910] sm:$0xff]
    %v438 = vld [vmem:[#allocation2 + $0x918] sm:$0xff]
    %v439 = vld [vmem:[#allocation2 + $0x920] sm:$0xff]
    %v440 = vld [vmem:[#allocation2 + $0x928] sm:$0xff]
    %v441 = vld [vmem:[#allocation2 + $0x930] sm:$0xff]
    %v442 = vld [vmem:[#allocation2 + $0x938] sm:$0xff]
    %v443 = vld [vmem:[#allocation2 + $0x940] sm:$0xff]
    %v444 = vld [vmem:[#allocation2 + $0x948] sm:$0xff]
    %v445 = vld [vmem:[#allocation2 + $0x950] sm:$0xff]
    %v446 = vld [vmem:[#allocation2 + $0x958] sm:$0xff]
    %v447 = vld [vmem:[#allocation2 + $0x960] sm:$0xff]
    %v448 = vld [vmem:[#allocation2 + $0x968] sm:$0xff]
    %v449 = vld [vmem:[#allocation2 + $0x970] sm:$0xff]
    %v450 = vld [vmem:[#allocation2 + $0x978] sm:$0xff]
    %v451 = vld [vmem:[#allocation2 + $0x980] sm:$0xff]
    %v452 = vld [vmem:[#allocation2 + $0x988] sm:$0xff]
    %v453 = vld [vmem:[#allocation2 + $0x990] sm:$0xff]
    %v454 = vld [vmem:[#allocation2 + $0x998] sm:$0xff]
    %v455 = vld [vmem:[#allocation2 + $0x9a0] sm:$0xff]
    %v456 = vld [vmem:[#allocation2 + $0x9a8] sm:$0xff]
    %v457 = vld [vmem:[#allocation2 + $0x9b0] sm:$0xff]
    %v458 = vld [vmem:[#allocation2 + $0x9b8] sm:$0xff]
    %v459 = vld [vmem:[#allocation2 + $0x9c0] sm:$0xff]
    %v460 = vld [vmem:[#allocation2 + $0x9c8] sm:$0xff]
    %v461 = vld [vmem:[#allocation2 + $0x9d0] sm:$0xff]
    %v462 = vld [vmem:[#allocation2 + $0x9d8] sm:$0xff]
    %v463 = vld [vmem:[#allocation2 + $0x9e0] sm:$0xff]
    %v464 = vld [vmem:[#allocation2 + $0x9e8] sm:$0xff]
    %v465 = vld [vmem:[#allocation2 + $0x9f0] sm:$0xff]
    %v466 = vld [vmem:[#allocation2 + $0x9f8] sm:$0xff]
    %v467 = vld [vmem:[#allocation2 + $0xa00] sm:$0xff]
    %v468 = vld [vmem:[#allocation2 + $0xa08] sm:$0xff]
    %v469 = vld [vmem:[#allocation2 + $0xa10] sm:$0xff]
    %v470 = vld [vmem:[#allocation2 + $0xa18] sm:$0xff]
    %v471 = vld [vmem:[#allocation2 + $0xa20] sm:$0xff]
    %v472 = vld [vmem:[#allocation2 + $0xa28] sm:$0xff]
    %v473 = vld [vmem:[#allocation2 + $0xa30] sm:$0xff]
    %v474 = vld [vmem:[#allocation2 + $0xa38] sm:$0xff]
    %v475 = vld [vmem:[#allocation2 + $0xa40] sm:$0xff]
    %v476 = vld [vmem:[#allocation2 + $0xa48] sm:$0xff]
    %v477 = vld [vmem:[#allocation2 + $0xa50] sm:$0xff]
    %v478 = vld [vmem:[#allocation2 + $0xa58] sm:$0xff]
    %v479 = vld [vmem:[#allocation2 + $0xa60] sm:$0xff]
    %v480 = vld [vmem:[#allocation2 + $0xa68] sm:$0xff]
    %v481 = vld [vmem:[#allocation2 + $0xa70] sm:$0xff]
    %v482 = vld [vmem:[#allocation2 + $0xa78] sm:$0xff]
    %v483 = vld [vmem:[#allocation2 + $0xa80] sm:$0xff]
    %v484 = vld [vmem:[#allocation2 + $0xa88] sm:$0xff]
    %v485 = vld [vmem:[#allocation2 + $0xa90] sm:$0xff]
    %v486 = vld [vmem:[#allocation2 + $0xa98] sm:$0xff]
    %v487 = vld [vmem:[#allocation2 + $0xaa0] sm:$0xff]
    %v488 = vld [vmem:[#allocation2 + $0xaa8] sm:$0xff]
    %v489 = vld [vmem:[#allocation2 + $0xab0] sm:$0xff]
    %v490 = vld [vmem:[#allocation2 + $0xab8] sm:$0xff]
    %v491 = vld [vmem:[#allocation2 + $0xac0] sm:$0xff]
    %v492 = vld [vmem:[#allocation2 + $0xac8] sm:$0xff]
    %v493 = vld [vmem:[#allocation2 + $0xad0] sm:$0xff]
    %v494 = vld [vmem:[#allocation2 + $0xad8] sm:$0xff]
    %v495 = vld [vmem:[#allocation2 + $0xae0] sm:$0xff]
    %v496 = vld [vmem:[#allocation2 + $0xae8] sm:$0xff]
    %v497 = vld [vmem:[#allocation2 + $0xaf0] sm:$0xff]
    %v498 = vld [vmem:[#allocation2 + $0xaf8] sm:$0xff]
    %v499 = vld [vmem:[#allocation2 + $0xb00] sm:$0xff]
    %v500 = vld [vmem:[#allocation2 + $0xb08] sm:$0xff]
    %v501 = vld [vmem:[#allocation2 + $0xb10] sm:$0xff]
    %v502 = vld [vmem:[#allocation2 + $0xb18] sm:$0xff]
    %v503 = vld [vmem:[#allocation2 + $0xb20] sm:$0xff]
    %v504 = vld [vmem:[#allocation2 + $0xb28] sm:$0xff]
    %v505 = vld [vmem:[#allocation2 + $0xb30] sm:$0xff]
    %v506 = vld [vmem:[#allocation2 + $0xb38] sm:$0xff]
    %v507 = vld [vmem:[#allocation2 + $0xb40] sm:$0xff]
    %v508 = vld [vmem:[#allocation2 + $0xb48] sm:$0xff]
    %v509 = vld [vmem:[#allocation2 + $0xb50] sm:$0xff]
    %v510 = vld [vmem:[#allocation2 + $0xb58] sm:$0xff]
    %v511 = vld [vmem:[#allocation2 + $0xb60] sm:$0xff]
    %v512 = vld [vmem:[#allocation2 + $0xb68] sm:$0xff]
    %v513 = vld [vmem:[#allocation2 + $0xb70] sm:$0xff]
    %v514 = vld [vmem:[#allocation2 + $0xb78] sm:$0xff]
    %v515 = vld [vmem:[#allocation2 + $0xb80] sm:$0xff]
    %v516 = vld [vmem:[#allocation2 + $0xb88] sm:$0xff]
    %v517 = vld [vmem:[#allocation2 + $0xb90] sm:$0xff]
    %v518 = vld [vmem:[#allocation2 + $0xb98] sm:$0xff]
    %v519 = vld [vmem:[#allocation2 + $0xba0] sm:$0xff]
    %v520 = vld [vmem:[#allocation2 + $0xba8] sm:$0xff]
    %v521 = vld [vmem:[#allocation2 + $0xbb0] sm:$0xff]
    %v522 = vld [vmem:[#allocation2 + $0xbb8] sm:$0xff]
    %v523 = vld [vmem:[#allocation2 + $0xbc0] sm:$0xff]
    %v524 = vld [vmem:[#allocation2 + $0xbc8] sm:$0xff]
    %v525 = vld [vmem:[#allocation2 + $0xbd0] sm:$0xff]
    %v526 = vld [vmem:[#allocation2 + $0xbd8] sm:$0xff]
    %v527 = vld [vmem:[#allocation2 + $0xbe0] sm:$0xff]
    %v528 = vld [vmem:[#allocation2 + $0xbe8] sm:$0xff]
    %v529 = vld [vmem:[#allocation2 + $0xbf0] sm:$0xff]
    %v530 = vld [vmem:[#allocation2 + $0xbf8] sm:$0xff]
    %v531 = vld [vmem:[#allocation2 + $0xc00] sm:$0xff]
    %v532 = vld [vmem:[#allocation2 + $0xc08] sm:$0xff]
    %v533 = vld [vmem:[#allocation2 + $0xc10] sm:$0xff]
    %v534 = vld [vmem:[#allocation2 + $0xc18] sm:$0xff]
    %v535 = vld [vmem:[#allocation2 + $0xc20] sm:$0xff]
    %v536 = vld [vmem:[#allocation2 + $0xc28] sm:$0xff]
    %v537 = vld [vmem:[#allocation2 + $0xc30] sm:$0xff]
    %v538 = vld [vmem:[#allocation2 + $0xc38] sm:$0xff]
    %v539 = vld [vmem:[#allocation2 + $0xc40] sm:$0xff]
    %v540 = vld [vmem:[#allocation2 + $0xc48] sm:$0xff]
    %v541 = vld [vmem:[#allocation2 + $0xc50] sm:$0xff]
    %v542 = vld [vmem:[#allocation2 + $0xc58] sm:$0xff]
    %v543 = vld [vmem:[#allocation2 + $0xc60] sm:$0xff]
    %v544 = vld [vmem:[#allocation2 + $0xc68] sm:$0xff]
    %v545 = vld [vmem:[#allocation2 + $0xc70] sm:$0xff]
    %v546 = vld [vmem:[#allocation2 + $0xc78] sm:$0xff]
    %v547 = vld [vmem:[#allocation2 + $0xc80] sm:$0xff]
    %v548 = vld [vmem:[#allocation2 + $0xc88] sm:$0xff]
    %v549 = vld [vmem:[#allocation2 + $0xc90] sm:$0xff]
    %v550 = vld [vmem:[#allocation2 + $0xc98] sm:$0xff]
    %v551 = vld [vmem:[#allocation2 + $0xca0] sm:$0xff]
    %v552 = vld [vmem:[#allocation2 + $0xca8] sm:$0xff]
    %v553 = vld [vmem:[#allocation2 + $0xcb0] sm:$0xff]
    %v554 = vld [vmem:[#allocation2 + $0xcb8] sm:$0xff]
    %v555 = vld [vmem:[#allocation2 + $0xcc0] sm:$0xff]
    %v556 = vld [vmem:[#allocation2 + $0xcc8] sm:$0xff]
    %v557 = vld [vmem:[#allocation2 + $0xcd0] sm:$0xff]
    %v558 = vld [vmem:[#allocation2 + $0xcd8] sm:$0xff]
    %v559 = vld [vmem:[#allocation2 + $0xce0] sm:$0xff]
    %v560 = vld [vmem:[#allocation2 + $0xce8] sm:$0xff]
    %v561 = vld [vmem:[#allocation2 + $0xcf0] sm:$0xff]
    %v562 = vld [vmem:[#allocation2 + $0xcf8] sm:$0xff]
    %v563 = vld [vmem:[#allocation2 + $0xd00] sm:$0xff]
    %v564 = vld [vmem:[#allocation2 + $0xd08] sm:$0xff]
    %v565 = vld [vmem:[#allocation2 + $0xd10] sm:$0xff]
    %v566 = vld [vmem:[#allocation2 + $0xd18] sm:$0xff]
    %v567 = vld [vmem:[#allocation2 + $0xd20] sm:$0xff]
    %v568 = vld [vmem:[#allocation2 + $0xd28] sm:$0xff]
    %v569 = vld [vmem:[#allocation2 + $0xd30] sm:$0xff]
    %v570 = vld [vmem:[#allocation2 + $0xd38] sm:$0xff]
    %v571 = vld [vmem:[#allocation2 + $0xd40] sm:$0xff]
    %v572 = vld [vmem:[#allocation2 + $0xd48] sm:$0xff]
    %v573 = vld [vmem:[#allocation2 + $0xd50] sm:$0xff]
    %v574 = vld [vmem:[#allocation2 + $0xd58] sm:$0xff]
    %v575 = vld [vmem:[#allocation2 + $0xd60] sm:$0xff]
    %v576 = vld [vmem:[#allocation2 + $0xd68] sm:$0xff]
    %v577 = vld [vmem:[#allocation2 + $0xd70] sm:$0xff]
    %v578 = vld [vmem:[#allocation2 + $0xd78] sm:$0xff]
    %v579 = vld [vmem:[#allocation2 + $0xd80] sm:$0xff]
    %v580 = vld [vmem:[#allocation2 + $0xd88] sm:$0xff]
    %v581 = vld [vmem:[#allocation2 + $0xd90] sm:$0xff]
    %v582 = vld [vmem:[#allocation2 + $0xd98] sm:$0xff]
    %v583 = vld [vmem:[#allocation2 + $0xda0] sm:$0xff]
    %v584 = vld [vmem:[#allocation2 + $0xda8] sm:$0xff]
    %v585 = vld [vmem:[#allocation2 + $0xdb0] sm:$0xff]
    %v586 = vld [vmem:[#allocation2 + $0xdb8] sm:$0xff]
    %v587 = vld [vmem:[#allocation2 + $0xdc0] sm:$0xff]
    %v588 = vld [vmem:[#allocation2 + $0xdc8] sm:$0xff]
    %v589 = vld [vmem:[#allocation2 + $0xdd0] sm:$0xff]
    %v590 = vld [vmem:[#allocation2 + $0xdd8] sm:$0xff]
    %v591 = vld [vmem:[#allocation2 + $0xde0] sm:$0xff]
    %v592 = vld [vmem:[#allocation2 + $0xde8] sm:$0xff]
    %v593 = vld [vmem:[#allocation2 + $0xdf0] sm:$0xff]
    %v594 = vld [vmem:[#allocation2 + $0xdf8] sm:$0xff]
    %v595 = vld [vmem:[#allocation2 + $0xe00] sm:$0xff]
    %v596 = vld [vmem:[#allocation2 + $0xe08] sm:$0xff]
    %v597 = vld [vmem:[#allocation2 + $0xe10] sm:$0xff]
    %v598 = vld [vmem:[#allocation2 + $0xe18] sm:$0xff]
    %v599 = vld [vmem:[#allocation2 + $0xe20] sm:$0xff]
    %v600 = vld [vmem:[#allocation2 + $0xe28] sm:$0xff]
    %v601 = vld [vmem:[#allocation2 + $0xe30] sm:$0xff]
    %v602 = vld [vmem:[#allocation2 + $0xe38] sm:$0xff]
    %v603 = vld [vmem:[#allocation2 + $0xe40] sm:$0xff]
    %v604 = vld [vmem:[#allocation2 + $0xe48] sm:$0xff]
    %v605 = vld [vmem:[#allocation2 + $0xe50] sm:$0xff]
    %v606 = vld [vmem:[#allocation2 + $0xe58] sm:$0xff]
    %v607 = vld [vmem:[#allocation2 + $0xe60] sm:$0xff]
    %v608 = vld [vmem:[#allocation2 + $0xe68] sm:$0xff]
    %v609 = vld [vmem:[#allocation2 + $0xe70] sm:$0xff]
    %v610 = vld [vmem:[#allocation2 + $0xe78] sm:$0xff]
    %v611 = vld [vmem:[#allocation2 + $0xe80] sm:$0xff]
    %v612 = vld [vmem:[#allocation2 + $0xe88] sm:$0xff]
    %v613 = vld [vmem:[#allocation2 + $0xe90] sm:$0xff]
    %v614 = vld [vmem:[#allocation2 + $0xe98] sm:$0xff]
    %v615 = vld [vmem:[#allocation2 + $0xea0] sm:$0xff]
    %v616 = vld [vmem:[#allocation2 + $0xea8] sm:$0xff]
    %v617 = vld [vmem:[#allocation2 + $0xeb0] sm:$0xff]
    %v618 = vld [vmem:[#allocation2 + $0xeb8] sm:$0xff]
    %v619 = vld [vmem:[#allocation2 + $0xec0] sm:$0xff]
    %v620 = vld [vmem:[#allocation2 + $0xec8] sm:$0xff]
    %v621 = vld [vmem:[#allocation2 + $0xed0] sm:$0xff]
    %v622 = vld [vmem:[#allocation2 + $0xed8] sm:$0xff]
    %v623 = vld [vmem:[#allocation2 + $0xee0] sm:$0xff]
    %v624 = vld [vmem:[#allocation2 + $0xee8] sm:$0xff]
    %v625 = vld [vmem:[#allocation2 + $0xef0] sm:$0xff]
    %v626 = vld [vmem:[#allocation2 + $0xef8] sm:$0xff]
    %v627 = vld [vmem:[#allocation2 + $0xf00] sm:$0xff]
    %v628 = vld [vmem:[#allocation2 + $0xf08] sm:$0xff]
    %v629 = vld [vmem:[#allocation2 + $0xf10] sm:$0xff]
    %v630 = vld [vmem:[#allocation2 + $0xf18] sm:$0xff]
    %v631 = vld [vmem:[#allocation2 + $0xf20] sm:$0xff]
    %v632 = vld [vmem:[#allocation2 + $0xf28] sm:$0xff]
    %v633 = vld [vmem:[#allocation2 + $0xf30] sm:$0xff]
    %v634 = vld [vmem:[#allocation2 + $0xf38] sm:$0xff]
    %v635 = vld [vmem:[#allocation2 + $0xf40] sm:$0xff]
    %v636 = vld [vmem:[#allocation2 + $0xf48] sm:$0xff]
    %v637 = vld [vmem:[#allocation2 + $0xf50] sm:$0xff]
    %v638 = vld [vmem:[#allocation2 + $0xf58] sm:$0xff]
    %v639 = vld [vmem:[#allocation2 + $0xf60] sm:$0xff]
    %v640 = vld [vmem:[#allocation2 + $0xf68] sm:$0xff]
    %v641 = vld [vmem:[#allocation2 + $0xf70] sm:$0xff]
    %v642 = vld [vmem:[#allocation2 + $0xf78] sm:$0xff]
    %v643 = vld [vmem:[#allocation2 + $0xf80] sm:$0xff]
    %v644 = vld [vmem:[#allocation2 + $0xf88] sm:$0xff]
    %v645 = vld [vmem:[#allocation2 + $0xf90] sm:$0xff]
    %v646 = vld [vmem:[#allocation2 + $0xf98] sm:$0xff]
    %v647 = vld [vmem:[#allocation2 + $0xfa0] sm:$0xff]
    %v648 = vld [vmem:[#allocation2 + $0xfa8] sm:$0xff]
    %v649 = vld [vmem:[#allocation2 + $0xfb0] sm:$0xff]
    %v650 = vld [vmem:[#allocation2 + $0xfb8] sm:$0xff]
    %v651 = vld [vmem:[#allocation2 + $0xfc0] sm:$0xff]
    %v652 = vld [vmem:[#allocation2 + $0xfc8] sm:$0xff]
    %v653 = vld [vmem:[#allocation2 + $0xfd0] sm:$0xff]
    %v654 = vld [vmem:[#allocation2 + $0xfd8] sm:$0xff]
    %v655 = vld [vmem:[#allocation2 + $0xfe0] sm:$0xff]
    %v656 = vld [vmem:[#allocation2 + $0xfe8] sm:$0xff]
    %v657 = vld [vmem:[#allocation2 + $0xff0] sm:$0xff]
    %v658 = vld [vmem:[#allocation2 + $0xff8] sm:$0xff]
    %v659 = vld [vmem:[#allocation4] sm:$0xff]
    %v661 = vlaneseq
    %v662 = vshrl.u32 %v661, 7
    %v663 = vsub.s32 0, %v662
    %v664 = vrot.slane %v659, %v663
    %v665 = vlaneseq
    %v666 = vshrl.u32 %v665, 7
    %v667 = vsub.s32 1, %v666
    %v668 = vrot.slane %v659, %v667
    %v669 = vlaneseq
    %v670 = vshrl.u32 %v669, 7
    %v671 = vsub.s32 2, %v670
    %v672 = vrot.slane %v659, %v671
    %v673 = vlaneseq
    %v674 = vshrl.u32 %v673, 7
    %v675 = vsub.s32 3, %v674
    %v676 = vrot.slane %v659, %v675
    %v677 = vlaneseq
    %v678 = vshrl.u32 %v677, 7
    %v679 = vsub.s32 4, %v678
    %v680 = vrot.slane %v659, %v679
    %v681 = vlaneseq
    %v682 = vshrl.u32 %v681, 7
    %v683 = vsub.s32 5, %v682
    %v684 = vrot.slane %v659, %v683
    %v685 = vlaneseq
    %v686 = vshrl.u32 %v685, 7
    %v687 = vsub.s32 6, %v686
    %v688 = vrot.slane %v659, %v687
    %v689 = vlaneseq
    %v690 = vshrl.u32 %v689, 7
    %v691 = vsub.s32 7, %v690
    %v692 = vrot.slane %v659, %v691
    %v1213 = vunpack.c.l.b16 %v147
    %v1214 = vunpack.c.h.b16 %v147
    %v1215 = vunpack.c.l.b16 %v148
    %v1216 = vunpack.c.h.b16 %v148
    %v1217 = vunpack.c.l.b16 %v149
    %v1218 = vunpack.c.h.b16 %v149
    %v1219 = vunpack.c.l.b16 %v150
    %v1220 = vunpack.c.h.b16 %v150
    %v1221 = vunpack.c.l.b16 %v151
    %v1222 = vunpack.c.h.b16 %v151
    %v1223 = vunpack.c.l.b16 %v152
    %v1224 = vunpack.c.h.b16 %v152
    %v1225 = vunpack.c.l.b16 %v153
    %v1226 = vunpack.c.h.b16 %v153
    %v1227 = vunpack.c.l.b16 %v154
    %v1228 = vunpack.c.h.b16 %v154
    %v1229 = vunpack.c.l.b16 %v155
    %v1230 = vunpack.c.h.b16 %v155
    %v1231 = vunpack.c.l.b16 %v156
    %v1232 = vunpack.c.h.b16 %v156
    %v1233 = vunpack.c.l.b16 %v157
    %v1234 = vunpack.c.h.b16 %v157
    %v1235 = vunpack.c.l.b16 %v158
    %v1236 = vunpack.c.h.b16 %v158
    %v1237 = vunpack.c.l.b16 %v159
    %v1238 = vunpack.c.h.b16 %v159
    %v1239 = vunpack.c.l.b16 %v160
    %v1240 = vunpack.c.h.b16 %v160
    %v1241 = vunpack.c.l.b16 %v161
    %v1242 = vunpack.c.h.b16 %v161
    %v1243 = vunpack.c.l.b16 %v162
    %v1244 = vunpack.c.h.b16 %v162
    %v1245 = vunpack.c.l.b16 %v163
    %v1246 = vunpack.c.h.b16 %v163
    %v1247 = vunpack.c.l.b16 %v164
    %v1248 = vunpack.c.h.b16 %v164
    %v1249 = vunpack.c.l.b16 %v165
    %v1250 = vunpack.c.h.b16 %v165
    %v1251 = vunpack.c.l.b16 %v166
    %v1252 = vunpack.c.h.b16 %v166
    %v1253 = vunpack.c.l.b16 %v167
    %v1254 = vunpack.c.h.b16 %v167
    %v1255 = vunpack.c.l.b16 %v168
    %v1256 = vunpack.c.h.b16 %v168
    %v1257 = vunpack.c.l.b16 %v169
    %v1258 = vunpack.c.h.b16 %v169
    %v1259 = vunpack.c.l.b16 %v170
    %v1260 = vunpack.c.h.b16 %v170
    %v1261 = vunpack.c.l.b16 %v171
    %v1262 = vunpack.c.h.b16 %v171
    %v1263 = vunpack.c.l.b16 %v172
    %v1264 = vunpack.c.h.b16 %v172
    %v1265 = vunpack.c.l.b16 %v173
    %v1266 = vunpack.c.h.b16 %v173
    %v1267 = vunpack.c.l.b16 %v174
    %v1268 = vunpack.c.h.b16 %v174
    %v1269 = vunpack.c.l.b16 %v175
    %v1270 = vunpack.c.h.b16 %v175
    %v1271 = vunpack.c.l.b16 %v176
    %v1272 = vunpack.c.h.b16 %v176
    %v1273 = vunpack.c.l.b16 %v177
    %v1274 = vunpack.c.h.b16 %v177
    %v1275 = vunpack.c.l.b16 %v178
    %v1276 = vunpack.c.h.b16 %v178
    %v1277 = vunpack.c.l.b16 %v179
    %v1278 = vunpack.c.h.b16 %v179
    %v1279 = vunpack.c.l.b16 %v180
    %v1280 = vunpack.c.h.b16 %v180
    %v1281 = vunpack.c.l.b16 %v181
    %v1282 = vunpack.c.h.b16 %v181
    %v1283 = vunpack.c.l.b16 %v182
    %v1284 = vunpack.c.h.b16 %v182
    %v1285 = vunpack.c.l.b16 %v183
    %v1286 = vunpack.c.h.b16 %v183
    %v1287 = vunpack.c.l.b16 %v184
    %v1288 = vunpack.c.h.b16 %v184
    %v1289 = vunpack.c.l.b16 %v185
    %v1290 = vunpack.c.h.b16 %v185
    %v1291 = vunpack.c.l.b16 %v186
    %v1292 = vunpack.c.h.b16 %v186
    %v1293 = vunpack.c.l.b16 %v187
    %v1294 = vunpack.c.h.b16 %v187
    %v1295 = vunpack.c.l.b16 %v188
    %v1296 = vunpack.c.h.b16 %v188
    %v1297 = vunpack.c.l.b16 %v189
    %v1298 = vunpack.c.h.b16 %v189
    %v1299 = vunpack.c.l.b16 %v190
    %v1300 = vunpack.c.h.b16 %v190
    %v1301 = vunpack.c.l.b16 %v191
    %v1302 = vunpack.c.h.b16 %v191
    %v1303 = vunpack.c.l.b16 %v192
    %v1304 = vunpack.c.h.b16 %v192
    %v1305 = vunpack.c.l.b16 %v193
    %v1306 = vunpack.c.h.b16 %v193
    %v1307 = vunpack.c.l.b16 %v194
    %v1308 = vunpack.c.h.b16 %v194
    %v1309 = vunpack.c.l.b16 %v195
    %v1310 = vunpack.c.h.b16 %v195
    %v1311 = vunpack.c.l.b16 %v196
    %v1312 = vunpack.c.h.b16 %v196
    %v1313 = vunpack.c.l.b16 %v197
    %v1314 = vunpack.c.h.b16 %v197
    %v1315 = vunpack.c.l.b16 %v198
    %v1316 = vunpack.c.h.b16 %v198
    %v1317 = vunpack.c.l.b16 %v199
    %v1318 = vunpack.c.h.b16 %v199
    %v1319 = vunpack.c.l.b16 %v200
    %v1320 = vunpack.c.h.b16 %v200
    %v1321 = vunpack.c.l.b16 %v201
    %v1322 = vunpack.c.h.b16 %v201
    %v1323 = vunpack.c.l.b16 %v202
    %v1324 = vunpack.c.h.b16 %v202
    %v1325 = vunpack.c.l.b16 %v203
    %v1326 = vunpack.c.h.b16 %v203
    %v1327 = vunpack.c.l.b16 %v204
    %v1328 = vunpack.c.h.b16 %v204
    %v1329 = vunpack.c.l.b16 %v205
    %v1330 = vunpack.c.h.b16 %v205
    %v1331 = vunpack.c.l.b16 %v206
    %v1332 = vunpack.c.h.b16 %v206
    %v1333 = vunpack.c.l.b16 %v207
    %v1334 = vunpack.c.h.b16 %v207
    %v1335 = vunpack.c.l.b16 %v208
    %v1336 = vunpack.c.h.b16 %v208
    %v1337 = vunpack.c.l.b16 %v209
    %v1338 = vunpack.c.h.b16 %v209
    %v1339 = vunpack.c.l.b16 %v210
    %v1340 = vunpack.c.h.b16 %v210
    %v1341 = vunpack.c.l.b16 %v211
    %v1342 = vunpack.c.h.b16 %v211
    %v1343 = vunpack.c.l.b16 %v212
    %v1344 = vunpack.c.h.b16 %v212
    %v1345 = vunpack.c.l.b16 %v213
    %v1346 = vunpack.c.h.b16 %v213
    %v1347 = vunpack.c.l.b16 %v214
    %v1348 = vunpack.c.h.b16 %v214
    %v1349 = vunpack.c.l.b16 %v215
    %v1350 = vunpack.c.h.b16 %v215
    %v1351 = vunpack.c.l.b16 %v216
    %v1352 = vunpack.c.h.b16 %v216
    %v1353 = vunpack.c.l.b16 %v217
    %v1354 = vunpack.c.h.b16 %v217
    %v1355 = vunpack.c.l.b16 %v218
    %v1356 = vunpack.c.h.b16 %v218
    %v1357 = vunpack.c.l.b16 %v219
    %v1358 = vunpack.c.h.b16 %v219
    %v1359 = vunpack.c.l.b16 %v220
    %v1360 = vunpack.c.h.b16 %v220
    %v1361 = vunpack.c.l.b16 %v221
    %v1362 = vunpack.c.h.b16 %v221
    %v1363 = vunpack.c.l.b16 %v222
    %v1364 = vunpack.c.h.b16 %v222
    %v1365 = vunpack.c.l.b16 %v223
    %v1366 = vunpack.c.h.b16 %v223
    %v1367 = vunpack.c.l.b16 %v224
    %v1368 = vunpack.c.h.b16 %v224
    %v1369 = vunpack.c.l.b16 %v225
    %v1370 = vunpack.c.h.b16 %v225
    %v1371 = vunpack.c.l.b16 %v226
    %v1372 = vunpack.c.h.b16 %v226
    %v1373 = vunpack.c.l.b16 %v227
    %v1374 = vunpack.c.h.b16 %v227
    %v1375 = vunpack.c.l.b16 %v228
    %v1376 = vunpack.c.h.b16 %v228
    %v1377 = vunpack.c.l.b16 %v229
    %v1378 = vunpack.c.h.b16 %v229
    %v1379 = vunpack.c.l.b16 %v230
    %v1380 = vunpack.c.h.b16 %v230
    %v1381 = vunpack.c.l.b16 %v231
    %v1382 = vunpack.c.h.b16 %v231
    %v1383 = vunpack.c.l.b16 %v232
    %v1384 = vunpack.c.h.b16 %v232
    %v1385 = vunpack.c.l.b16 %v233
    %v1386 = vunpack.c.h.b16 %v233
    %v1387 = vunpack.c.l.b16 %v234
    %v1388 = vunpack.c.h.b16 %v234
    %v1389 = vunpack.c.l.b16 %v235
    %v1390 = vunpack.c.h.b16 %v235
    %v1391 = vunpack.c.l.b16 %v236
    %v1392 = vunpack.c.h.b16 %v236
    %v1393 = vunpack.c.l.b16 %v237
    %v1394 = vunpack.c.h.b16 %v237
    %v1395 = vunpack.c.l.b16 %v238
    %v1396 = vunpack.c.h.b16 %v238
    %v1397 = vunpack.c.l.b16 %v239
    %v1398 = vunpack.c.h.b16 %v239
    %v1399 = vunpack.c.l.b16 %v240
    %v1400 = vunpack.c.h.b16 %v240
    %v1401 = vunpack.c.l.b16 %v241
    %v1402 = vunpack.c.h.b16 %v241
    %v1403 = vunpack.c.l.b16 %v242
    %v1404 = vunpack.c.h.b16 %v242
    %v1405 = vunpack.c.l.b16 %v243
    %v1406 = vunpack.c.h.b16 %v243
    %v1407 = vunpack.c.l.b16 %v244
    %v1408 = vunpack.c.h.b16 %v244
    %v1409 = vunpack.c.l.b16 %v245
    %v1410 = vunpack.c.h.b16 %v245
    %v1411 = vunpack.c.l.b16 %v246
    %v1412 = vunpack.c.h.b16 %v246
    %v1413 = vunpack.c.l.b16 %v247
    %v1414 = vunpack.c.h.b16 %v247
    %v1415 = vunpack.c.l.b16 %v248
    %v1416 = vunpack.c.h.b16 %v248
    %v1417 = vunpack.c.l.b16 %v249
    %v1418 = vunpack.c.h.b16 %v249
    %v1419 = vunpack.c.l.b16 %v250
    %v1420 = vunpack.c.h.b16 %v250
    %v1421 = vunpack.c.l.b16 %v251
    %v1422 = vunpack.c.h.b16 %v251
    %v1423 = vunpack.c.l.b16 %v252
    %v1424 = vunpack.c.h.b16 %v252
    %v1425 = vunpack.c.l.b16 %v253
    %v1426 = vunpack.c.h.b16 %v253
    %v1427 = vunpack.c.l.b16 %v254
    %v1428 = vunpack.c.h.b16 %v254
    %v1429 = vunpack.c.l.b16 %v255
    %v1430 = vunpack.c.h.b16 %v255
    %v1431 = vunpack.c.l.b16 %v256
    %v1432 = vunpack.c.h.b16 %v256
    %v1433 = vunpack.c.l.b16 %v257
    %v1434 = vunpack.c.h.b16 %v257
    %v1435 = vunpack.c.l.b16 %v258
    %v1436 = vunpack.c.h.b16 %v258
    %v1437 = vunpack.c.l.b16 %v259
    %v1438 = vunpack.c.h.b16 %v259
    %v1439 = vunpack.c.l.b16 %v260
    %v1440 = vunpack.c.h.b16 %v260
    %v1441 = vunpack.c.l.b16 %v261
    %v1442 = vunpack.c.h.b16 %v261
    %v1443 = vunpack.c.l.b16 %v262
    %v1444 = vunpack.c.h.b16 %v262
    %v1445 = vunpack.c.l.b16 %v263
    %v1446 = vunpack.c.h.b16 %v263
    %v1447 = vunpack.c.l.b16 %v264
    %v1448 = vunpack.c.h.b16 %v264
    %v1449 = vunpack.c.l.b16 %v265
    %v1450 = vunpack.c.h.b16 %v265
    %v1451 = vunpack.c.l.b16 %v266
    %v1452 = vunpack.c.h.b16 %v266
    %v1453 = vunpack.c.l.b16 %v267
    %v1454 = vunpack.c.h.b16 %v267
    %v1455 = vunpack.c.l.b16 %v268
    %v1456 = vunpack.c.h.b16 %v268
    %v1457 = vunpack.c.l.b16 %v269
    %v1458 = vunpack.c.h.b16 %v269
    %v1459 = vunpack.c.l.b16 %v270
    %v1460 = vunpack.c.h.b16 %v270
    %v1461 = vunpack.c.l.b16 %v271
    %v1462 = vunpack.c.h.b16 %v271
    %v1463 = vunpack.c.l.b16 %v272
    %v1464 = vunpack.c.h.b16 %v272
    %v1465 = vunpack.c.l.b16 %v273
    %v1466 = vunpack.c.h.b16 %v273
    %v1467 = vunpack.c.l.b16 %v274
    %v1468 = vunpack.c.h.b16 %v274
    %v1469 = vunpack.c.l.b16 %v275
    %v1470 = vunpack.c.h.b16 %v275
    %v1471 = vunpack.c.l.b16 %v276
    %v1472 = vunpack.c.h.b16 %v276
    %v1473 = vunpack.c.l.b16 %v277
    %v1474 = vunpack.c.h.b16 %v277
    %v1475 = vunpack.c.l.b16 %v278
    %v1476 = vunpack.c.h.b16 %v278
    %v1477 = vunpack.c.l.b16 %v279
    %v1478 = vunpack.c.h.b16 %v279
    %v1479 = vunpack.c.l.b16 %v280
    %v1480 = vunpack.c.h.b16 %v280
    %v1481 = vunpack.c.l.b16 %v281
    %v1482 = vunpack.c.h.b16 %v281
    %v1483 = vunpack.c.l.b16 %v282
    %v1484 = vunpack.c.h.b16 %v282
    %v1485 = vunpack.c.l.b16 %v283
    %v1486 = vunpack.c.h.b16 %v283
    %v1487 = vunpack.c.l.b16 %v284
    %v1488 = vunpack.c.h.b16 %v284
    %v1489 = vunpack.c.l.b16 %v285
    %v1490 = vunpack.c.h.b16 %v285
    %v1491 = vunpack.c.l.b16 %v286
    %v1492 = vunpack.c.h.b16 %v286
    %v1493 = vunpack.c.l.b16 %v287
    %v1494 = vunpack.c.h.b16 %v287
    %v1495 = vunpack.c.l.b16 %v288
    %v1496 = vunpack.c.h.b16 %v288
    %v1497 = vunpack.c.l.b16 %v289
    %v1498 = vunpack.c.h.b16 %v289
    %v1499 = vunpack.c.l.b16 %v290
    %v1500 = vunpack.c.h.b16 %v290
    %v1501 = vunpack.c.l.b16 %v291
    %v1502 = vunpack.c.h.b16 %v291
    %v1503 = vunpack.c.l.b16 %v292
    %v1504 = vunpack.c.h.b16 %v292
    %v1505 = vunpack.c.l.b16 %v293
    %v1506 = vunpack.c.h.b16 %v293
    %v1507 = vunpack.c.l.b16 %v294
    %v1508 = vunpack.c.h.b16 %v294
    %v1509 = vunpack.c.l.b16 %v295
    %v1510 = vunpack.c.h.b16 %v295
    %v1511 = vunpack.c.l.b16 %v296
    %v1512 = vunpack.c.h.b16 %v296
    %v1513 = vunpack.c.l.b16 %v297
    %v1514 = vunpack.c.h.b16 %v297
    %v1515 = vunpack.c.l.b16 %v298
    %v1516 = vunpack.c.h.b16 %v298
    %v1517 = vunpack.c.l.b16 %v299
    %v1518 = vunpack.c.h.b16 %v299
    %v1519 = vunpack.c.l.b16 %v300
    %v1520 = vunpack.c.h.b16 %v300
    %v1521 = vunpack.c.l.b16 %v301
    %v1522 = vunpack.c.h.b16 %v301
    %v1523 = vunpack.c.l.b16 %v302
    %v1524 = vunpack.c.h.b16 %v302
    %v1525 = vunpack.c.l.b16 %v303
    %v1526 = vunpack.c.h.b16 %v303
    %v1527 = vunpack.c.l.b16 %v304
    %v1528 = vunpack.c.h.b16 %v304
    %v1529 = vunpack.c.l.b16 %v305
    %v1530 = vunpack.c.h.b16 %v305
    %v1531 = vunpack.c.l.b16 %v306
    %v1532 = vunpack.c.h.b16 %v306
    %v1533 = vunpack.c.l.b16 %v307
    %v1534 = vunpack.c.h.b16 %v307
    %v1535 = vunpack.c.l.b16 %v308
    %v1536 = vunpack.c.h.b16 %v308
    %v1537 = vunpack.c.l.b16 %v309
    %v1538 = vunpack.c.h.b16 %v309
    %v1539 = vunpack.c.l.b16 %v310
    %v1540 = vunpack.c.h.b16 %v310
    %v1541 = vunpack.c.l.b16 %v311
    %v1542 = vunpack.c.h.b16 %v311
    %v1543 = vunpack.c.l.b16 %v312
    %v1544 = vunpack.c.h.b16 %v312
    %v1545 = vunpack.c.l.b16 %v313
    %v1546 = vunpack.c.h.b16 %v313
    %v1547 = vunpack.c.l.b16 %v314
    %v1548 = vunpack.c.h.b16 %v314
    %v1549 = vunpack.c.l.b16 %v315
    %v1550 = vunpack.c.h.b16 %v315
    %v1551 = vunpack.c.l.b16 %v316
    %v1552 = vunpack.c.h.b16 %v316
    %v1553 = vunpack.c.l.b16 %v317
    %v1554 = vunpack.c.h.b16 %v317
    %v1555 = vunpack.c.l.b16 %v318
    %v1556 = vunpack.c.h.b16 %v318
    %v1557 = vunpack.c.l.b16 %v319
    %v1558 = vunpack.c.h.b16 %v319
    %v1559 = vunpack.c.l.b16 %v320
    %v1560 = vunpack.c.h.b16 %v320
    %v1561 = vunpack.c.l.b16 %v321
    %v1562 = vunpack.c.h.b16 %v321
    %v1563 = vunpack.c.l.b16 %v322
    %v1564 = vunpack.c.h.b16 %v322
    %v1565 = vunpack.c.l.b16 %v323
    %v1566 = vunpack.c.h.b16 %v323
    %v1567 = vunpack.c.l.b16 %v324
    %v1568 = vunpack.c.h.b16 %v324
    %v1569 = vunpack.c.l.b16 %v325
    %v1570 = vunpack.c.h.b16 %v325
    %v1571 = vunpack.c.l.b16 %v326
    %v1572 = vunpack.c.h.b16 %v326
    %v1573 = vunpack.c.l.b16 %v327
    %v1574 = vunpack.c.h.b16 %v327
    %v1575 = vunpack.c.l.b16 %v328
    %v1576 = vunpack.c.h.b16 %v328
    %v1577 = vunpack.c.l.b16 %v329
    %v1578 = vunpack.c.h.b16 %v329
    %v1579 = vunpack.c.l.b16 %v330
    %v1580 = vunpack.c.h.b16 %v330
    %v1581 = vunpack.c.l.b16 %v331
    %v1582 = vunpack.c.h.b16 %v331
    %v1583 = vunpack.c.l.b16 %v332
    %v1584 = vunpack.c.h.b16 %v332
    %v1585 = vunpack.c.l.b16 %v333
    %v1586 = vunpack.c.h.b16 %v333
    %v1587 = vunpack.c.l.b16 %v334
    %v1588 = vunpack.c.h.b16 %v334
    %v1589 = vunpack.c.l.b16 %v335
    %v1590 = vunpack.c.h.b16 %v335
    %v1591 = vunpack.c.l.b16 %v336
    %v1592 = vunpack.c.h.b16 %v336
    %v1593 = vunpack.c.l.b16 %v337
    %v1594 = vunpack.c.h.b16 %v337
    %v1595 = vunpack.c.l.b16 %v338
    %v1596 = vunpack.c.h.b16 %v338
    %v1597 = vunpack.c.l.b16 %v339
    %v1598 = vunpack.c.h.b16 %v339
    %v1599 = vunpack.c.l.b16 %v340
    %v1600 = vunpack.c.h.b16 %v340
    %v1601 = vunpack.c.l.b16 %v341
    %v1602 = vunpack.c.h.b16 %v341
    %v1603 = vunpack.c.l.b16 %v342
    %v1604 = vunpack.c.h.b16 %v342
    %v1605 = vunpack.c.l.b16 %v343
    %v1606 = vunpack.c.h.b16 %v343
    %v1607 = vunpack.c.l.b16 %v344
    %v1608 = vunpack.c.h.b16 %v344
    %v1609 = vunpack.c.l.b16 %v345
    %v1610 = vunpack.c.h.b16 %v345
    %v1611 = vunpack.c.l.b16 %v346
    %v1612 = vunpack.c.h.b16 %v346
    %v1613 = vunpack.c.l.b16 %v347
    %v1614 = vunpack.c.h.b16 %v347
    %v1615 = vunpack.c.l.b16 %v348
    %v1616 = vunpack.c.h.b16 %v348
    %v1617 = vunpack.c.l.b16 %v349
    %v1618 = vunpack.c.h.b16 %v349
    %v1619 = vunpack.c.l.b16 %v350
    %v1620 = vunpack.c.h.b16 %v350
    %v1621 = vunpack.c.l.b16 %v351
    %v1622 = vunpack.c.h.b16 %v351
    %v1623 = vunpack.c.l.b16 %v352
    %v1624 = vunpack.c.h.b16 %v352
    %v1625 = vunpack.c.l.b16 %v353
    %v1626 = vunpack.c.h.b16 %v353
    %v1627 = vunpack.c.l.b16 %v354
    %v1628 = vunpack.c.h.b16 %v354
    %v1629 = vunpack.c.l.b16 %v355
    %v1630 = vunpack.c.h.b16 %v355
    %v1631 = vunpack.c.l.b16 %v356
    %v1632 = vunpack.c.h.b16 %v356
    %v1633 = vunpack.c.l.b16 %v357
    %v1634 = vunpack.c.h.b16 %v357
    %v1635 = vunpack.c.l.b16 %v358
    %v1636 = vunpack.c.h.b16 %v358
    %v1637 = vunpack.c.l.b16 %v359
    %v1638 = vunpack.c.h.b16 %v359
    %v1639 = vunpack.c.l.b16 %v360
    %v1640 = vunpack.c.h.b16 %v360
    %v1641 = vunpack.c.l.b16 %v361
    %v1642 = vunpack.c.h.b16 %v361
    %v1643 = vunpack.c.l.b16 %v362
    %v1644 = vunpack.c.h.b16 %v362
    %v1645 = vunpack.c.l.b16 %v363
    %v1646 = vunpack.c.h.b16 %v363
    %v1647 = vunpack.c.l.b16 %v364
    %v1648 = vunpack.c.h.b16 %v364
    %v1649 = vunpack.c.l.b16 %v365
    %v1650 = vunpack.c.h.b16 %v365
    %v1651 = vunpack.c.l.b16 %v366
    %v1652 = vunpack.c.h.b16 %v366
    %v1653 = vunpack.c.l.b16 %v367
    %v1654 = vunpack.c.h.b16 %v367
    %v1655 = vunpack.c.l.b16 %v368
    %v1656 = vunpack.c.h.b16 %v368
    %v1657 = vunpack.c.l.b16 %v369
    %v1658 = vunpack.c.h.b16 %v369
    %v1659 = vunpack.c.l.b16 %v370
    %v1660 = vunpack.c.h.b16 %v370
    %v1661 = vunpack.c.l.b16 %v371
    %v1662 = vunpack.c.h.b16 %v371
    %v1663 = vunpack.c.l.b16 %v372
    %v1664 = vunpack.c.h.b16 %v372
    %v1665 = vunpack.c.l.b16 %v373
    %v1666 = vunpack.c.h.b16 %v373
    %v1667 = vunpack.c.l.b16 %v374
    %v1668 = vunpack.c.h.b16 %v374
    %v1669 = vunpack.c.l.b16 %v375
    %v1670 = vunpack.c.h.b16 %v375
    %v1671 = vunpack.c.l.b16 %v376
    %v1672 = vunpack.c.h.b16 %v376
    %v1673 = vunpack.c.l.b16 %v377
    %v1674 = vunpack.c.h.b16 %v377
    %v1675 = vunpack.c.l.b16 %v378
    %v1676 = vunpack.c.h.b16 %v378
    %v1677 = vunpack.c.l.b16 %v379
    %v1678 = vunpack.c.h.b16 %v379
    %v1679 = vunpack.c.l.b16 %v380
    %v1680 = vunpack.c.h.b16 %v380
    %v1681 = vunpack.c.l.b16 %v381
    %v1682 = vunpack.c.h.b16 %v381
    %v1683 = vunpack.c.l.b16 %v382
    %v1684 = vunpack.c.h.b16 %v382
    %v1685 = vunpack.c.l.b16 %v383
    %v1686 = vunpack.c.h.b16 %v383
    %v1687 = vunpack.c.l.b16 %v384
    %v1688 = vunpack.c.h.b16 %v384
    %v1689 = vunpack.c.l.b16 %v385
    %v1690 = vunpack.c.h.b16 %v385
    %v1691 = vunpack.c.l.b16 %v386
    %v1692 = vunpack.c.h.b16 %v386
    %v1693 = vunpack.c.l.b16 %v387
    %v1694 = vunpack.c.h.b16 %v387
    %v1695 = vunpack.c.l.b16 %v388
    %v1696 = vunpack.c.h.b16 %v388
    %v1697 = vunpack.c.l.b16 %v389
    %v1698 = vunpack.c.h.b16 %v389
    %v1699 = vunpack.c.l.b16 %v390
    %v1700 = vunpack.c.h.b16 %v390
    %v1701 = vunpack.c.l.b16 %v391
    %v1702 = vunpack.c.h.b16 %v391
    %v1703 = vunpack.c.l.b16 %v392
    %v1704 = vunpack.c.h.b16 %v392
    %v1705 = vunpack.c.l.b16 %v393
    %v1706 = vunpack.c.h.b16 %v393
    %v1707 = vunpack.c.l.b16 %v394
    %v1708 = vunpack.c.h.b16 %v394
    %v1709 = vunpack.c.l.b16 %v395
    %v1710 = vunpack.c.h.b16 %v395
    %v1711 = vunpack.c.l.b16 %v396
    %v1712 = vunpack.c.h.b16 %v396
    %v1713 = vunpack.c.l.b16 %v397
    %v1714 = vunpack.c.h.b16 %v397
    %v1715 = vunpack.c.l.b16 %v398
    %v1716 = vunpack.c.h.b16 %v398
    %v1717 = vunpack.c.l.b16 %v399
    %v1718 = vunpack.c.h.b16 %v399
    %v1719 = vunpack.c.l.b16 %v400
    %v1720 = vunpack.c.h.b16 %v400
    %v1721 = vunpack.c.l.b16 %v401
    %v1722 = vunpack.c.h.b16 %v401
    %v1723 = vunpack.c.l.b16 %v402
    %v1724 = vunpack.c.h.b16 %v402
    %v1725 = vunpack.c.l.b16 %v403
    %v1726 = vunpack.c.h.b16 %v403
    %v1727 = vunpack.c.l.b16 %v404
    %v1728 = vunpack.c.h.b16 %v404
    %v1729 = vunpack.c.l.b16 %v405
    %v1730 = vunpack.c.h.b16 %v405
    %v1731 = vunpack.c.l.b16 %v406
    %v1732 = vunpack.c.h.b16 %v406
    %v1733 = vunpack.c.l.b16 %v407
    %v1734 = vunpack.c.h.b16 %v407
    %v1735 = vunpack.c.l.b16 %v408
    %v1736 = vunpack.c.h.b16 %v408
    %v1737 = vunpack.c.l.b16 %v409
    %v1738 = vunpack.c.h.b16 %v409
    %v1739 = vunpack.c.l.b16 %v410
    %v1740 = vunpack.c.h.b16 %v410
    %v1741 = vunpack.c.l.b16 %v411
    %v1742 = vunpack.c.h.b16 %v411
    %v1743 = vunpack.c.l.b16 %v412
    %v1744 = vunpack.c.h.b16 %v412
    %v1745 = vunpack.c.l.b16 %v413
    %v1746 = vunpack.c.h.b16 %v413
    %v1747 = vunpack.c.l.b16 %v414
    %v1748 = vunpack.c.h.b16 %v414
    %v1749 = vunpack.c.l.b16 %v415
    %v1750 = vunpack.c.h.b16 %v415
    %v1751 = vunpack.c.l.b16 %v416
    %v1752 = vunpack.c.h.b16 %v416
    %v1753 = vunpack.c.l.b16 %v417
    %v1754 = vunpack.c.h.b16 %v417
    %v1755 = vunpack.c.l.b16 %v418
    %v1756 = vunpack.c.h.b16 %v418
    %v1757 = vunpack.c.l.b16 %v419
    %v1758 = vunpack.c.h.b16 %v419
    %v1759 = vunpack.c.l.b16 %v420
    %v1760 = vunpack.c.h.b16 %v420
    %v1761 = vunpack.c.l.b16 %v421
    %v1762 = vunpack.c.h.b16 %v421
    %v1763 = vunpack.c.l.b16 %v422
    %v1764 = vunpack.c.h.b16 %v422
    %v1765 = vunpack.c.l.b16 %v423
    %v1766 = vunpack.c.h.b16 %v423
    %v1767 = vunpack.c.l.b16 %v424
    %v1768 = vunpack.c.h.b16 %v424
    %v1769 = vunpack.c.l.b16 %v425
    %v1770 = vunpack.c.h.b16 %v425
    %v1771 = vunpack.c.l.b16 %v426
    %v1772 = vunpack.c.h.b16 %v426
    %v1773 = vunpack.c.l.b16 %v427
    %v1774 = vunpack.c.h.b16 %v427
    %v1775 = vunpack.c.l.b16 %v428
    %v1776 = vunpack.c.h.b16 %v428
    %v1777 = vunpack.c.l.b16 %v429
    %v1778 = vunpack.c.h.b16 %v429
    %v1779 = vunpack.c.l.b16 %v430
    %v1780 = vunpack.c.h.b16 %v430
    %v1781 = vunpack.c.l.b16 %v431
    %v1782 = vunpack.c.h.b16 %v431
    %v1783 = vunpack.c.l.b16 %v432
    %v1784 = vunpack.c.h.b16 %v432
    %v1785 = vunpack.c.l.b16 %v433
    %v1786 = vunpack.c.h.b16 %v433
    %v1787 = vunpack.c.l.b16 %v434
    %v1788 = vunpack.c.h.b16 %v434
    %v1789 = vunpack.c.l.b16 %v435
    %v1790 = vunpack.c.h.b16 %v435
    %v1791 = vunpack.c.l.b16 %v436
    %v1792 = vunpack.c.h.b16 %v436
    %v1793 = vunpack.c.l.b16 %v437
    %v1794 = vunpack.c.h.b16 %v437
    %v1795 = vunpack.c.l.b16 %v438
    %v1796 = vunpack.c.h.b16 %v438
    %v1797 = vunpack.c.l.b16 %v439
    %v1798 = vunpack.c.h.b16 %v439
    %v1799 = vunpack.c.l.b16 %v440
    %v1800 = vunpack.c.h.b16 %v440
    %v1801 = vunpack.c.l.b16 %v441
    %v1802 = vunpack.c.h.b16 %v441
    %v1803 = vunpack.c.l.b16 %v442
    %v1804 = vunpack.c.h.b16 %v442
    %v1805 = vunpack.c.l.b16 %v443
    %v1806 = vunpack.c.h.b16 %v443
    %v1807 = vunpack.c.l.b16 %v444
    %v1808 = vunpack.c.h.b16 %v444
    %v1809 = vunpack.c.l.b16 %v445
    %v1810 = vunpack.c.h.b16 %v445
    %v1811 = vunpack.c.l.b16 %v446
    %v1812 = vunpack.c.h.b16 %v446
    %v1813 = vunpack.c.l.b16 %v447
    %v1814 = vunpack.c.h.b16 %v447
    %v1815 = vunpack.c.l.b16 %v448
    %v1816 = vunpack.c.h.b16 %v448
    %v1817 = vunpack.c.l.b16 %v449
    %v1818 = vunpack.c.h.b16 %v449
    %v1819 = vunpack.c.l.b16 %v450
    %v1820 = vunpack.c.h.b16 %v450
    %v1821 = vunpack.c.l.b16 %v451
    %v1822 = vunpack.c.h.b16 %v451
    %v1823 = vunpack.c.l.b16 %v452
    %v1824 = vunpack.c.h.b16 %v452
    %v1825 = vunpack.c.l.b16 %v453
    %v1826 = vunpack.c.h.b16 %v453
    %v1827 = vunpack.c.l.b16 %v454
    %v1828 = vunpack.c.h.b16 %v454
    %v1829 = vunpack.c.l.b16 %v455
    %v1830 = vunpack.c.h.b16 %v455
    %v1831 = vunpack.c.l.b16 %v456
    %v1832 = vunpack.c.h.b16 %v456
    %v1833 = vunpack.c.l.b16 %v457
    %v1834 = vunpack.c.h.b16 %v457
    %v1835 = vunpack.c.l.b16 %v458
    %v1836 = vunpack.c.h.b16 %v458
    %v1837 = vunpack.c.l.b16 %v459
    %v1838 = vunpack.c.h.b16 %v459
    %v1839 = vunpack.c.l.b16 %v460
    %v1840 = vunpack.c.h.b16 %v460
    %v1841 = vunpack.c.l.b16 %v461
    %v1842 = vunpack.c.h.b16 %v461
    %v1843 = vunpack.c.l.b16 %v462
    %v1844 = vunpack.c.h.b16 %v462
    %v1845 = vunpack.c.l.b16 %v463
    %v1846 = vunpack.c.h.b16 %v463
    %v1847 = vunpack.c.l.b16 %v464
    %v1848 = vunpack.c.h.b16 %v464
    %v1849 = vunpack.c.l.b16 %v465
    %v1850 = vunpack.c.h.b16 %v465
    %v1851 = vunpack.c.l.b16 %v466
    %v1852 = vunpack.c.h.b16 %v466
    %v1853 = vunpack.c.l.b16 %v467
    %v1854 = vunpack.c.h.b16 %v467
    %v1855 = vunpack.c.l.b16 %v468
    %v1856 = vunpack.c.h.b16 %v468
    %v1857 = vunpack.c.l.b16 %v469
    %v1858 = vunpack.c.h.b16 %v469
    %v1859 = vunpack.c.l.b16 %v470
    %v1860 = vunpack.c.h.b16 %v470
    %v1861 = vunpack.c.l.b16 %v471
    %v1862 = vunpack.c.h.b16 %v471
    %v1863 = vunpack.c.l.b16 %v472
    %v1864 = vunpack.c.h.b16 %v472
    %v1865 = vunpack.c.l.b16 %v473
    %v1866 = vunpack.c.h.b16 %v473
    %v1867 = vunpack.c.l.b16 %v474
    %v1868 = vunpack.c.h.b16 %v474
    %v1869 = vunpack.c.l.b16 %v475
    %v1870 = vunpack.c.h.b16 %v475
    %v1871 = vunpack.c.l.b16 %v476
    %v1872 = vunpack.c.h.b16 %v476
    %v1873 = vunpack.c.l.b16 %v477
    %v1874 = vunpack.c.h.b16 %v477
    %v1875 = vunpack.c.l.b16 %v478
    %v1876 = vunpack.c.h.b16 %v478
    %v1877 = vunpack.c.l.b16 %v479
    %v1878 = vunpack.c.h.b16 %v479
    %v1879 = vunpack.c.l.b16 %v480
    %v1880 = vunpack.c.h.b16 %v480
    %v1881 = vunpack.c.l.b16 %v481
    %v1882 = vunpack.c.h.b16 %v481
    %v1883 = vunpack.c.l.b16 %v482
    %v1884 = vunpack.c.h.b16 %v482
    %v1885 = vunpack.c.l.b16 %v483
    %v1886 = vunpack.c.h.b16 %v483
    %v1887 = vunpack.c.l.b16 %v484
    %v1888 = vunpack.c.h.b16 %v484
    %v1889 = vunpack.c.l.b16 %v485
    %v1890 = vunpack.c.h.b16 %v485
    %v1891 = vunpack.c.l.b16 %v486
    %v1892 = vunpack.c.h.b16 %v486
    %v1893 = vunpack.c.l.b16 %v487
    %v1894 = vunpack.c.h.b16 %v487
    %v1895 = vunpack.c.l.b16 %v488
    %v1896 = vunpack.c.h.b16 %v488
    %v1897 = vunpack.c.l.b16 %v489
    %v1898 = vunpack.c.h.b16 %v489
    %v1899 = vunpack.c.l.b16 %v490
    %v1900 = vunpack.c.h.b16 %v490
    %v1901 = vunpack.c.l.b16 %v491
    %v1902 = vunpack.c.h.b16 %v491
    %v1903 = vunpack.c.l.b16 %v492
    %v1904 = vunpack.c.h.b16 %v492
    %v1905 = vunpack.c.l.b16 %v493
    %v1906 = vunpack.c.h.b16 %v493
    %v1907 = vunpack.c.l.b16 %v494
    %v1908 = vunpack.c.h.b16 %v494
    %v1909 = vunpack.c.l.b16 %v495
    %v1910 = vunpack.c.h.b16 %v495
    %v1911 = vunpack.c.l.b16 %v496
    %v1912 = vunpack.c.h.b16 %v496
    %v1913 = vunpack.c.l.b16 %v497
    %v1914 = vunpack.c.h.b16 %v497
    %v1915 = vunpack.c.l.b16 %v498
    %v1916 = vunpack.c.h.b16 %v498
    %v1917 = vunpack.c.l.b16 %v499
    %v1918 = vunpack.c.h.b16 %v499
    %v1919 = vunpack.c.l.b16 %v500
    %v1920 = vunpack.c.h.b16 %v500
    %v1921 = vunpack.c.l.b16 %v501
    %v1922 = vunpack.c.h.b16 %v501
    %v1923 = vunpack.c.l.b16 %v502
    %v1924 = vunpack.c.h.b16 %v502
    %v1925 = vunpack.c.l.b16 %v503
    %v1926 = vunpack.c.h.b16 %v503
    %v1927 = vunpack.c.l.b16 %v504
    %v1928 = vunpack.c.h.b16 %v504
    %v1929 = vunpack.c.l.b16 %v505
    %v1930 = vunpack.c.h.b16 %v505
    %v1931 = vunpack.c.l.b16 %v506
    %v1932 = vunpack.c.h.b16 %v506
    %v1933 = vunpack.c.l.b16 %v507
    %v1934 = vunpack.c.h.b16 %v507
    %v1935 = vunpack.c.l.b16 %v508
    %v1936 = vunpack.c.h.b16 %v508
    %v1937 = vunpack.c.l.b16 %v509
    %v1938 = vunpack.c.h.b16 %v509
    %v1939 = vunpack.c.l.b16 %v510
    %v1940 = vunpack.c.h.b16 %v510
    %v1941 = vunpack.c.l.b16 %v511
    %v1942 = vunpack.c.h.b16 %v511
    %v1943 = vunpack.c.l.b16 %v512
    %v1944 = vunpack.c.h.b16 %v512
    %v1945 = vunpack.c.l.b16 %v513
    %v1946 = vunpack.c.h.b16 %v513
    %v1947 = vunpack.c.l.b16 %v514
    %v1948 = vunpack.c.h.b16 %v514
    %v1949 = vunpack.c.l.b16 %v515
    %v1950 = vunpack.c.h.b16 %v515
    %v1951 = vunpack.c.l.b16 %v516
    %v1952 = vunpack.c.h.b16 %v516
    %v1953 = vunpack.c.l.b16 %v517
    %v1954 = vunpack.c.h.b16 %v517
    %v1955 = vunpack.c.l.b16 %v518
    %v1956 = vunpack.c.h.b16 %v518
    %v1957 = vunpack.c.l.b16 %v519
    %v1958 = vunpack.c.h.b16 %v519
    %v1959 = vunpack.c.l.b16 %v520
    %v1960 = vunpack.c.h.b16 %v520
    %v1961 = vunpack.c.l.b16 %v521
    %v1962 = vunpack.c.h.b16 %v521
    %v1963 = vunpack.c.l.b16 %v522
    %v1964 = vunpack.c.h.b16 %v522
    %v1965 = vunpack.c.l.b16 %v523
    %v1966 = vunpack.c.h.b16 %v523
    %v1967 = vunpack.c.l.b16 %v524
    %v1968 = vunpack.c.h.b16 %v524
    %v1969 = vunpack.c.l.b16 %v525
    %v1970 = vunpack.c.h.b16 %v525
    %v1971 = vunpack.c.l.b16 %v526
    %v1972 = vunpack.c.h.b16 %v526
    %v1973 = vunpack.c.l.b16 %v527
    %v1974 = vunpack.c.h.b16 %v527
    %v1975 = vunpack.c.l.b16 %v528
    %v1976 = vunpack.c.h.b16 %v528
    %v1977 = vunpack.c.l.b16 %v529
    %v1978 = vunpack.c.h.b16 %v529
    %v1979 = vunpack.c.l.b16 %v530
    %v1980 = vunpack.c.h.b16 %v530
    %v1981 = vunpack.c.l.b16 %v531
    %v1982 = vunpack.c.h.b16 %v531
    %v1983 = vunpack.c.l.b16 %v532
    %v1984 = vunpack.c.h.b16 %v532
    %v1985 = vunpack.c.l.b16 %v533
    %v1986 = vunpack.c.h.b16 %v533
    %v1987 = vunpack.c.l.b16 %v534
    %v1988 = vunpack.c.h.b16 %v534
    %v1989 = vunpack.c.l.b16 %v535
    %v1990 = vunpack.c.h.b16 %v535
    %v1991 = vunpack.c.l.b16 %v536
    %v1992 = vunpack.c.h.b16 %v536
    %v1993 = vunpack.c.l.b16 %v537
    %v1994 = vunpack.c.h.b16 %v537
    %v1995 = vunpack.c.l.b16 %v538
    %v1996 = vunpack.c.h.b16 %v538
    %v1997 = vunpack.c.l.b16 %v539
    %v1998 = vunpack.c.h.b16 %v539
    %v1999 = vunpack.c.l.b16 %v540
    %v2000 = vunpack.c.h.b16 %v540
    %v2001 = vunpack.c.l.b16 %v541
    %v2002 = vunpack.c.h.b16 %v541
    %v2003 = vunpack.c.l.b16 %v542
    %v2004 = vunpack.c.h.b16 %v542
    %v2005 = vunpack.c.l.b16 %v543
    %v2006 = vunpack.c.h.b16 %v543
    %v2007 = vunpack.c.l.b16 %v544
    %v2008 = vunpack.c.h.b16 %v544
    %v2009 = vunpack.c.l.b16 %v545
    %v2010 = vunpack.c.h.b16 %v545
    %v2011 = vunpack.c.l.b16 %v546
    %v2012 = vunpack.c.h.b16 %v546
    %v2013 = vunpack.c.l.b16 %v547
    %v2014 = vunpack.c.h.b16 %v547
    %v2015 = vunpack.c.l.b16 %v548
    %v2016 = vunpack.c.h.b16 %v548
    %v2017 = vunpack.c.l.b16 %v549
    %v2018 = vunpack.c.h.b16 %v549
    %v2019 = vunpack.c.l.b16 %v550
    %v2020 = vunpack.c.h.b16 %v550
    %v2021 = vunpack.c.l.b16 %v551
    %v2022 = vunpack.c.h.b16 %v551
    %v2023 = vunpack.c.l.b16 %v552
    %v2024 = vunpack.c.h.b16 %v552
    %v2025 = vunpack.c.l.b16 %v553
    %v2026 = vunpack.c.h.b16 %v553
    %v2027 = vunpack.c.l.b16 %v554
    %v2028 = vunpack.c.h.b16 %v554
    %v2029 = vunpack.c.l.b16 %v555
    %v2030 = vunpack.c.h.b16 %v555
    %v2031 = vunpack.c.l.b16 %v556
    %v2032 = vunpack.c.h.b16 %v556
    %v2033 = vunpack.c.l.b16 %v557
    %v2034 = vunpack.c.h.b16 %v557
    %v2035 = vunpack.c.l.b16 %v558
    %v2036 = vunpack.c.h.b16 %v558
    %v2037 = vunpack.c.l.b16 %v559
    %v2038 = vunpack.c.h.b16 %v559
    %v2039 = vunpack.c.l.b16 %v560
    %v2040 = vunpack.c.h.b16 %v560
    %v2041 = vunpack.c.l.b16 %v561
    %v2042 = vunpack.c.h.b16 %v561
    %v2043 = vunpack.c.l.b16 %v562
    %v2044 = vunpack.c.h.b16 %v562
    %v2045 = vunpack.c.l.b16 %v563
    %v2046 = vunpack.c.h.b16 %v563
    %v2047 = vunpack.c.l.b16 %v564
    %v2048 = vunpack.c.h.b16 %v564
    %v2049 = vunpack.c.l.b16 %v565
    %v2050 = vunpack.c.h.b16 %v565
    %v2051 = vunpack.c.l.b16 %v566
    %v2052 = vunpack.c.h.b16 %v566
    %v2053 = vunpack.c.l.b16 %v567
    %v2054 = vunpack.c.h.b16 %v567
    %v2055 = vunpack.c.l.b16 %v568
    %v2056 = vunpack.c.h.b16 %v568
    %v2057 = vunpack.c.l.b16 %v569
    %v2058 = vunpack.c.h.b16 %v569
    %v2059 = vunpack.c.l.b16 %v570
    %v2060 = vunpack.c.h.b16 %v570
    %v2061 = vunpack.c.l.b16 %v571
    %v2062 = vunpack.c.h.b16 %v571
    %v2063 = vunpack.c.l.b16 %v572
    %v2064 = vunpack.c.h.b16 %v572
    %v2065 = vunpack.c.l.b16 %v573
    %v2066 = vunpack.c.h.b16 %v573
    %v2067 = vunpack.c.l.b16 %v574
    %v2068 = vunpack.c.h.b16 %v574
    %v2069 = vunpack.c.l.b16 %v575
    %v2070 = vunpack.c.h.b16 %v575
    %v2071 = vunpack.c.l.b16 %v576
    %v2072 = vunpack.c.h.b16 %v576
    %v2073 = vunpack.c.l.b16 %v577
    %v2074 = vunpack.c.h.b16 %v577
    %v2075 = vunpack.c.l.b16 %v578
    %v2076 = vunpack.c.h.b16 %v578
    %v2077 = vunpack.c.l.b16 %v579
    %v2078 = vunpack.c.h.b16 %v579
    %v2079 = vunpack.c.l.b16 %v580
    %v2080 = vunpack.c.h.b16 %v580
    %v2081 = vunpack.c.l.b16 %v581
    %v2082 = vunpack.c.h.b16 %v581
    %v2083 = vunpack.c.l.b16 %v582
    %v2084 = vunpack.c.h.b16 %v582
    %v2085 = vunpack.c.l.b16 %v583
    %v2086 = vunpack.c.h.b16 %v583
    %v2087 = vunpack.c.l.b16 %v584
    %v2088 = vunpack.c.h.b16 %v584
    %v2089 = vunpack.c.l.b16 %v585
    %v2090 = vunpack.c.h.b16 %v585
    %v2091 = vunpack.c.l.b16 %v586
    %v2092 = vunpack.c.h.b16 %v586
    %v2093 = vunpack.c.l.b16 %v587
    %v2094 = vunpack.c.h.b16 %v587
    %v2095 = vunpack.c.l.b16 %v588
    %v2096 = vunpack.c.h.b16 %v588
    %v2097 = vunpack.c.l.b16 %v589
    %v2098 = vunpack.c.h.b16 %v589
    %v2099 = vunpack.c.l.b16 %v590
    %v2100 = vunpack.c.h.b16 %v590
    %v2101 = vunpack.c.l.b16 %v591
    %v2102 = vunpack.c.h.b16 %v591
    %v2103 = vunpack.c.l.b16 %v592
    %v2104 = vunpack.c.h.b16 %v592
    %v2105 = vunpack.c.l.b16 %v593
    %v2106 = vunpack.c.h.b16 %v593
    %v2107 = vunpack.c.l.b16 %v594
    %v2108 = vunpack.c.h.b16 %v594
    %v2109 = vunpack.c.l.b16 %v595
    %v2110 = vunpack.c.h.b16 %v595
    %v2111 = vunpack.c.l.b16 %v596
    %v2112 = vunpack.c.h.b16 %v596
    %v2113 = vunpack.c.l.b16 %v597
    %v2114 = vunpack.c.h.b16 %v597
    %v2115 = vunpack.c.l.b16 %v598
    %v2116 = vunpack.c.h.b16 %v598
    %v2117 = vunpack.c.l.b16 %v599
    %v2118 = vunpack.c.h.b16 %v599
    %v2119 = vunpack.c.l.b16 %v600
    %v2120 = vunpack.c.h.b16 %v600
    %v2121 = vunpack.c.l.b16 %v601
    %v2122 = vunpack.c.h.b16 %v601
    %v2123 = vunpack.c.l.b16 %v602
    %v2124 = vunpack.c.h.b16 %v602
    %v2125 = vunpack.c.l.b16 %v603
    %v2126 = vunpack.c.h.b16 %v603
    %v2127 = vunpack.c.l.b16 %v604
    %v2128 = vunpack.c.h.b16 %v604
    %v2129 = vunpack.c.l.b16 %v605
    %v2130 = vunpack.c.h.b16 %v605
    %v2131 = vunpack.c.l.b16 %v606
    %v2132 = vunpack.c.h.b16 %v606
    %v2133 = vunpack.c.l.b16 %v607
    %v2134 = vunpack.c.h.b16 %v607
    %v2135 = vunpack.c.l.b16 %v608
    %v2136 = vunpack.c.h.b16 %v608
    %v2137 = vunpack.c.l.b16 %v609
    %v2138 = vunpack.c.h.b16 %v609
    %v2139 = vunpack.c.l.b16 %v610
    %v2140 = vunpack.c.h.b16 %v610
    %v2141 = vunpack.c.l.b16 %v611
    %v2142 = vunpack.c.h.b16 %v611
    %v2143 = vunpack.c.l.b16 %v612
    %v2144 = vunpack.c.h.b16 %v612
    %v2145 = vunpack.c.l.b16 %v613
    %v2146 = vunpack.c.h.b16 %v613
    %v2147 = vunpack.c.l.b16 %v614
    %v2148 = vunpack.c.h.b16 %v614
    %v2149 = vunpack.c.l.b16 %v615
    %v2150 = vunpack.c.h.b16 %v615
    %v2151 = vunpack.c.l.b16 %v616
    %v2152 = vunpack.c.h.b16 %v616
    %v2153 = vunpack.c.l.b16 %v617
    %v2154 = vunpack.c.h.b16 %v617
    %v2155 = vunpack.c.l.b16 %v618
    %v2156 = vunpack.c.h.b16 %v618
    %v2157 = vunpack.c.l.b16 %v619
    %v2158 = vunpack.c.h.b16 %v619
    %v2159 = vunpack.c.l.b16 %v620
    %v2160 = vunpack.c.h.b16 %v620
    %v2161 = vunpack.c.l.b16 %v621
    %v2162 = vunpack.c.h.b16 %v621
    %v2163 = vunpack.c.l.b16 %v622
    %v2164 = vunpack.c.h.b16 %v622
    %v2165 = vunpack.c.l.b16 %v623
    %v2166 = vunpack.c.h.b16 %v623
    %v2167 = vunpack.c.l.b16 %v624
    %v2168 = vunpack.c.h.b16 %v624
    %v2169 = vunpack.c.l.b16 %v625
    %v2170 = vunpack.c.h.b16 %v625
    %v2171 = vunpack.c.l.b16 %v626
    %v2172 = vunpack.c.h.b16 %v626
    %v2173 = vunpack.c.l.b16 %v627
    %v2174 = vunpack.c.h.b16 %v627
    %v2175 = vunpack.c.l.b16 %v628
    %v2176 = vunpack.c.h.b16 %v628
    %v2177 = vunpack.c.l.b16 %v629
    %v2178 = vunpack.c.h.b16 %v629
    %v2179 = vunpack.c.l.b16 %v630
    %v2180 = vunpack.c.h.b16 %v630
    %v2181 = vunpack.c.l.b16 %v631
    %v2182 = vunpack.c.h.b16 %v631
    %v2183 = vunpack.c.l.b16 %v632
    %v2184 = vunpack.c.h.b16 %v632
    %v2185 = vunpack.c.l.b16 %v633
    %v2186 = vunpack.c.h.b16 %v633
    %v2187 = vunpack.c.l.b16 %v634
    %v2188 = vunpack.c.h.b16 %v634
    %v2189 = vunpack.c.l.b16 %v635
    %v2190 = vunpack.c.h.b16 %v635
    %v2191 = vunpack.c.l.b16 %v636
    %v2192 = vunpack.c.h.b16 %v636
    %v2193 = vunpack.c.l.b16 %v637
    %v2194 = vunpack.c.h.b16 %v637
    %v2195 = vunpack.c.l.b16 %v638
    %v2196 = vunpack.c.h.b16 %v638
    %v2197 = vunpack.c.l.b16 %v639
    %v2198 = vunpack.c.h.b16 %v639
    %v2199 = vunpack.c.l.b16 %v640
    %v2200 = vunpack.c.h.b16 %v640
    %v2201 = vunpack.c.l.b16 %v641
    %v2202 = vunpack.c.h.b16 %v641
    %v2203 = vunpack.c.l.b16 %v642
    %v2204 = vunpack.c.h.b16 %v642
    %v2205 = vunpack.c.l.b16 %v643
    %v2206 = vunpack.c.h.b16 %v643
    %v2207 = vunpack.c.l.b16 %v644
    %v2208 = vunpack.c.h.b16 %v644
    %v2209 = vunpack.c.l.b16 %v645
    %v2210 = vunpack.c.h.b16 %v645
    %v2211 = vunpack.c.l.b16 %v646
    %v2212 = vunpack.c.h.b16 %v646
    %v2213 = vunpack.c.l.b16 %v647
    %v2214 = vunpack.c.h.b16 %v647
    %v2215 = vunpack.c.l.b16 %v648
    %v2216 = vunpack.c.h.b16 %v648
    %v2217 = vunpack.c.l.b16 %v649
    %v2218 = vunpack.c.h.b16 %v649
    %v2219 = vunpack.c.l.b16 %v650
    %v2220 = vunpack.c.h.b16 %v650
    %v2221 = vunpack.c.l.b16 %v651
    %v2222 = vunpack.c.h.b16 %v651
    %v2223 = vunpack.c.l.b16 %v652
    %v2224 = vunpack.c.h.b16 %v652
    %v2225 = vunpack.c.l.b16 %v653
    %v2226 = vunpack.c.h.b16 %v653
    %v2227 = vunpack.c.l.b16 %v654
    %v2228 = vunpack.c.h.b16 %v654
    %v2229 = vunpack.c.l.b16 %v655
    %v2230 = vunpack.c.h.b16 %v655
    %v2231 = vunpack.c.l.b16 %v656
    %v2232 = vunpack.c.h.b16 %v656
    %v2233 = vunpack.c.l.b16 %v657
    %v2234 = vunpack.c.h.b16 %v657
    %v2235 = vunpack.c.l.b16 %v658
    %v2236 = vunpack.c.h.b16 %v658
    %v2237 = vpack.c.b16 %v1221, %v1213
    %v2238 = vpack.c.b16 %v1222, %v1214
    %v2239 = vpack.c.b16 %v1223, %v1215
    %v2240 = vpack.c.b16 %v1224, %v1216
    %v2241 = vpack.c.b16 %v1225, %v1217
    %v2242 = vpack.c.b16 %v1226, %v1218
    %v2243 = vpack.c.b16 %v1227, %v1219
    %v2244 = vpack.c.b16 %v1228, %v1220
    %v2245 = vpack.c.b16 %v1237, %v1229
    %v2246 = vpack.c.b16 %v1238, %v1230
    %v2247 = vpack.c.b16 %v1239, %v1231
    %v2248 = vpack.c.b16 %v1240, %v1232
    %v2249 = vpack.c.b16 %v1241, %v1233
    %v2250 = vpack.c.b16 %v1242, %v1234
    %v2251 = vpack.c.b16 %v1243, %v1235
    %v2252 = vpack.c.b16 %v1244, %v1236
    %v2253 = vpack.c.b16 %v1253, %v1245
    %v2254 = vpack.c.b16 %v1254, %v1246
    %v2255 = vpack.c.b16 %v1255, %v1247
    %v2256 = vpack.c.b16 %v1256, %v1248
    %v2257 = vpack.c.b16 %v1257, %v1249
    %v2258 = vpack.c.b16 %v1258, %v1250
    %v2259 = vpack.c.b16 %v1259, %v1251
    %v2260 = vpack.c.b16 %v1260, %v1252
    %v2261 = vpack.c.b16 %v1269, %v1261
    %v2262 = vpack.c.b16 %v1270, %v1262
    %v2263 = vpack.c.b16 %v1271, %v1263
    %v2264 = vpack.c.b16 %v1272, %v1264
    %v2265 = vpack.c.b16 %v1273, %v1265
    %v2266 = vpack.c.b16 %v1274, %v1266
    %v2267 = vpack.c.b16 %v1275, %v1267
    %v2268 = vpack.c.b16 %v1276, %v1268
    %v2269 = vpack.c.b16 %v1285, %v1277
    %v2270 = vpack.c.b16 %v1286, %v1278
    %v2271 = vpack.c.b16 %v1287, %v1279
    %v2272 = vpack.c.b16 %v1288, %v1280
    %v2273 = vpack.c.b16 %v1289, %v1281
    %v2274 = vpack.c.b16 %v1290, %v1282
    %v2275 = vpack.c.b16 %v1291, %v1283
    %v2276 = vpack.c.b16 %v1292, %v1284
    %v2277 = vpack.c.b16 %v1301, %v1293
    %v2278 = vpack.c.b16 %v1302, %v1294
    %v2279 = vpack.c.b16 %v1303, %v1295
    %v2280 = vpack.c.b16 %v1304, %v1296
    %v2281 = vpack.c.b16 %v1305, %v1297
    %v2282 = vpack.c.b16 %v1306, %v1298
    %v2283 = vpack.c.b16 %v1307, %v1299
    %v2284 = vpack.c.b16 %v1308, %v1300
    %v2285 = vpack.c.b16 %v1317, %v1309
    %v2286 = vpack.c.b16 %v1318, %v1310
    %v2287 = vpack.c.b16 %v1319, %v1311
    %v2288 = vpack.c.b16 %v1320, %v1312
    %v2289 = vpack.c.b16 %v1321, %v1313
    %v2290 = vpack.c.b16 %v1322, %v1314
    %v2291 = vpack.c.b16 %v1323, %v1315
    %v2292 = vpack.c.b16 %v1324, %v1316
    %v2293 = vpack.c.b16 %v1333, %v1325
    %v2294 = vpack.c.b16 %v1334, %v1326
    %v2295 = vpack.c.b16 %v1335, %v1327
    %v2296 = vpack.c.b16 %v1336, %v1328
    %v2297 = vpack.c.b16 %v1337, %v1329
    %v2298 = vpack.c.b16 %v1338, %v1330
    %v2299 = vpack.c.b16 %v1339, %v1331
    %v2300 = vpack.c.b16 %v1340, %v1332
    %v2301 = vpack.c.b16 %v1349, %v1341
    %v2302 = vpack.c.b16 %v1350, %v1342
    %v2303 = vpack.c.b16 %v1351, %v1343
    %v2304 = vpack.c.b16 %v1352, %v1344
    %v2305 = vpack.c.b16 %v1353, %v1345
    %v2306 = vpack.c.b16 %v1354, %v1346
    %v2307 = vpack.c.b16 %v1355, %v1347
    %v2308 = vpack.c.b16 %v1356, %v1348
    %v2309 = vpack.c.b16 %v1365, %v1357
    %v2310 = vpack.c.b16 %v1366, %v1358
    %v2311 = vpack.c.b16 %v1367, %v1359
    %v2312 = vpack.c.b16 %v1368, %v1360
    %v2313 = vpack.c.b16 %v1369, %v1361
    %v2314 = vpack.c.b16 %v1370, %v1362
    %v2315 = vpack.c.b16 %v1371, %v1363
    %v2316 = vpack.c.b16 %v1372, %v1364
    %v2317 = vpack.c.b16 %v1381, %v1373
    %v2318 = vpack.c.b16 %v1382, %v1374
    %v2319 = vpack.c.b16 %v1383, %v1375
    %v2320 = vpack.c.b16 %v1384, %v1376
    %v2321 = vpack.c.b16 %v1385, %v1377
    %v2322 = vpack.c.b16 %v1386, %v1378
    %v2323 = vpack.c.b16 %v1387, %v1379
    %v2324 = vpack.c.b16 %v1388, %v1380
    %v2325 = vpack.c.b16 %v1397, %v1389
    %v2326 = vpack.c.b16 %v1398, %v1390
    %v2327 = vpack.c.b16 %v1399, %v1391
    %v2328 = vpack.c.b16 %v1400, %v1392
    %v2329 = vpack.c.b16 %v1401, %v1393
    %v2330 = vpack.c.b16 %v1402, %v1394
    %v2331 = vpack.c.b16 %v1403, %v1395
    %v2332 = vpack.c.b16 %v1404, %v1396
    %v2333 = vpack.c.b16 %v1413, %v1405
    %v2334 = vpack.c.b16 %v1414, %v1406
    %v2335 = vpack.c.b16 %v1415, %v1407
    %v2336 = vpack.c.b16 %v1416, %v1408
    %v2337 = vpack.c.b16 %v1417, %v1409
    %v2338 = vpack.c.b16 %v1418, %v1410
    %v2339 = vpack.c.b16 %v1419, %v1411
    %v2340 = vpack.c.b16 %v1420, %v1412
    %v2341 = vpack.c.b16 %v1429, %v1421
    %v2342 = vpack.c.b16 %v1430, %v1422
    %v2343 = vpack.c.b16 %v1431, %v1423
    %v2344 = vpack.c.b16 %v1432, %v1424
    %v2345 = vpack.c.b16 %v1433, %v1425
    %v2346 = vpack.c.b16 %v1434, %v1426
    %v2347 = vpack.c.b16 %v1435, %v1427
    %v2348 = vpack.c.b16 %v1436, %v1428
    %v2349 = vpack.c.b16 %v1445, %v1437
    %v2350 = vpack.c.b16 %v1446, %v1438
    %v2351 = vpack.c.b16 %v1447, %v1439
    %v2352 = vpack.c.b16 %v1448, %v1440
    %v2353 = vpack.c.b16 %v1449, %v1441
    %v2354 = vpack.c.b16 %v1450, %v1442
    %v2355 = vpack.c.b16 %v1451, %v1443
    %v2356 = vpack.c.b16 %v1452, %v1444
    %v2357 = vpack.c.b16 %v1461, %v1453
    %v2358 = vpack.c.b16 %v1462, %v1454
    %v2359 = vpack.c.b16 %v1463, %v1455
    %v2360 = vpack.c.b16 %v1464, %v1456
    %v2361 = vpack.c.b16 %v1465, %v1457
    %v2362 = vpack.c.b16 %v1466, %v1458
    %v2363 = vpack.c.b16 %v1467, %v1459
    %v2364 = vpack.c.b16 %v1468, %v1460
    %v2365 = vpack.c.b16 %v1477, %v1469
    %v2366 = vpack.c.b16 %v1478, %v1470
    %v2367 = vpack.c.b16 %v1479, %v1471
    %v2368 = vpack.c.b16 %v1480, %v1472
    %v2369 = vpack.c.b16 %v1481, %v1473
    %v2370 = vpack.c.b16 %v1482, %v1474
    %v2371 = vpack.c.b16 %v1483, %v1475
    %v2372 = vpack.c.b16 %v1484, %v1476
    %v2373 = vpack.c.b16 %v1493, %v1485
    %v2374 = vpack.c.b16 %v1494, %v1486
    %v2375 = vpack.c.b16 %v1495, %v1487
    %v2376 = vpack.c.b16 %v1496, %v1488
    %v2377 = vpack.c.b16 %v1497, %v1489
    %v2378 = vpack.c.b16 %v1498, %v1490
    %v2379 = vpack.c.b16 %v1499, %v1491
    %v2380 = vpack.c.b16 %v1500, %v1492
    %v2381 = vpack.c.b16 %v1509, %v1501
    %v2382 = vpack.c.b16 %v1510, %v1502
    %v2383 = vpack.c.b16 %v1511, %v1503
    %v2384 = vpack.c.b16 %v1512, %v1504
    %v2385 = vpack.c.b16 %v1513, %v1505
    %v2386 = vpack.c.b16 %v1514, %v1506
    %v2387 = vpack.c.b16 %v1515, %v1507
    %v2388 = vpack.c.b16 %v1516, %v1508
    %v2389 = vpack.c.b16 %v1525, %v1517
    %v2390 = vpack.c.b16 %v1526, %v1518
    %v2391 = vpack.c.b16 %v1527, %v1519
    %v2392 = vpack.c.b16 %v1528, %v1520
    %v2393 = vpack.c.b16 %v1529, %v1521
    %v2394 = vpack.c.b16 %v1530, %v1522
    %v2395 = vpack.c.b16 %v1531, %v1523
    %v2396 = vpack.c.b16 %v1532, %v1524
    %v2397 = vpack.c.b16 %v1541, %v1533
    %v2398 = vpack.c.b16 %v1542, %v1534
    %v2399 = vpack.c.b16 %v1543, %v1535
    %v2400 = vpack.c.b16 %v1544, %v1536
    %v2401 = vpack.c.b16 %v1545, %v1537
    %v2402 = vpack.c.b16 %v1546, %v1538
    %v2403 = vpack.c.b16 %v1547, %v1539
    %v2404 = vpack.c.b16 %v1548, %v1540
    %v2405 = vpack.c.b16 %v1557, %v1549
    %v2406 = vpack.c.b16 %v1558, %v1550
    %v2407 = vpack.c.b16 %v1559, %v1551
    %v2408 = vpack.c.b16 %v1560, %v1552
    %v2409 = vpack.c.b16 %v1561, %v1553
    %v2410 = vpack.c.b16 %v1562, %v1554
    %v2411 = vpack.c.b16 %v1563, %v1555
    %v2412 = vpack.c.b16 %v1564, %v1556
    %v2413 = vpack.c.b16 %v1573, %v1565
    %v2414 = vpack.c.b16 %v1574, %v1566
    %v2415 = vpack.c.b16 %v1575, %v1567
    %v2416 = vpack.c.b16 %v1576, %v1568
    %v2417 = vpack.c.b16 %v1577, %v1569
    %v2418 = vpack.c.b16 %v1578, %v1570
    %v2419 = vpack.c.b16 %v1579, %v1571
    %v2420 = vpack.c.b16 %v1580, %v1572
    %v2421 = vpack.c.b16 %v1589, %v1581
    %v2422 = vpack.c.b16 %v1590, %v1582
    %v2423 = vpack.c.b16 %v1591, %v1583
    %v2424 = vpack.c.b16 %v1592, %v1584
    %v2425 = vpack.c.b16 %v1593, %v1585
    %v2426 = vpack.c.b16 %v1594, %v1586
    %v2427 = vpack.c.b16 %v1595, %v1587
    %v2428 = vpack.c.b16 %v1596, %v1588
    %v2429 = vpack.c.b16 %v1605, %v1597
    %v2430 = vpack.c.b16 %v1606, %v1598
    %v2431 = vpack.c.b16 %v1607, %v1599
    %v2432 = vpack.c.b16 %v1608, %v1600
    %v2433 = vpack.c.b16 %v1609, %v1601
    %v2434 = vpack.c.b16 %v1610, %v1602
    %v2435 = vpack.c.b16 %v1611, %v1603
    %v2436 = vpack.c.b16 %v1612, %v1604
    %v2437 = vpack.c.b16 %v1621, %v1613
    %v2438 = vpack.c.b16 %v1622, %v1614
    %v2439 = vpack.c.b16 %v1623, %v1615
    %v2440 = vpack.c.b16 %v1624, %v1616
    %v2441 = vpack.c.b16 %v1625, %v1617
    %v2442 = vpack.c.b16 %v1626, %v1618
    %v2443 = vpack.c.b16 %v1627, %v1619
    %v2444 = vpack.c.b16 %v1628, %v1620
    %v2445 = vpack.c.b16 %v1637, %v1629
    %v2446 = vpack.c.b16 %v1638, %v1630
    %v2447 = vpack.c.b16 %v1639, %v1631
    %v2448 = vpack.c.b16 %v1640, %v1632
    %v2449 = vpack.c.b16 %v1641, %v1633
    %v2450 = vpack.c.b16 %v1642, %v1634
    %v2451 = vpack.c.b16 %v1643, %v1635
    %v2452 = vpack.c.b16 %v1644, %v1636
    %v2453 = vpack.c.b16 %v1653, %v1645
    %v2454 = vpack.c.b16 %v1654, %v1646
    %v2455 = vpack.c.b16 %v1655, %v1647
    %v2456 = vpack.c.b16 %v1656, %v1648
    %v2457 = vpack.c.b16 %v1657, %v1649
    %v2458 = vpack.c.b16 %v1658, %v1650
    %v2459 = vpack.c.b16 %v1659, %v1651
    %v2460 = vpack.c.b16 %v1660, %v1652
    %v2461 = vpack.c.b16 %v1669, %v1661
    %v2462 = vpack.c.b16 %v1670, %v1662
    %v2463 = vpack.c.b16 %v1671, %v1663
    %v2464 = vpack.c.b16 %v1672, %v1664
    %v2465 = vpack.c.b16 %v1673, %v1665
    %v2466 = vpack.c.b16 %v1674, %v1666
    %v2467 = vpack.c.b16 %v1675, %v1667
    %v2468 = vpack.c.b16 %v1676, %v1668
    %v2469 = vpack.c.b16 %v1685, %v1677
    %v2470 = vpack.c.b16 %v1686, %v1678
    %v2471 = vpack.c.b16 %v1687, %v1679
    %v2472 = vpack.c.b16 %v1688, %v1680
    %v2473 = vpack.c.b16 %v1689, %v1681
    %v2474 = vpack.c.b16 %v1690, %v1682
    %v2475 = vpack.c.b16 %v1691, %v1683
    %v2476 = vpack.c.b16 %v1692, %v1684
    %v2477 = vpack.c.b16 %v1701, %v1693
    %v2478 = vpack.c.b16 %v1702, %v1694
    %v2479 = vpack.c.b16 %v1703, %v1695
    %v2480 = vpack.c.b16 %v1704, %v1696
    %v2481 = vpack.c.b16 %v1705, %v1697
    %v2482 = vpack.c.b16 %v1706, %v1698
    %v2483 = vpack.c.b16 %v1707, %v1699
    %v2484 = vpack.c.b16 %v1708, %v1700
    %v2485 = vpack.c.b16 %v1717, %v1709
    %v2486 = vpack.c.b16 %v1718, %v1710
    %v2487 = vpack.c.b16 %v1719, %v1711
    %v2488 = vpack.c.b16 %v1720, %v1712
    %v2489 = vpack.c.b16 %v1721, %v1713
    %v2490 = vpack.c.b16 %v1722, %v1714
    %v2491 = vpack.c.b16 %v1723, %v1715
    %v2492 = vpack.c.b16 %v1724, %v1716
    %v2493 = vpack.c.b16 %v1733, %v1725
    %v2494 = vpack.c.b16 %v1734, %v1726
    %v2495 = vpack.c.b16 %v1735, %v1727
    %v2496 = vpack.c.b16 %v1736, %v1728
    %v2497 = vpack.c.b16 %v1737, %v1729
    %v2498 = vpack.c.b16 %v1738, %v1730
    %v2499 = vpack.c.b16 %v1739, %v1731
    %v2500 = vpack.c.b16 %v1740, %v1732
    %v2501 = vpack.c.b16 %v1749, %v1741
    %v2502 = vpack.c.b16 %v1750, %v1742
    %v2503 = vpack.c.b16 %v1751, %v1743
    %v2504 = vpack.c.b16 %v1752, %v1744
    %v2505 = vpack.c.b16 %v1753, %v1745
    %v2506 = vpack.c.b16 %v1754, %v1746
    %v2507 = vpack.c.b16 %v1755, %v1747
    %v2508 = vpack.c.b16 %v1756, %v1748
    %v2509 = vpack.c.b16 %v1765, %v1757
    %v2510 = vpack.c.b16 %v1766, %v1758
    %v2511 = vpack.c.b16 %v1767, %v1759
    %v2512 = vpack.c.b16 %v1768, %v1760
    %v2513 = vpack.c.b16 %v1769, %v1761
    %v2514 = vpack.c.b16 %v1770, %v1762
    %v2515 = vpack.c.b16 %v1771, %v1763
    %v2516 = vpack.c.b16 %v1772, %v1764
    %v2517 = vpack.c.b16 %v1781, %v1773
    %v2518 = vpack.c.b16 %v1782, %v1774
    %v2519 = vpack.c.b16 %v1783, %v1775
    %v2520 = vpack.c.b16 %v1784, %v1776
    %v2521 = vpack.c.b16 %v1785, %v1777
    %v2522 = vpack.c.b16 %v1786, %v1778
    %v2523 = vpack.c.b16 %v1787, %v1779
    %v2524 = vpack.c.b16 %v1788, %v1780
    %v2525 = vpack.c.b16 %v1797, %v1789
    %v2526 = vpack.c.b16 %v1798, %v1790
    %v2527 = vpack.c.b16 %v1799, %v1791
    %v2528 = vpack.c.b16 %v1800, %v1792
    %v2529 = vpack.c.b16 %v1801, %v1793
    %v2530 = vpack.c.b16 %v1802, %v1794
    %v2531 = vpack.c.b16 %v1803, %v1795
    %v2532 = vpack.c.b16 %v1804, %v1796
    %v2533 = vpack.c.b16 %v1813, %v1805
    %v2534 = vpack.c.b16 %v1814, %v1806
    %v2535 = vpack.c.b16 %v1815, %v1807
    %v2536 = vpack.c.b16 %v1816, %v1808
    %v2537 = vpack.c.b16 %v1817, %v1809
    %v2538 = vpack.c.b16 %v1818, %v1810
    %v2539 = vpack.c.b16 %v1819, %v1811
    %v2540 = vpack.c.b16 %v1820, %v1812
    %v2541 = vpack.c.b16 %v1829, %v1821
    %v2542 = vpack.c.b16 %v1830, %v1822
    %v2543 = vpack.c.b16 %v1831, %v1823
    %v2544 = vpack.c.b16 %v1832, %v1824
    %v2545 = vpack.c.b16 %v1833, %v1825
    %v2546 = vpack.c.b16 %v1834, %v1826
    %v2547 = vpack.c.b16 %v1835, %v1827
    %v2548 = vpack.c.b16 %v1836, %v1828
    %v2549 = vpack.c.b16 %v1845, %v1837
    %v2550 = vpack.c.b16 %v1846, %v1838
    %v2551 = vpack.c.b16 %v1847, %v1839
    %v2552 = vpack.c.b16 %v1848, %v1840
    %v2553 = vpack.c.b16 %v1849, %v1841
    %v2554 = vpack.c.b16 %v1850, %v1842
    %v2555 = vpack.c.b16 %v1851, %v1843
    %v2556 = vpack.c.b16 %v1852, %v1844
    %v2557 = vpack.c.b16 %v1861, %v1853
    %v2558 = vpack.c.b16 %v1862, %v1854
    %v2559 = vpack.c.b16 %v1863, %v1855
    %v2560 = vpack.c.b16 %v1864, %v1856
    %v2561 = vpack.c.b16 %v1865, %v1857
    %v2562 = vpack.c.b16 %v1866, %v1858
    %v2563 = vpack.c.b16 %v1867, %v1859
    %v2564 = vpack.c.b16 %v1868, %v1860
    %v2565 = vpack.c.b16 %v1877, %v1869
    %v2566 = vpack.c.b16 %v1878, %v1870
    %v2567 = vpack.c.b16 %v1879, %v1871
    %v2568 = vpack.c.b16 %v1880, %v1872
    %v2569 = vpack.c.b16 %v1881, %v1873
    %v2570 = vpack.c.b16 %v1882, %v1874
    %v2571 = vpack.c.b16 %v1883, %v1875
    %v2572 = vpack.c.b16 %v1884, %v1876
    %v2573 = vpack.c.b16 %v1893, %v1885
    %v2574 = vpack.c.b16 %v1894, %v1886
    %v2575 = vpack.c.b16 %v1895, %v1887
    %v2576 = vpack.c.b16 %v1896, %v1888
    %v2577 = vpack.c.b16 %v1897, %v1889
    %v2578 = vpack.c.b16 %v1898, %v1890
    %v2579 = vpack.c.b16 %v1899, %v1891
    %v2580 = vpack.c.b16 %v1900, %v1892
    %v2581 = vpack.c.b16 %v1909, %v1901
    %v2582 = vpack.c.b16 %v1910, %v1902
    %v2583 = vpack.c.b16 %v1911, %v1903
    %v2584 = vpack.c.b16 %v1912, %v1904
    %v2585 = vpack.c.b16 %v1913, %v1905
    %v2586 = vpack.c.b16 %v1914, %v1906
    %v2587 = vpack.c.b16 %v1915, %v1907
    %v2588 = vpack.c.b16 %v1916, %v1908
    %v2589 = vpack.c.b16 %v1925, %v1917
    %v2590 = vpack.c.b16 %v1926, %v1918
    %v2591 = vpack.c.b16 %v1927, %v1919
    %v2592 = vpack.c.b16 %v1928, %v1920
    %v2593 = vpack.c.b16 %v1929, %v1921
    %v2594 = vpack.c.b16 %v1930, %v1922
    %v2595 = vpack.c.b16 %v1931, %v1923
    %v2596 = vpack.c.b16 %v1932, %v1924
    %v2597 = vpack.c.b16 %v1941, %v1933
    %v2598 = vpack.c.b16 %v1942, %v1934
    %v2599 = vpack.c.b16 %v1943, %v1935
    %v2600 = vpack.c.b16 %v1944, %v1936
    %v2601 = vpack.c.b16 %v1945, %v1937
    %v2602 = vpack.c.b16 %v1946, %v1938
    %v2603 = vpack.c.b16 %v1947, %v1939
    %v2604 = vpack.c.b16 %v1948, %v1940
    %v2605 = vpack.c.b16 %v1957, %v1949
    %v2606 = vpack.c.b16 %v1958, %v1950
    %v2607 = vpack.c.b16 %v1959, %v1951
    %v2608 = vpack.c.b16 %v1960, %v1952
    %v2609 = vpack.c.b16 %v1961, %v1953
    %v2610 = vpack.c.b16 %v1962, %v1954
    %v2611 = vpack.c.b16 %v1963, %v1955
    %v2612 = vpack.c.b16 %v1964, %v1956
    %v2613 = vpack.c.b16 %v1973, %v1965
    %v2614 = vpack.c.b16 %v1974, %v1966
    %v2615 = vpack.c.b16 %v1975, %v1967
    %v2616 = vpack.c.b16 %v1976, %v1968
    %v2617 = vpack.c.b16 %v1977, %v1969
    %v2618 = vpack.c.b16 %v1978, %v1970
    %v2619 = vpack.c.b16 %v1979, %v1971
    %v2620 = vpack.c.b16 %v1980, %v1972
    %v2621 = vpack.c.b16 %v1989, %v1981
    %v2622 = vpack.c.b16 %v1990, %v1982
    %v2623 = vpack.c.b16 %v1991, %v1983
    %v2624 = vpack.c.b16 %v1992, %v1984
    %v2625 = vpack.c.b16 %v1993, %v1985
    %v2626 = vpack.c.b16 %v1994, %v1986
    %v2627 = vpack.c.b16 %v1995, %v1987
    %v2628 = vpack.c.b16 %v1996, %v1988
    %v2629 = vpack.c.b16 %v2005, %v1997
    %v2630 = vpack.c.b16 %v2006, %v1998
    %v2631 = vpack.c.b16 %v2007, %v1999
    %v2632 = vpack.c.b16 %v2008, %v2000
    %v2633 = vpack.c.b16 %v2009, %v2001
    %v2634 = vpack.c.b16 %v2010, %v2002
    %v2635 = vpack.c.b16 %v2011, %v2003
    %v2636 = vpack.c.b16 %v2012, %v2004
    %v2637 = vpack.c.b16 %v2021, %v2013
    %v2638 = vpack.c.b16 %v2022, %v2014
    %v2639 = vpack.c.b16 %v2023, %v2015
    %v2640 = vpack.c.b16 %v2024, %v2016
    %v2641 = vpack.c.b16 %v2025, %v2017
    %v2642 = vpack.c.b16 %v2026, %v2018
    %v2643 = vpack.c.b16 %v2027, %v2019
    %v2644 = vpack.c.b16 %v2028, %v2020
    %v2645 = vpack.c.b16 %v2037, %v2029
    %v2646 = vpack.c.b16 %v2038, %v2030
    %v2647 = vpack.c.b16 %v2039, %v2031
    %v2648 = vpack.c.b16 %v2040, %v2032
    %v2649 = vpack.c.b16 %v2041, %v2033
    %v2650 = vpack.c.b16 %v2042, %v2034
    %v2651 = vpack.c.b16 %v2043, %v2035
    %v2652 = vpack.c.b16 %v2044, %v2036
    %v2653 = vpack.c.b16 %v2053, %v2045
    %v2654 = vpack.c.b16 %v2054, %v2046
    %v2655 = vpack.c.b16 %v2055, %v2047
    %v2656 = vpack.c.b16 %v2056, %v2048
    %v2657 = vpack.c.b16 %v2057, %v2049
    %v2658 = vpack.c.b16 %v2058, %v2050
    %v2659 = vpack.c.b16 %v2059, %v2051
    %v2660 = vpack.c.b16 %v2060, %v2052
    %v2661 = vpack.c.b16 %v2069, %v2061
    %v2662 = vpack.c.b16 %v2070, %v2062
    %v2663 = vpack.c.b16 %v2071, %v2063
    %v2664 = vpack.c.b16 %v2072, %v2064
    %v2665 = vpack.c.b16 %v2073, %v2065
    %v2666 = vpack.c.b16 %v2074, %v2066
    %v2667 = vpack.c.b16 %v2075, %v2067
    %v2668 = vpack.c.b16 %v2076, %v2068
    %v2669 = vpack.c.b16 %v2085, %v2077
    %v2670 = vpack.c.b16 %v2086, %v2078
    %v2671 = vpack.c.b16 %v2087, %v2079
    %v2672 = vpack.c.b16 %v2088, %v2080
    %v2673 = vpack.c.b16 %v2089, %v2081
    %v2674 = vpack.c.b16 %v2090, %v2082
    %v2675 = vpack.c.b16 %v2091, %v2083
    %v2676 = vpack.c.b16 %v2092, %v2084
    %v2677 = vpack.c.b16 %v2101, %v2093
    %v2678 = vpack.c.b16 %v2102, %v2094
    %v2679 = vpack.c.b16 %v2103, %v2095
    %v2680 = vpack.c.b16 %v2104, %v2096
    %v2681 = vpack.c.b16 %v2105, %v2097
    %v2682 = vpack.c.b16 %v2106, %v2098
    %v2683 = vpack.c.b16 %v2107, %v2099
    %v2684 = vpack.c.b16 %v2108, %v2100
    %v2685 = vpack.c.b16 %v2117, %v2109
    %v2686 = vpack.c.b16 %v2118, %v2110
    %v2687 = vpack.c.b16 %v2119, %v2111
    %v2688 = vpack.c.b16 %v2120, %v2112
    %v2689 = vpack.c.b16 %v2121, %v2113
    %v2690 = vpack.c.b16 %v2122, %v2114
    %v2691 = vpack.c.b16 %v2123, %v2115
    %v2692 = vpack.c.b16 %v2124, %v2116
    %v2693 = vpack.c.b16 %v2133, %v2125
    %v2694 = vpack.c.b16 %v2134, %v2126
    %v2695 = vpack.c.b16 %v2135, %v2127
    %v2696 = vpack.c.b16 %v2136, %v2128
    %v2697 = vpack.c.b16 %v2137, %v2129
    %v2698 = vpack.c.b16 %v2138, %v2130
    %v2699 = vpack.c.b16 %v2139, %v2131
    %v2700 = vpack.c.b16 %v2140, %v2132
    %v2701 = vpack.c.b16 %v2149, %v2141
    %v2702 = vpack.c.b16 %v2150, %v2142
    %v2703 = vpack.c.b16 %v2151, %v2143
    %v2704 = vpack.c.b16 %v2152, %v2144
    %v2705 = vpack.c.b16 %v2153, %v2145
    %v2706 = vpack.c.b16 %v2154, %v2146
    %v2707 = vpack.c.b16 %v2155, %v2147
    %v2708 = vpack.c.b16 %v2156, %v2148
    %v2709 = vpack.c.b16 %v2165, %v2157
    %v2710 = vpack.c.b16 %v2166, %v2158
    %v2711 = vpack.c.b16 %v2167, %v2159
    %v2712 = vpack.c.b16 %v2168, %v2160
    %v2713 = vpack.c.b16 %v2169, %v2161
    %v2714 = vpack.c.b16 %v2170, %v2162
    %v2715 = vpack.c.b16 %v2171, %v2163
    %v2716 = vpack.c.b16 %v2172, %v2164
    %v2717 = vpack.c.b16 %v2181, %v2173
    %v2718 = vpack.c.b16 %v2182, %v2174
    %v2719 = vpack.c.b16 %v2183, %v2175
    %v2720 = vpack.c.b16 %v2184, %v2176
    %v2721 = vpack.c.b16 %v2185, %v2177
    %v2722 = vpack.c.b16 %v2186, %v2178
    %v2723 = vpack.c.b16 %v2187, %v2179
    %v2724 = vpack.c.b16 %v2188, %v2180
    %v2725 = vpack.c.b16 %v2197, %v2189
    %v2726 = vpack.c.b16 %v2198, %v2190
    %v2727 = vpack.c.b16 %v2199, %v2191
    %v2728 = vpack.c.b16 %v2200, %v2192
    %v2729 = vpack.c.b16 %v2201, %v2193
    %v2730 = vpack.c.b16 %v2202, %v2194
    %v2731 = vpack.c.b16 %v2203, %v2195
    %v2732 = vpack.c.b16 %v2204, %v2196
    %v2733 = vpack.c.b16 %v2213, %v2205
    %v2734 = vpack.c.b16 %v2214, %v2206
    %v2735 = vpack.c.b16 %v2215, %v2207
    %v2736 = vpack.c.b16 %v2216, %v2208
    %v2737 = vpack.c.b16 %v2217, %v2209
    %v2738 = vpack.c.b16 %v2218, %v2210
    %v2739 = vpack.c.b16 %v2219, %v2211
    %v2740 = vpack.c.b16 %v2220, %v2212
    %v2741 = vpack.c.b16 %v2229, %v2221
    %v2742 = vpack.c.b16 %v2230, %v2222
    %v2743 = vpack.c.b16 %v2231, %v2223
    %v2744 = vpack.c.b16 %v2232, %v2224
    %v2745 = vpack.c.b16 %v2233, %v2225
    %v2746 = vpack.c.b16 %v2234, %v2226
    %v2747 = vpack.c.b16 %v2235, %v2227
    %v2748 = vpack.c.b16 %v2236, %v2228
    %3261 = vmatprep.subr.bf16.mxu0 %v2238
    %3262 = vmatpush1.bf16.msra.mxu0 %v2237
    %3263 = vmatprep.subr.bf16.mxu0 %v2246
    %3264 = vmatpush1.bf16.msra.mxu0 %v2245
    %3265 = vmatprep.subr.bf16.mxu0 %v2254
    %3266 = vmatpush1.bf16.msra.mxu0 %v2253
    %3267 = vmatprep.subr.bf16.mxu0 %v2262
    %3268 = vmatpush1.bf16.msra.mxu0 %v2261
    %3269 = vmatprep.subr.bf16.mxu0 %v2270
    %3270 = vmatpush1.bf16.msra.mxu0 %v2269
    %3271 = vmatprep.subr.bf16.mxu0 %v2278
    %3272 = vmatpush1.bf16.msra.mxu0 %v2277
    %3273 = vmatprep.subr.bf16.mxu0 %v2286
    %3274 = vmatpush1.bf16.msra.mxu0 %v2285
    %3275 = vmatprep.subr.bf16.mxu0 %v2294
    %3276 = vmatpush1.bf16.msra.mxu0 %v2293
    %3277 = vmatprep.subr.bf16.mxu0 %v2302
    %3278 = vmatpush1.bf16.msra.mxu0 %v2301
    %3279 = vmatprep.subr.bf16.mxu0 %v2310
    %3280 = vmatpush1.bf16.msra.mxu0 %v2309
    %3281 = vmatprep.subr.bf16.mxu0 %v2318
    %3282 = vmatpush1.bf16.msra.mxu0 %v2317
    %3283 = vmatprep.subr.bf16.mxu0 %v2326
    %3284 = vmatpush1.bf16.msra.mxu0 %v2325
    %3285 = vmatprep.subr.bf16.mxu0 %v2334
    %3286 = vmatpush1.bf16.msra.mxu0 %v2333
    %3287 = vmatprep.subr.bf16.mxu0 %v2342
    %3288 = vmatpush1.bf16.msra.mxu0 %v2341
    %3289 = vmatprep.subr.bf16.mxu0 %v2350
    %3290 = vmatpush1.bf16.msra.mxu0 %v2349
    %3291 = vmatprep.subr.bf16.mxu0 %v2358
    %3292 = vmatpush1.bf16.msra.mxu0 %v2357
    %3293 = vmatprep.mubr.bf16.mxu0 %v140
    %3294 = vmatmul.mubr.bf16.gmra.mrb[0].mxu0 %v139
    %v3295 = vpop.f32.mrb[0].mxu0
    %v3296 = vadd.f32 %v664, %v3295
    %v3297 = vpop.f32.mrb[0].mxu0
    %v3298 = vadd.f32 %v668, %v3297
    %v3299 = vpop.f32.mrb[0].mxu0
    %v3300 = vpop.f32.mrb[0].mxu0
    %3301 = vdwg.mxu0
    %3302 = vmatprep.subr.bf16.mxu0 %v2366
    %3303 = vmatpush1.bf16.msra.mxu0 %v2365
    %3304 = vmatprep.subr.bf16.mxu0 %v2374
    %3305 = vmatpush1.bf16.msra.mxu0 %v2373
    %3306 = vmatprep.subr.bf16.mxu0 %v2382
    %3307 = vmatpush1.bf16.msra.mxu0 %v2381
    %3308 = vmatprep.subr.bf16.mxu0 %v2390
    %3309 = vmatpush1.bf16.msra.mxu0 %v2389
    %3310 = vmatprep.subr.bf16.mxu0 %v2398
    %3311 = vmatpush1.bf16.msra.mxu0 %v2397
    %3312 = vmatprep.subr.bf16.mxu0 %v2406
    %3313 = vmatpush1.bf16.msra.mxu0 %v2405
    %3314 = vmatprep.subr.bf16.mxu0 %v2414
    %3315 = vmatpush1.bf16.msra.mxu0 %v2413
    %3316 = vmatprep.subr.bf16.mxu0 %v2422
    %3317 = vmatpush1.bf16.msra.mxu0 %v2421
    %3318 = vmatprep.subr.bf16.mxu0 %v2430
    %3319 = vmatpush1.bf16.msra.mxu0 %v2429
    %3320 = vmatprep.subr.bf16.mxu0 %v2438
    %3321 = vmatpush1.bf16.msra.mxu0 %v2437
    %3322 = vmatprep.subr.bf16.mxu0 %v2446
    %3323 = vmatpush1.bf16.msra.mxu0 %v2445
    %3324 = vmatprep.subr.bf16.mxu0 %v2454
    %3325 = vmatpush1.bf16.msra.mxu0 %v2453
    %3326 = vmatprep.subr.bf16.mxu0 %v2462
    %3327 = vmatpush1.bf16.msra.mxu0 %v2461
    %3328 = vmatprep.subr.bf16.mxu0 %v2470
    %3329 = vmatpush1.bf16.msra.mxu0 %v2469
    %3330 = vmatprep.subr.bf16.mxu0 %v2478
    %3331 = vmatpush1.bf16.msra.mxu0 %v2477
    %3332 = vmatprep.subr.bf16.mxu0 %v2486
    %3333 = vmatpush1.bf16.msra.mxu0 %v2485
    %3334 = vmatprep.mubr.bf16.mxu0 %v142
    %3335 = vmatmul.mubr.bf16.gmra.mrb[0].mxu0 %v141
    %v3336 = vpop.f32.mrb[0].mxu0
    %v3337 = vadd.f32 %v3296, %v3336
    %v3338 = vpop.f32.mrb[0].mxu0
    %v3339 = vadd.f32 %v3298, %v3338
    %v3340 = vpop.f32.mrb[0].mxu0
    %v3341 = vpop.f32.mrb[0].mxu0
    %3342 = vdwg.mxu0
    %3343 = vmatprep.subr.bf16.mxu0 %v2494
    %3344 = vmatpush1.bf16.msra.mxu0 %v2493
    %3345 = vmatprep.subr.bf16.mxu0 %v2502
    %3346 = vmatpush1.bf16.msra.mxu0 %v2501
    %3347 = vmatprep.subr.bf16.mxu0 %v2510
    %3348 = vmatpush1.bf16.msra.mxu0 %v2509
    %3349 = vmatprep.subr.bf16.mxu0 %v2518
    %3350 = vmatpush1.bf16.msra.mxu0 %v2517
    %3351 = vmatprep.subr.bf16.mxu0 %v2526
    %3352 = vmatpush1.bf16.msra.mxu0 %v2525
    %3353 = vmatprep.subr.bf16.mxu0 %v2534
    %3354 = vmatpush1.bf16.msra.mxu0 %v2533
    %3355 = vmatprep.subr.bf16.mxu0 %v2542
    %3356 = vmatpush1.bf16.msra.mxu0 %v2541
    %3357 = vmatprep.subr.bf16.mxu0 %v2550
    %3358 = vmatpush1.bf16.msra.mxu0 %v2549
    %3359 = vmatprep.subr.bf16.mxu0 %v2558
    %3360 = vmatpush1.bf16.msra.mxu0 %v2557
    %3361 = vmatprep.subr.bf16.mxu0 %v2566
    %3362 = vmatpush1.bf16.msra.mxu0 %v2565
    %3363 = vmatprep.subr.bf16.mxu0 %v2574
    %3364 = vmatpush1.bf16.msra.mxu0 %v2573
    %3365 = vmatprep.subr.bf16.mxu0 %v2582
    %3366 = vmatpush1.bf16.msra.mxu0 %v2581
    %3367 = vmatprep.subr.bf16.mxu0 %v2590
    %3368 = vmatpush1.bf16.msra.mxu0 %v2589
    %3369 = vmatprep.subr.bf16.mxu0 %v2598
    %3370 = vmatpush1.bf16.msra.mxu0 %v2597
    %3371 = vmatprep.subr.bf16.mxu0 %v2606
    %3372 = vmatpush1.bf16.msra.mxu0 %v2605
    %3373 = vmatprep.subr.bf16.mxu0 %v2614
    %3374 = vmatpush1.bf16.msra.mxu0 %v2613
    %3375 = vmatprep.mubr.bf16.mxu0 %v144
    %3376 = vmatmul.mubr.bf16.gmra.mrb[0].mxu0 %v143
    %v3377 = vpop.f32.mrb[0].mxu0
    %v3378 = vadd.f32 %v3337, %v3377
    %v3379 = vpop.f32.mrb[0].mxu0
    %v3380 = vadd.f32 %v3339, %v3379
    %v3381 = vpop.f32.mrb[0].mxu0
    %v3382 = vpop.f32.mrb[0].mxu0
    %3383 = vdwg.mxu0
    %3384 = vmatprep.subr.bf16.mxu0 %v2622
    %3385 = vmatpush1.bf16.msra.mxu0 %v2621
    %3386 = vmatprep.subr.bf16.mxu0 %v2630
    %3387 = vmatpush1.bf16.msra.mxu0 %v2629
    %3388 = vmatprep.subr.bf16.mxu0 %v2638
    %3389 = vmatpush1.bf16.msra.mxu0 %v2637
    %3390 = vmatprep.subr.bf16.mxu0 %v2646
    %3391 = vmatpush1.bf16.msra.mxu0 %v2645
    %3392 = vmatprep.subr.bf16.mxu0 %v2654
    %3393 = vmatpush1.bf16.msra.mxu0 %v2653
    %3394 = vmatprep.subr.bf16.mxu0 %v2662
    %3395 = vmatpush1.bf16.msra.mxu0 %v2661
    %3396 = vmatprep.subr.bf16.mxu0 %v2670
    %3397 = vmatpush1.bf16.msra.mxu0 %v2669
    %3398 = vmatprep.subr.bf16.mxu0 %v2678
    %3399 = vmatpush1.bf16.msra.mxu0 %v2677
    %3400 = vmatprep.subr.bf16.mxu0 %v2686
    %3401 = vmatpush1.bf16.msra.mxu0 %v2685
    %3402 = vmatprep.subr.bf16.mxu0 %v2694
    %3403 = vmatpush1.bf16.msra.mxu0 %v2693
    %3404 = vmatprep.subr.bf16.mxu0 %v2702
    %3405 = vmatpush1.bf16.msra.mxu0 %v2701
    %3406 = vmatprep.subr.bf16.mxu0 %v2710
    %3407 = vmatpush1.bf16.msra.mxu0 %v2709
    %3408 = vmatprep.subr.bf16.mxu0 %v2718
    %3409 = vmatpush1.bf16.msra.mxu0 %v2717
    %3410 = vmatprep.subr.bf16.mxu0 %v2726
    %3411 = vmatpush1.bf16.msra.mxu0 %v2725
    %3412 = vmatprep.subr.bf16.mxu0 %v2734
    %3413 = vmatpush1.bf16.msra.mxu0 %v2733
    %3414 = vmatprep.subr.bf16.mxu0 %v2742
    %3415 = vmatpush1.bf16.msra.mxu0 %v2741
    %3416 = vmatprep.mubr.bf16.mxu0 %v146
    %3417 = vmatmul.mubr.bf16.gmra.mrb[0].mxu0 %v145
    %v3418 = vpop.f32.mrb[0].mxu0
    %v3419 = vadd.f32 %v3378, %v3418
    %v3420 = vpop.f32.mrb[0].mxu0
    %v3421 = vadd.f32 %v3380, %v3420
    %v3422 = vpop.f32.mrb[0].mxu0
    %v3423 = vpop.f32.mrb[0].mxu0
    %3424 = vdwg.mxu0
    %3425 = vmatprep.subr.bf16.mxu0 %v2240
    %3426 = vmatpush1.bf16.msra.mxu0 %v2239
    %3427 = vmatprep.subr.bf16.mxu0 %v2248
    %3428 = vmatpush1.bf16.msra.mxu0 %v2247
    %3429 = vmatprep.subr.bf16.mxu0 %v2256
    %3430 = vmatpush1.bf16.msra.mxu0 %v2255
    %3431 = vmatprep.subr.bf16.mxu0 %v2264
    %3432 = vmatpush1.bf16.msra.mxu0 %v2263
    %3433 = vmatprep.subr.bf16.mxu0 %v2272
    %3434 = vmatpush1.bf16.msra.mxu0 %v2271
    %3435 = vmatprep.subr.bf16.mxu0 %v2280
    %3436 = vmatpush1.bf16.msra.mxu0 %v2279
    %3437 = vmatprep.subr.bf16.mxu0 %v2288
    %3438 = vmatpush1.bf16.msra.mxu0 %v2287
    %3439 = vmatprep.subr.bf16.mxu0 %v2296
    %3440 = vmatpush1.bf16.msra.mxu0 %v2295
    %3441 = vmatprep.subr.bf16.mxu0 %v2304
    %3442 = vmatpush1.bf16.msra.mxu0 %v2303
    %3443 = vmatprep.subr.bf16.mxu0 %v2312
    %3444 = vmatpush1.bf16.msra.mxu0 %v2311
    %3445 = vmatprep.subr.bf16.mxu0 %v2320
    %3446 = vmatpush1.bf16.msra.mxu0 %v2319
    %3447 = vmatprep.subr.bf16.mxu0 %v2328
    %3448 = vmatpush1.bf16.msra.mxu0 %v2327
    %3449 = vmatprep.subr.bf16.mxu0 %v2336
    %3450 = vmatpush1.bf16.msra.mxu0 %v2335
    %3451 = vmatprep.subr.bf16.mxu0 %v2344
    %3452 = vmatpush1.bf16.msra.mxu0 %v2343
    %3453 = vmatprep.subr.bf16.mxu0 %v2352
    %3454 = vmatpush1.bf16.msra.mxu0 %v2351
    %3455 = vmatprep.subr.bf16.mxu0 %v2360
    %3456 = vmatpush1.bf16.msra.mxu0 %v2359
    %3457 = vmatprep.mubr.bf16.mxu0 %v140
    %3458 = vmatmul.mubr.bf16.gmra.mrb[0].mxu0 %v139
    %v3459 = vpop.f32.mrb[0].mxu0
    %v3460 = vadd.f32 %v672, %v3459
    %v3461 = vpop.f32.mrb[0].mxu0
    %v3462 = vadd.f32 %v676, %v3461
    %v3463 = vpop.f32.mrb[0].mxu0
    %v3464 = vpop.f32.mrb[0].mxu0
    %3465 = vdwg.mxu0
    %3466 = vmatprep.subr.bf16.mxu0 %v2368
    %3467 = vmatpush1.bf16.msra.mxu0 %v2367
    %3468 = vmatprep.subr.bf16.mxu0 %v2376
    %3469 = vmatpush1.bf16.msra.mxu0 %v2375
    %3470 = vmatprep.subr.bf16.mxu0 %v2384
    %3471 = vmatpush1.bf16.msra.mxu0 %v2383
    %3472 = vmatprep.subr.bf16.mxu0 %v2392
    %3473 = vmatpush1.bf16.msra.mxu0 %v2391
    %3474 = vmatprep.subr.bf16.mxu0 %v2400
    %3475 = vmatpush1.bf16.msra.mxu0 %v2399
    %3476 = vmatprep.subr.bf16.mxu0 %v2408
    %3477 = vmatpush1.bf16.msra.mxu0 %v2407
    %3478 = vmatprep.subr.bf16.mxu0 %v2416
    %3479 = vmatpush1.bf16.msra.mxu0 %v2415
    %3480 = vmatprep.subr.bf16.mxu0 %v2424
    %3481 = vmatpush1.bf16.msra.mxu0 %v2423
    %3482 = vmatprep.subr.bf16.mxu0 %v2432
    %3483 = vmatpush1.bf16.msra.mxu0 %v2431
    %3484 = vmatprep.subr.bf16.mxu0 %v2440
    %3485 = vmatpush1.bf16.msra.mxu0 %v2439
    %3486 = vmatprep.subr.bf16.mxu0 %v2448
    %3487 = vmatpush1.bf16.msra.mxu0 %v2447
    %3488 = vmatprep.subr.bf16.mxu0 %v2456
    %3489 = vmatpush1.bf16.msra.mxu0 %v2455
    %3490 = vmatprep.subr.bf16.mxu0 %v2464
    %3491 = vmatpush1.bf16.msra.mxu0 %v2463
    %3492 = vmatprep.subr.bf16.mxu0 %v2472
    %3493 = vmatpush1.bf16.msra.mxu0 %v2471
    %3494 = vmatprep.subr.bf16.mxu0 %v2480
    %3495 = vmatpush1.bf16.msra.mxu0 %v2479
    %3496 = vmatprep.subr.bf16.mxu0 %v2488
    %3497 = vmatpush1.bf16.msra.mxu0 %v2487
    %3498 = vmatprep.mubr.bf16.mxu0 %v142
    %3499 = vmatmul.mubr.bf16.gmra.mrb[0].mxu0 %v141
    %v3500 = vpop.f32.mrb[0].mxu0
    %v3501 = vadd.f32 %v3460, %v3500
    %v3502 = vpop.f32.mrb[0].mxu0
    %v3503 = vadd.f32 %v3462, %v3502
    %v3504 = vpop.f32.mrb[0].mxu0
    %v3505 = vpop.f32.mrb[0].mxu0
    %3506 = vdwg.mxu0
    %3507 = vmatprep.subr.bf16.mxu0 %v2496
    %3508 = vmatpush1.bf16.msra.mxu0 %v2495
    %3509 = vmatprep.subr.bf16.mxu0 %v2504
    %3510 = vmatpush1.bf16.msra.mxu0 %v2503
    %3511 = vmatprep.subr.bf16.mxu0 %v2512
    %3512 = vmatpush1.bf16.msra.mxu0 %v2511
    %3513 = vmatprep.subr.bf16.mxu0 %v2520
    %3514 = vmatpush1.bf16.msra.mxu0 %v2519
    %3515 = vmatprep.subr.bf16.mxu0 %v2528
    %3516 = vmatpush1.bf16.msra.mxu0 %v2527
    %3517 = vmatprep.subr.bf16.mxu0 %v2536
    %3518 = vmatpush1.bf16.msra.mxu0 %v2535
    %3519 = vmatprep.subr.bf16.mxu0 %v2544
    %3520 = vmatpush1.bf16.msra.mxu0 %v2543
    %3521 = vmatprep.subr.bf16.mxu0 %v2552
    %3522 = vmatpush1.bf16.msra.mxu0 %v2551
    %3523 = vmatprep.subr.bf16.mxu0 %v2560
    %3524 = vmatpush1.bf16.msra.mxu0 %v2559
    %3525 = vmatprep.subr.bf16.mxu0 %v2568
    %3526 = vmatpush1.bf16.msra.mxu0 %v2567
    %3527 = vmatprep.subr.bf16.mxu0 %v2576
    %3528 = vmatpush1.bf16.msra.mxu0 %v2575
    %3529 = vmatprep.subr.bf16.mxu0 %v2584
    %3530 = vmatpush1.bf16.msra.mxu0 %v2583
    %3531 = vmatprep.subr.bf16.mxu0 %v2592
    %3532 = vmatpush1.bf16.msra.mxu0 %v2591
    %3533 = vmatprep.subr.bf16.mxu0 %v2600
    %3534 = vmatpush1.bf16.msra.mxu0 %v2599
    %3535 = vmatprep.subr.bf16.mxu0 %v2608
    %3536 = vmatpush1.bf16.msra.mxu0 %v2607
    %3537 = vmatprep.subr.bf16.mxu0 %v2616
    %3538 = vmatpush1.bf16.msra.mxu0 %v2615
    %3539 = vmatprep.mubr.bf16.mxu0 %v144
    %3540 = vmatmul.mubr.bf16.gmra.mrb[0].mxu0 %v143
    %v3541 = vpop.f32.mrb[0].mxu0
    %v3542 = vadd.f32 %v3501, %v3541
    %v3543 = vpop.f32.mrb[0].mxu0
    %v3544 = vadd.f32 %v3503, %v3543
    %v3545 = vpop.f32.mrb[0].mxu0
    %v3546 = vpop.f32.mrb[0].mxu0
    %3547 = vdwg.mxu0
    %3548 = vmatprep.subr.bf16.mxu0 %v2624
    %3549 = vmatpush1.bf16.msra.mxu0 %v2623
    %3550 = vmatprep.subr.bf16.mxu0 %v2632
    %3551 = vmatpush1.bf16.msra.mxu0 %v2631
    %3552 = vmatprep.subr.bf16.mxu0 %v2640
    %3553 = vmatpush1.bf16.msra.mxu0 %v2639
    %3554 = vmatprep.subr.bf16.mxu0 %v2648
    %3555 = vmatpush1.bf16.msra.mxu0 %v2647
    %3556 = vmatprep.subr.bf16.mxu0 %v2656
    %3557 = vmatpush1.bf16.msra.mxu0 %v2655
    %3558 = vmatprep.subr.bf16.mxu0 %v2664
    %3559 = vmatpush1.bf16.msra.mxu0 %v2663
    %3560 = vmatprep.subr.bf16.mxu0 %v2672
    %3561 = vmatpush1.bf16.msra.mxu0 %v2671
    %3562 = vmatprep.subr.bf16.mxu0 %v2680
    %3563 = vmatpush1.bf16.msra.mxu0 %v2679
    %3564 = vmatprep.subr.bf16.mxu0 %v2688
    %3565 = vmatpush1.bf16.msra.mxu0 %v2687
    %3566 = vmatprep.subr.bf16.mxu0 %v2696
    %3567 = vmatpush1.bf16.msra.mxu0 %v2695
    %3568 = vmatprep.subr.bf16.mxu0 %v2704
    %3569 = vmatpush1.bf16.msra.mxu0 %v2703
    %3570 = vmatprep.subr.bf16.mxu0 %v2712
    %3571 = vmatpush1.bf16.msra.mxu0 %v2711
    %3572 = vmatprep.subr.bf16.mxu0 %v2720
    %3573 = vmatpush1.bf16.msra.mxu0 %v2719
    %3574 = vmatprep.subr.bf16.mxu0 %v2728
    %3575 = vmatpush1.bf16.msra.mxu0 %v2727
    %3576 = vmatprep.subr.bf16.mxu0 %v2736
    %3577 = vmatpush1.bf16.msra.mxu0 %v2735
    %3578 = vmatprep.subr.bf16.mxu0 %v2744
    %3579 = vmatpush1.bf16.msra.mxu0 %v2743
    %3580 = vmatprep.mubr.bf16.mxu0 %v146
    %3581 = vmatmul.mubr.bf16.gmra.mrb[0].mxu0 %v145
    %v3582 = vpop.f32.mrb[0].mxu0
    %v3583 = vadd.f32 %v3542, %v3582
    %v3584 = vpop.f32.mrb[0].mxu0
    %v3585 = vadd.f32 %v3544, %v3584
    %v3586 = vpop.f32.mrb[0].mxu0
    %v3587 = vpop.f32.mrb[0].mxu0
    %3588 = vdwg.mxu0
    %3589 = vmatprep.subr.bf16.mxu0 %v2242
    %3590 = vmatpush1.bf16.msra.mxu0 %v2241
    %3591 = vmatprep.subr.bf16.mxu0 %v2250
    %3592 = vmatpush1.bf16.msra.mxu0 %v2249
    %3593 = vmatprep.subr.bf16.mxu0 %v2258
    %3594 = vmatpush1.bf16.msra.mxu0 %v2257
    %3595 = vmatprep.subr.bf16.mxu0 %v2266
    %3596 = vmatpush1.bf16.msra.mxu0 %v2265
    %3597 = vmatprep.subr.bf16.mxu0 %v2274
    %3598 = vmatpush1.bf16.msra.mxu0 %v2273
    %3599 = vmatprep.subr.bf16.mxu0 %v2282
    %3600 = vmatpush1.bf16.msra.mxu0 %v2281
    %3601 = vmatprep.subr.bf16.mxu0 %v2290
    %3602 = vmatpush1.bf16.msra.mxu0 %v2289
    %3603 = vmatprep.subr.bf16.mxu0 %v2298
    %3604 = vmatpush1.bf16.msra.mxu0 %v2297
    %3605 = vmatprep.subr.bf16.mxu0 %v2306
    %3606 = vmatpush1.bf16.msra.mxu0 %v2305
    %3607 = vmatprep.subr.bf16.mxu0 %v2314
    %3608 = vmatpush1.bf16.msra.mxu0 %v2313
    %3609 = vmatprep.subr.bf16.mxu0 %v2322
    %3610 = vmatpush1.bf16.msra.mxu0 %v2321
    %3611 = vmatprep.subr.bf16.mxu0 %v2330
    %3612 = vmatpush1.bf16.msra.mxu0 %v2329
    %3613 = vmatprep.subr.bf16.mxu0 %v2338
    %3614 = vmatpush1.bf16.msra.mxu0 %v2337
    %3615 = vmatprep.subr.bf16.mxu0 %v2346
    %3616 = vmatpush1.bf16.msra.mxu0 %v2345
    %3617 = vmatprep.subr.bf16.mxu0 %v2354
    %3618 = vmatpush1.bf16.msra.mxu0 %v2353
    %3619 = vmatprep.subr.bf16.mxu0 %v2362
    %3620 = vmatpush1.bf16.msra.mxu0 %v2361
    %3621 = vmatprep.mubr.bf16.mxu0 %v140
    %3622 = vmatmul.mubr.bf16.gmra.mrb[0].mxu0 %v139
    %v3623 = vpop.f32.mrb[0].mxu0
    %v3624 = vadd.f32 %v680, %v3623
    %v3625 = vpop.f32.mrb[0].mxu0
    %v3626 = vadd.f32 %v684, %v3625
    %v3627 = vpop.f32.mrb[0].mxu0
    %v3628 = vpop.f32.mrb[0].mxu0
    %3629 = vdwg.mxu0
    %3630 = vmatprep.subr.bf16.mxu0 %v2370
    %3631 = vmatpush1.bf16.msra.mxu0 %v2369
    %3632 = vmatprep.subr.bf16.mxu0 %v2378
    %3633 = vmatpush1.bf16.msra.mxu0 %v2377
    %3634 = vmatprep.subr.bf16.mxu0 %v2386
    %3635 = vmatpush1.bf16.msra.mxu0 %v2385
    %3636 = vmatprep.subr.bf16.mxu0 %v2394
    %3637 = vmatpush1.bf16.msra.mxu0 %v2393
    %3638 = vmatprep.subr.bf16.mxu0 %v2402
    %3639 = vmatpush1.bf16.msra.mxu0 %v2401
    %3640 = vmatprep.subr.bf16.mxu0 %v2410
    %3641 = vmatpush1.bf16.msra.mxu0 %v2409
    %3642 = vmatprep.subr.bf16.mxu0 %v2418
    %3643 = vmatpush1.bf16.msra.mxu0 %v2417
    %3644 = vmatprep.subr.bf16.mxu0 %v2426
    %3645 = vmatpush1.bf16.msra.mxu0 %v2425
    %3646 = vmatprep.subr.bf16.mxu0 %v2434
    %3647 = vmatpush1.bf16.msra.mxu0 %v2433
    %3648 = vmatprep.subr.bf16.mxu0 %v2442
    %3649 = vmatpush1.bf16.msra.mxu0 %v2441
    %3650 = vmatprep.subr.bf16.mxu0 %v2450
    %3651 = vmatpush1.bf16.msra.mxu0 %v2449
    %3652 = vmatprep.subr.bf16.mxu0 %v2458
    %3653 = vmatpush1.bf16.msra.mxu0 %v2457
    %3654 = vmatprep.subr.bf16.mxu0 %v2466
    %3655 = vmatpush1.bf16.msra.mxu0 %v2465
    %3656 = vmatprep.subr.bf16.mxu0 %v2474
    %3657 = vmatpush1.bf16.msra.mxu0 %v2473
    %3658 = vmatprep.subr.bf16.mxu0 %v2482
    %3659 = vmatpush1.bf16.msra.mxu0 %v2481
    %3660 = vmatprep.subr.bf16.mxu0 %v2490
    %3661 = vmatpush1.bf16.msra.mxu0 %v2489
    %3662 = vmatprep.mubr.bf16.mxu0 %v142
    %3663 = vmatmul.mubr.bf16.gmra.mrb[0].mxu0 %v141
    %v3664 = vpop.f32.mrb[0].mxu0
    %v3665 = vadd.f32 %v3624, %v3664
    %v3666 = vpop.f32.mrb[0].mxu0
    %v3667 = vadd.f32 %v3626, %v3666
    %v3668 = vpop.f32.mrb[0].mxu0
    %v3669 = vpop.f32.mrb[0].mxu0
    %3670 = vdwg.mxu0
    %3671 = vmatprep.subr.bf16.mxu0 %v2498
    %3672 = vmatpush1.bf16.msra.mxu0 %v2497
    %3673 = vmatprep.subr.bf16.mxu0 %v2506
    %3674 = vmatpush1.bf16.msra.mxu0 %v2505
    %3675 = vmatprep.subr.bf16.mxu0 %v2514
    %3676 = vmatpush1.bf16.msra.mxu0 %v2513
    %3677 = vmatprep.subr.bf16.mxu0 %v2522
    %3678 = vmatpush1.bf16.msra.mxu0 %v2521
    %3679 = vmatprep.subr.bf16.mxu0 %v2530
    %3680 = vmatpush1.bf16.msra.mxu0 %v2529
    %3681 = vmatprep.subr.bf16.mxu0 %v2538
    %3682 = vmatpush1.bf16.msra.mxu0 %v2537
    %3683 = vmatprep.subr.bf16.mxu0 %v2546
    %3684 = vmatpush1.bf16.msra.mxu0 %v2545
    %3685 = vmatprep.subr.bf16.mxu0 %v2554
    %3686 = vmatpush1.bf16.msra.mxu0 %v2553
    %3687 = vmatprep.subr.bf16.mxu0 %v2562
    %3688 = vmatpush1.bf16.msra.mxu0 %v2561
    %3689 = vmatprep.subr.bf16.mxu0 %v2570
    %3690 = vmatpush1.bf16.msra.mxu0 %v2569
    %3691 = vmatprep.subr.bf16.mxu0 %v2578
    %3692 = vmatpush1.bf16.msra.mxu0 %v2577
    %3693 = vmatprep.subr.bf16.mxu0 %v2586
    %3694 = vmatpush1.bf16.msra.mxu0 %v2585
    %3695 = vmatprep.subr.bf16.mxu0 %v2594
    %3696 = vmatpush1.bf16.msra.mxu0 %v2593
    %3697 = vmatprep.subr.bf16.mxu0 %v2602
    %3698 = vmatpush1.bf16.msra.mxu0 %v2601
    %3699 = vmatprep.subr.bf16.mxu0 %v2610
    %3700 = vmatpush1.bf16.msra.mxu0 %v2609
    %3701 = vmatprep.subr.bf16.mxu0 %v2618
    %3702 = vmatpush1.bf16.msra.mxu0 %v2617
    %3703 = vmatprep.mubr.bf16.mxu0 %v144
    %3704 = vmatmul.mubr.bf16.gmra.mrb[0].mxu0 %v143
    %v3705 = vpop.f32.mrb[0].mxu0
    %v3706 = vadd.f32 %v3665, %v3705
    %v3707 = vpop.f32.mrb[0].mxu0
    %v3708 = vadd.f32 %v3667, %v3707
    %v3709 = vpop.f32.mrb[0].mxu0
    %v3710 = vpop.f32.mrb[0].mxu0
    %3711 = vdwg.mxu0
    %3712 = vmatprep.subr.bf16.mxu0 %v2626
    %3713 = vmatpush1.bf16.msra.mxu0 %v2625
    %3714 = vmatprep.subr.bf16.mxu0 %v2634
    %3715 = vmatpush1.bf16.msra.mxu0 %v2633
    %3716 = vmatprep.subr.bf16.mxu0 %v2642
    %3717 = vmatpush1.bf16.msra.mxu0 %v2641
    %3718 = vmatprep.subr.bf16.mxu0 %v2650
    %3719 = vmatpush1.bf16.msra.mxu0 %v2649
    %3720 = vmatprep.subr.bf16.mxu0 %v2658
    %3721 = vmatpush1.bf16.msra.mxu0 %v2657
    %3722 = vmatprep.subr.bf16.mxu0 %v2666
    %3723 = vmatpush1.bf16.msra.mxu0 %v2665
    %3724 = vmatprep.subr.bf16.mxu0 %v2674
    %3725 = vmatpush1.bf16.msra.mxu0 %v2673
    %3726 = vmatprep.subr.bf16.mxu0 %v2682
    %3727 = vmatpush1.bf16.msra.mxu0 %v2681
    %3728 = vmatprep.subr.bf16.mxu0 %v2690
    %3729 = vmatpush1.bf16.msra.mxu0 %v2689
    %3730 = vmatprep.subr.bf16.mxu0 %v2698
    %3731 = vmatpush1.bf16.msra.mxu0 %v2697
    %3732 = vmatprep.subr.bf16.mxu0 %v2706
    %3733 = vmatpush1.bf16.msra.mxu0 %v2705
    %3734 = vmatprep.subr.bf16.mxu0 %v2714
    %3735 = vmatpush1.bf16.msra.mxu0 %v2713
    %3736 = vmatprep.subr.bf16.mxu0 %v2722
    %3737 = vmatpush1.bf16.msra.mxu0 %v2721
    %3738 = vmatprep.subr.bf16.mxu0 %v2730
    %3739 = vmatpush1.bf16.msra.mxu0 %v2729
    %3740 = vmatprep.subr.bf16.mxu0 %v2738
    %3741 = vmatpush1.bf16.msra.mxu0 %v2737
    %3742 = vmatprep.subr.bf16.mxu0 %v2746
    %3743 = vmatpush1.bf16.msra.mxu0 %v2745
    %3744 = vmatprep.mubr.bf16.mxu0 %v146
    %3745 = vmatmul.mubr.bf16.gmra.mrb[0].mxu0 %v145
    %v3746 = vpop.f32.mrb[0].mxu0
    %v3747 = vadd.f32 %v3706, %v3746
    %v3748 = vpop.f32.mrb[0].mxu0
    %v3749 = vadd.f32 %v3708, %v3748
    %v3750 = vpop.f32.mrb[0].mxu0
    %v3751 = vpop.f32.mrb[0].mxu0
    %3752 = vdwg.mxu0
    %3753 = vmatprep.subr.bf16.mxu0 %v2244
    %3754 = vmatpush1.bf16.msra.mxu0 %v2243
    %3755 = vmatprep.subr.bf16.mxu0 %v2252
    %3756 = vmatpush1.bf16.msra.mxu0 %v2251
    %3757 = vmatprep.subr.bf16.mxu0 %v2260
    %3758 = vmatpush1.bf16.msra.mxu0 %v2259
    %3759 = vmatprep.subr.bf16.mxu0 %v2268
    %3760 = vmatpush1.bf16.msra.mxu0 %v2267
    %3761 = vmatprep.subr.bf16.mxu0 %v2276
    %3762 = vmatpush1.bf16.msra.mxu0 %v2275
    %3763 = vmatprep.subr.bf16.mxu0 %v2284
    %3764 = vmatpush1.bf16.msra.mxu0 %v2283
    %3765 = vmatprep.subr.bf16.mxu0 %v2292
    %3766 = vmatpush1.bf16.msra.mxu0 %v2291
    %3767 = vmatprep.subr.bf16.mxu0 %v2300
    %3768 = vmatpush1.bf16.msra.mxu0 %v2299
    %3769 = vmatprep.subr.bf16.mxu0 %v2308
    %3770 = vmatpush1.bf16.msra.mxu0 %v2307
    %3771 = vmatprep.subr.bf16.mxu0 %v2316
    %3772 = vmatpush1.bf16.msra.mxu0 %v2315
    %3773 = vmatprep.subr.bf16.mxu0 %v2324
    %3774 = vmatpush1.bf16.msra.mxu0 %v2323
    %3775 = vmatprep.subr.bf16.mxu0 %v2332
    %3776 = vmatpush1.bf16.msra.mxu0 %v2331
    %3777 = vmatprep.subr.bf16.mxu0 %v2340
    %3778 = vmatpush1.bf16.msra.mxu0 %v2339
    %3779 = vmatprep.subr.bf16.mxu0 %v2348
    %3780 = vmatpush1.bf16.msra.mxu0 %v2347
    %3781 = vmatprep.subr.bf16.mxu0 %v2356
    %3782 = vmatpush1.bf16.msra.mxu0 %v2355
    %3783 = vmatprep.subr.bf16.mxu0 %v2364
    %3784 = vmatpush1.bf16.msra.mxu0 %v2363
    %3785 = vmatprep.mubr.bf16.mxu0 %v140
    %3786 = vmatmul.mubr.bf16.gmra.mrb[0].mxu0 %v139
    %v3787 = vpop.f32.mrb[0].mxu0
    %v3788 = vadd.f32 %v688, %v3787
    %v3789 = vpop.f32.mrb[0].mxu0
    %v3790 = vadd.f32 %v692, %v3789
    %v3791 = vpop.f32.mrb[0].mxu0
    %v3792 = vpop.f32.mrb[0].mxu0
    %3793 = vdwg.mxu0
    %3794 = vmatprep.subr.bf16.mxu0 %v2372
    %3795 = vmatpush1.bf16.msra.mxu0 %v2371
    %3796 = vmatprep.subr.bf16.mxu0 %v2380
    %3797 = vmatpush1.bf16.msra.mxu0 %v2379
    %3798 = vmatprep.subr.bf16.mxu0 %v2388
    %3799 = vmatpush1.bf16.msra.mxu0 %v2387
    %3800 = vmatprep.subr.bf16.mxu0 %v2396
    %3801 = vmatpush1.bf16.msra.mxu0 %v2395
    %3802 = vmatprep.subr.bf16.mxu0 %v2404
    %3803 = vmatpush1.bf16.msra.mxu0 %v2403
    %3804 = vmatprep.subr.bf16.mxu0 %v2412
    %3805 = vmatpush1.bf16.msra.mxu0 %v2411
    %3806 = vmatprep.subr.bf16.mxu0 %v2420
    %3807 = vmatpush1.bf16.msra.mxu0 %v2419
    %3808 = vmatprep.subr.bf16.mxu0 %v2428
    %3809 = vmatpush1.bf16.msra.mxu0 %v2427
    %3810 = vmatprep.subr.bf16.mxu0 %v2436
    %3811 = vmatpush1.bf16.msra.mxu0 %v2435
    %3812 = vmatprep.subr.bf16.mxu0 %v2444
    %3813 = vmatpush1.bf16.msra.mxu0 %v2443
    %3814 = vmatprep.subr.bf16.mxu0 %v2452
    %3815 = vmatpush1.bf16.msra.mxu0 %v2451
    %3816 = vmatprep.subr.bf16.mxu0 %v2460
    %3817 = vmatpush1.bf16.msra.mxu0 %v2459
    %3818 = vmatprep.subr.bf16.mxu0 %v2468
    %3819 = vmatpush1.bf16.msra.mxu0 %v2467
    %3820 = vmatprep.subr.bf16.mxu0 %v2476
    %3821 = vmatpush1.bf16.msra.mxu0 %v2475
    %3822 = vmatprep.subr.bf16.mxu0 %v2484
    %3823 = vmatpush1.bf16.msra.mxu0 %v2483
    %3824 = vmatprep.subr.bf16.mxu0 %v2492
    %3825 = vmatpush1.bf16.msra.mxu0 %v2491
    %3826 = vmatprep.mubr.bf16.mxu0 %v142
    %3827 = vmatmul.mubr.bf16.gmra.mrb[0].mxu0 %v141
    %v3828 = vpop.f32.mrb[0].mxu0
    %v3829 = vadd.f32 %v3788, %v3828
    %v3830 = vpop.f32.mrb[0].mxu0
    %v3831 = vadd.f32 %v3790, %v3830
    %v3832 = vpop.f32.mrb[0].mxu0
    %v3833 = vpop.f32.mrb[0].mxu0
    %3834 = vdwg.mxu0
    %3835 = vmatprep.subr.bf16.mxu0 %v2500
    %3836 = vmatpush1.bf16.msra.mxu0 %v2499
    %3837 = vmatprep.subr.bf16.mxu0 %v2508
    %3838 = vmatpush1.bf16.msra.mxu0 %v2507
    %3839 = vmatprep.subr.bf16.mxu0 %v2516
    %3840 = vmatpush1.bf16.msra.mxu0 %v2515
    %3841 = vmatprep.subr.bf16.mxu0 %v2524
    %3842 = vmatpush1.bf16.msra.mxu0 %v2523
    %3843 = vmatprep.subr.bf16.mxu0 %v2532
    %3844 = vmatpush1.bf16.msra.mxu0 %v2531
    %3845 = vmatprep.subr.bf16.mxu0 %v2540
    %3846 = vmatpush1.bf16.msra.mxu0 %v2539
    %3847 = vmatprep.subr.bf16.mxu0 %v2548
    %3848 = vmatpush1.bf16.msra.mxu0 %v2547
    %3849 = vmatprep.subr.bf16.mxu0 %v2556
    %3850 = vmatpush1.bf16.msra.mxu0 %v2555
    %3851 = vmatprep.subr.bf16.mxu0 %v2564
    %3852 = vmatpush1.bf16.msra.mxu0 %v2563
    %3853 = vmatprep.subr.bf16.mxu0 %v2572
    %3854 = vmatpush1.bf16.msra.mxu0 %v2571
    %3855 = vmatprep.subr.bf16.mxu0 %v2580
    %3856 = vmatpush1.bf16.msra.mxu0 %v2579
    %3857 = vmatprep.subr.bf16.mxu0 %v2588
    %3858 = vmatpush1.bf16.msra.mxu0 %v2587
    %3859 = vmatprep.subr.bf16.mxu0 %v2596
    %3860 = vmatpush1.bf16.msra.mxu0 %v2595
    %3861 = vmatprep.subr.bf16.mxu0 %v2604
    %3862 = vmatpush1.bf16.msra.mxu0 %v2603
    %3863 = vmatprep.subr.bf16.mxu0 %v2612
    %3864 = vmatpush1.bf16.msra.mxu0 %v2611
    %3865 = vmatprep.subr.bf16.mxu0 %v2620
    %3866 = vmatpush1.bf16.msra.mxu0 %v2619
    %3867 = vmatprep.mubr.bf16.mxu0 %v144
    %3868 = vmatmul.mubr.bf16.gmra.mrb[0].mxu0 %v143
    %v3869 = vpop.f32.mrb[0].mxu0
    %v3870 = vadd.f32 %v3829, %v3869
    %v3871 = vpop.f32.mrb[0].mxu0
    %v3872 = vadd.f32 %v3831, %v3871
    %v3873 = vpop.f32.mrb[0].mxu0
    %v3874 = vpop.f32.mrb[0].mxu0
    %3875 = vdwg.mxu0
    %3876 = vmatprep.subr.bf16.mxu0 %v2628
    %3877 = vmatpush1.bf16.msra.mxu0 %v2627
    %3878 = vmatprep.subr.bf16.mxu0 %v2636
    %3879 = vmatpush1.bf16.msra.mxu0 %v2635
    %3880 = vmatprep.subr.bf16.mxu0 %v2644
    %3881 = vmatpush1.bf16.msra.mxu0 %v2643
    %3882 = vmatprep.subr.bf16.mxu0 %v2652
    %3883 = vmatpush1.bf16.msra.mxu0 %v2651
    %3884 = vmatprep.subr.bf16.mxu0 %v2660
    %3885 = vmatpush1.bf16.msra.mxu0 %v2659
    %3886 = vmatprep.subr.bf16.mxu0 %v2668
    %3887 = vmatpush1.bf16.msra.mxu0 %v2667
    %3888 = vmatprep.subr.bf16.mxu0 %v2676
    %3889 = vmatpush1.bf16.msra.mxu0 %v2675
    %3890 = vmatprep.subr.bf16.mxu0 %v2684
    %3891 = vmatpush1.bf16.msra.mxu0 %v2683
    %3892 = vmatprep.subr.bf16.mxu0 %v2692
    %3893 = vmatpush1.bf16.msra.mxu0 %v2691
    %3894 = vmatprep.subr.bf16.mxu0 %v2700
    %3895 = vmatpush1.bf16.msra.mxu0 %v2699
    %3896 = vmatprep.subr.bf16.mxu0 %v2708
    %3897 = vmatpush1.bf16.msra.mxu0 %v2707
    %3898 = vmatprep.subr.bf16.mxu0 %v2716
    %3899 = vmatpush1.bf16.msra.mxu0 %v2715
    %3900 = vmatprep.subr.bf16.mxu0 %v2724
    %3901 = vmatpush1.bf16.msra.mxu0 %v2723
    %3902 = vmatprep.subr.bf16.mxu0 %v2732
    %3903 = vmatpush1.bf16.msra.mxu0 %v2731
    %3904 = vmatprep.subr.bf16.mxu0 %v2740
    %3905 = vmatpush1.bf16.msra.mxu0 %v2739
    %3906 = vmatprep.subr.bf16.mxu0 %v2748
    %3907 = vmatpush1.bf16.msra.mxu0 %v2747
    %3908 = vmatprep.mubr.bf16.mxu0 %v146
    %3909 = vmatmul.mubr.bf16.gmra.mrb[0].mxu0 %v145
    %v3910 = vpop.f32.mrb[0].mxu0
    %v3911 = vadd.f32 %v3870, %v3910
    %v3912 = vpop.f32.mrb[0].mxu0
    %v3913 = vadd.f32 %v3872, %v3912
    %v3914 = vpop.f32.mrb[0].mxu0
    %v3915 = vpop.f32.mrb[0].mxu0
    %3916 = vdwg.mxu0
    %v3917 = vpack.c.bf16 %v3419, %v3419
    %v3918 = vpack.c.bf16 %v3421, %v3421
    %v3919 = vpack.c.bf16 %v3583, %v3583
    %v3920 = vpack.c.bf16 %v3585, %v3585
    %v3921 = vpack.c.bf16 %v3747, %v3747
    %v3922 = vpack.c.bf16 %v3749, %v3749
    %v3923 = vpack.c.bf16 %v3911, %v3911
    %v3924 = vpack.c.bf16 %v3913, %v3913
    %v3925 = vld [vmem:[#allocation6] sm:$0xff]
    %v3926 = vld [vmem:[#allocation6 + $0x8] sm:$0xff]
    %v3927 = vld [vmem:[#allocation6 + $0x10] sm:$0xff]
    %v3928 = vld [vmem:[#allocation6 + $0x18] sm:$0xff]
    %v3929 = vld [vmem:[#allocation6 + $0x20] sm:$0xff]
    %v3930 = vld [vmem:[#allocation6 + $0x28] sm:$0xff]
    %v3931 = vld [vmem:[#allocation6 + $0x30] sm:$0xff]
    %v3932 = vld [vmem:[#allocation6 + $0x38] sm:$0xff]
    %v3933 = vld [vmem:[#allocation6 + $0x40] sm:$0xff]
    %v3934 = vld [vmem:[#allocation6 + $0x48] sm:$0xff]
    %v3935 = vld [vmem:[#allocation6 + $0x50] sm:$0xff]
    %v3936 = vld [vmem:[#allocation6 + $0x58] sm:$0xff]
    %v3937 = vld [vmem:[#allocation6 + $0x60] sm:$0xff]
    %v3938 = vld [vmem:[#allocation6 + $0x68] sm:$0xff]
    %v3939 = vld [vmem:[#allocation6 + $0x70] sm:$0xff]
    %v3940 = vld [vmem:[#allocation6 + $0x78] sm:$0xff]
    %v3941 = vld [vmem:[#allocation6 + $0x80] sm:$0xff]
    %v3942 = vld [vmem:[#allocation6 + $0x88] sm:$0xff]
    %v3943 = vld [vmem:[#allocation6 + $0x90] sm:$0xff]
    %v3944 = vld [vmem:[#allocation6 + $0x98] sm:$0xff]
    %v3945 = vld [vmem:[#allocation6 + $0xa0] sm:$0xff]
    %v3946 = vld [vmem:[#allocation6 + $0xa8] sm:$0xff]
    %v3947 = vld [vmem:[#allocation6 + $0xb0] sm:$0xff]
    %v3948 = vld [vmem:[#allocation6 + $0xb8] sm:$0xff]
    %v3949 = vld [vmem:[#allocation6 + $0xc0] sm:$0xff]
    %v3950 = vld [vmem:[#allocation6 + $0xc8] sm:$0xff]
    %v3951 = vld [vmem:[#allocation6 + $0xd0] sm:$0xff]
    %v3952 = vld [vmem:[#allocation6 + $0xd8] sm:$0xff]
    %v3953 = vld [vmem:[#allocation6 + $0xe0] sm:$0xff]
    %v3954 = vld [vmem:[#allocation6 + $0xe8] sm:$0xff]
    %v3955 = vld [vmem:[#allocation6 + $0xf0] sm:$0xff]
    %v3956 = vld [vmem:[#allocation6 + $0xf8] sm:$0xff]
    %v3957 = vld [vmem:[#allocation6 + $0x100] sm:$0xff]
    %v3958 = vld [vmem:[#allocation6 + $0x108] sm:$0xff]
    %v3959 = vld [vmem:[#allocation6 + $0x110] sm:$0xff]
    %v3960 = vld [vmem:[#allocation6 + $0x118] sm:$0xff]
    %v3961 = vld [vmem:[#allocation6 + $0x120] sm:$0xff]
    %v3962 = vld [vmem:[#allocation6 + $0x128] sm:$0xff]
    %v3963 = vld [vmem:[#allocation6 + $0x130] sm:$0xff]
    %v3964 = vld [vmem:[#allocation6 + $0x138] sm:$0xff]
    %v3965 = vld [vmem:[#allocation6 + $0x140] sm:$0xff]
    %v3966 = vld [vmem:[#allocation6 + $0x148] sm:$0xff]
    %v3967 = vld [vmem:[#allocation6 + $0x150] sm:$0xff]
    %v3968 = vld [vmem:[#allocation6 + $0x158] sm:$0xff]
    %v3969 = vld [vmem:[#allocation6 + $0x160] sm:$0xff]
    %v3970 = vld [vmem:[#allocation6 + $0x168] sm:$0xff]
    %v3971 = vld [vmem:[#allocation6 + $0x170] sm:$0xff]
    %v3972 = vld [vmem:[#allocation6 + $0x178] sm:$0xff]
    %v3973 = vld [vmem:[#allocation6 + $0x180] sm:$0xff]
    %v3974 = vld [vmem:[#allocation6 + $0x188] sm:$0xff]
    %v3975 = vld [vmem:[#allocation6 + $0x190] sm:$0xff]
    %v3976 = vld [vmem:[#allocation6 + $0x198] sm:$0xff]
    %v3977 = vld [vmem:[#allocation6 + $0x1a0] sm:$0xff]
    %v3978 = vld [vmem:[#allocation6 + $0x1a8] sm:$0xff]
    %v3979 = vld [vmem:[#allocation6 + $0x1b0] sm:$0xff]
    %v3980 = vld [vmem:[#allocation6 + $0x1b8] sm:$0xff]
    %v3981 = vld [vmem:[#allocation6 + $0x1c0] sm:$0xff]
    %v3982 = vld [vmem:[#allocation6 + $0x1c8] sm:$0xff]
    %v3983 = vld [vmem:[#allocation6 + $0x1d0] sm:$0xff]
    %v3984 = vld [vmem:[#allocation6 + $0x1d8] sm:$0xff]
    %v3985 = vld [vmem:[#allocation6 + $0x1e0] sm:$0xff]
    %v3986 = vld [vmem:[#allocation6 + $0x1e8] sm:$0xff]
    %v3987 = vld [vmem:[#allocation6 + $0x1f0] sm:$0xff]
    %v3988 = vld [vmem:[#allocation6 + $0x1f8] sm:$0xff]
    %v3989 = vld [vmem:[#allocation6 + $0x200] sm:$0xff]
    %v3990 = vld [vmem:[#allocation6 + $0x208] sm:$0xff]
    %v3991 = vld [vmem:[#allocation6 + $0x210] sm:$0xff]
    %v3992 = vld [vmem:[#allocation6 + $0x218] sm:$0xff]
    %v3993 = vld [vmem:[#allocation6 + $0x220] sm:$0xff]
    %v3994 = vld [vmem:[#allocation6 + $0x228] sm:$0xff]
    %v3995 = vld [vmem:[#allocation6 + $0x230] sm:$0xff]
    %v3996 = vld [vmem:[#allocation6 + $0x238] sm:$0xff]
    %v3997 = vld [vmem:[#allocation6 + $0x240] sm:$0xff]
    %v3998 = vld [vmem:[#allocation6 + $0x248] sm:$0xff]
    %v3999 = vld [vmem:[#allocation6 + $0x250] sm:$0xff]
    %v4000 = vld [vmem:[#allocation6 + $0x258] sm:$0xff]
    %v4001 = vld [vmem:[#allocation6 + $0x260] sm:$0xff]
    %v4002 = vld [vmem:[#allocation6 + $0x268] sm:$0xff]
    %v4003 = vld [vmem:[#allocation6 + $0x270] sm:$0xff]
    %v4004 = vld [vmem:[#allocation6 + $0x278] sm:$0xff]
    %v4005 = vld [vmem:[#allocation6 + $0x280] sm:$0xff]
    %v4006 = vld [vmem:[#allocation6 + $0x288] sm:$0xff]
    %v4007 = vld [vmem:[#allocation6 + $0x290] sm:$0xff]
    %v4008 = vld [vmem:[#allocation6 + $0x298] sm:$0xff]
    %v4009 = vld [vmem:[#allocation6 + $0x2a0] sm:$0xff]
    %v4010 = vld [vmem:[#allocation6 + $0x2a8] sm:$0xff]
    %v4011 = vld [vmem:[#allocation6 + $0x2b0] sm:$0xff]
    %v4012 = vld [vmem:[#allocation6 + $0x2b8] sm:$0xff]
    %v4013 = vld [vmem:[#allocation6 + $0x2c0] sm:$0xff]
    %v4014 = vld [vmem:[#allocation6 + $0x2c8] sm:$0xff]
    %v4015 = vld [vmem:[#allocation6 + $0x2d0] sm:$0xff]
    %v4016 = vld [vmem:[#allocation6 + $0x2d8] sm:$0xff]
    %v4017 = vld [vmem:[#allocation6 + $0x2e0] sm:$0xff]
    %v4018 = vld [vmem:[#allocation6 + $0x2e8] sm:$0xff]
    %v4019 = vld [vmem:[#allocation6 + $0x2f0] sm:$0xff]
    %v4020 = vld [vmem:[#allocation6 + $0x2f8] sm:$0xff]
    %v4021 = vld [vmem:[#allocation6 + $0x300] sm:$0xff]
    %v4022 = vld [vmem:[#allocation6 + $0x308] sm:$0xff]
    %v4023 = vld [vmem:[#allocation6 + $0x310] sm:$0xff]
    %v4024 = vld [vmem:[#allocation6 + $0x318] sm:$0xff]
    %v4025 = vld [vmem:[#allocation6 + $0x320] sm:$0xff]
    %v4026 = vld [vmem:[#allocation6 + $0x328] sm:$0xff]
    %v4027 = vld [vmem:[#allocation6 + $0x330] sm:$0xff]
    %v4028 = vld [vmem:[#allocation6 + $0x338] sm:$0xff]
    %v4029 = vld [vmem:[#allocation6 + $0x340] sm:$0xff]
    %v4030 = vld [vmem:[#allocation6 + $0x348] sm:$0xff]
    %v4031 = vld [vmem:[#allocation6 + $0x350] sm:$0xff]
    %v4032 = vld [vmem:[#allocation6 + $0x358] sm:$0xff]
    %v4033 = vld [vmem:[#allocation6 + $0x360] sm:$0xff]
    %v4034 = vld [vmem:[#allocation6 + $0x368] sm:$0xff]
    %v4035 = vld [vmem:[#allocation6 + $0x370] sm:$0xff]
    %v4036 = vld [vmem:[#allocation6 + $0x378] sm:$0xff]
    %v4037 = vld [vmem:[#allocation6 + $0x380] sm:$0xff]
    %v4038 = vld [vmem:[#allocation6 + $0x388] sm:$0xff]
    %v4039 = vld [vmem:[#allocation6 + $0x390] sm:$0xff]
    %v4040 = vld [vmem:[#allocation6 + $0x398] sm:$0xff]
    %v4041 = vld [vmem:[#allocation6 + $0x3a0] sm:$0xff]
    %v4042 = vld [vmem:[#allocation6 + $0x3a8] sm:$0xff]
    %v4043 = vld [vmem:[#allocation6 + $0x3b0] sm:$0xff]
    %v4044 = vld [vmem:[#allocation6 + $0x3b8] sm:$0xff]
    %v4045 = vld [vmem:[#allocation6 + $0x3c0] sm:$0xff]
    %v4046 = vld [vmem:[#allocation6 + $0x3c8] sm:$0xff]
    %v4047 = vld [vmem:[#allocation6 + $0x3d0] sm:$0xff]
    %v4048 = vld [vmem:[#allocation6 + $0x3d8] sm:$0xff]
    %v4049 = vld [vmem:[#allocation6 + $0x3e0] sm:$0xff]
    %v4050 = vld [vmem:[#allocation6 + $0x3e8] sm:$0xff]
    %v4051 = vld [vmem:[#allocation6 + $0x3f0] sm:$0xff]
    %v4052 = vld [vmem:[#allocation6 + $0x3f8] sm:$0xff]
    %v4053 = vld [vmem:[#allocation6 + $0x400] sm:$0xff]
    %v4054 = vld [vmem:[#allocation6 + $0x408] sm:$0xff]
    %v4055 = vld [vmem:[#allocation6 + $0x410] sm:$0xff]
    %v4056 = vld [vmem:[#allocation6 + $0x418] sm:$0xff]
    %v4057 = vld [vmem:[#allocation6 + $0x420] sm:$0xff]
    %v4058 = vld [vmem:[#allocation6 + $0x428] sm:$0xff]
    %v4059 = vld [vmem:[#allocation6 + $0x430] sm:$0xff]
    %v4060 = vld [vmem:[#allocation6 + $0x438] sm:$0xff]
    %v4061 = vld [vmem:[#allocation6 + $0x440] sm:$0xff]
    %v4062 = vld [vmem:[#allocation6 + $0x448] sm:$0xff]
    %v4063 = vld [vmem:[#allocation6 + $0x450] sm:$0xff]
    %v4064 = vld [vmem:[#allocation6 + $0x458] sm:$0xff]
    %v4065 = vld [vmem:[#allocation6 + $0x460] sm:$0xff]
    %v4066 = vld [vmem:[#allocation6 + $0x468] sm:$0xff]
    %v4067 = vld [vmem:[#allocation6 + $0x470] sm:$0xff]
    %v4068 = vld [vmem:[#allocation6 + $0x478] sm:$0xff]
    %v4069 = vld [vmem:[#allocation6 + $0x480] sm:$0xff]
    %v4070 = vld [vmem:[#allocation6 + $0x488] sm:$0xff]
    %v4071 = vld [vmem:[#allocation6 + $0x490] sm:$0xff]
    %v4072 = vld [vmem:[#allocation6 + $0x498] sm:$0xff]
    %v4073 = vld [vmem:[#allocation6 + $0x4a0] sm:$0xff]
    %v4074 = vld [vmem:[#allocation6 + $0x4a8] sm:$0xff]
    %v4075 = vld [vmem:[#allocation6 + $0x4b0] sm:$0xff]
    %v4076 = vld [vmem:[#allocation6 + $0x4b8] sm:$0xff]
    %v4077 = vld [vmem:[#allocation6 + $0x4c0] sm:$0xff]
    %v4078 = vld [vmem:[#allocation6 + $0x4c8] sm:$0xff]
    %v4079 = vld [vmem:[#allocation6 + $0x4d0] sm:$0xff]
    %v4080 = vld [vmem:[#allocation6 + $0x4d8] sm:$0xff]
    %v4081 = vld [vmem:[#allocation6 + $0x4e0] sm:$0xff]
    %v4082 = vld [vmem:[#allocation6 + $0x4e8] sm:$0xff]
    %v4083 = vld [vmem:[#allocation6 + $0x4f0] sm:$0xff]
    %v4084 = vld [vmem:[#allocation6 + $0x4f8] sm:$0xff]
    %v4085 = vld [vmem:[#allocation6 + $0x500] sm:$0xff]
    %v4086 = vld [vmem:[#allocation6 + $0x508] sm:$0xff]
    %v4087 = vld [vmem:[#allocation6 + $0x510] sm:$0xff]
    %v4088 = vld [vmem:[#allocation6 + $0x518] sm:$0xff]
    %v4089 = vld [vmem:[#allocation6 + $0x520] sm:$0xff]
    %v4090 = vld [vmem:[#allocation6 + $0x528] sm:$0xff]
    %v4091 = vld [vmem:[#allocation6 + $0x530] sm:$0xff]
    %v4092 = vld [vmem:[#allocation6 + $0x538] sm:$0xff]
    %v4093 = vld [vmem:[#allocation6 + $0x540] sm:$0xff]
    %v4094 = vld [vmem:[#allocation6 + $0x548] sm:$0xff]
    %v4095 = vld [vmem:[#allocation6 + $0x550] sm:$0xff]
    %v4096 = vld [vmem:[#allocation6 + $0x558] sm:$0xff]
    %v4097 = vld [vmem:[#allocation6 + $0x560] sm:$0xff]
    %v4098 = vld [vmem:[#allocation6 + $0x568] sm:$0xff]
    %v4099 = vld [vmem:[#allocation6 + $0x570] sm:$0xff]
    %v4100 = vld [vmem:[#allocation6 + $0x578] sm:$0xff]
    %v4101 = vld [vmem:[#allocation6 + $0x580] sm:$0xff]
    %v4102 = vld [vmem:[#allocation6 + $0x588] sm:$0xff]
    %v4103 = vld [vmem:[#allocation6 + $0x590] sm:$0xff]
    %v4104 = vld [vmem:[#allocation6 + $0x598] sm:$0xff]
    %v4105 = vld [vmem:[#allocation6 + $0x5a0] sm:$0xff]
    %v4106 = vld [vmem:[#allocation6 + $0x5a8] sm:$0xff]
    %v4107 = vld [vmem:[#allocation6 + $0x5b0] sm:$0xff]
    %v4108 = vld [vmem:[#allocation6 + $0x5b8] sm:$0xff]
    %v4109 = vld [vmem:[#allocation6 + $0x5c0] sm:$0xff]
    %v4110 = vld [vmem:[#allocation6 + $0x5c8] sm:$0xff]
    %v4111 = vld [vmem:[#allocation6 + $0x5d0] sm:$0xff]
    %v4112 = vld [vmem:[#allocation6 + $0x5d8] sm:$0xff]
    %v4113 = vld [vmem:[#allocation6 + $0x5e0] sm:$0xff]
    %v4114 = vld [vmem:[#allocation6 + $0x5e8] sm:$0xff]
    %v4115 = vld [vmem:[#allocation6 + $0x5f0] sm:$0xff]
    %v4116 = vld [vmem:[#allocation6 + $0x5f8] sm:$0xff]
    %v4117 = vld [vmem:[#allocation6 + $0x600] sm:$0xff]
    %v4118 = vld [vmem:[#allocation6 + $0x608] sm:$0xff]
    %v4119 = vld [vmem:[#allocation6 + $0x610] sm:$0xff]
    %v4120 = vld [vmem:[#allocation6 + $0x618] sm:$0xff]
    %v4121 = vld [vmem:[#allocation6 + $0x620] sm:$0xff]
    %v4122 = vld [vmem:[#allocation6 + $0x628] sm:$0xff]
    %v4123 = vld [vmem:[#allocation6 + $0x630] sm:$0xff]
    %v4124 = vld [vmem:[#allocation6 + $0x638] sm:$0xff]
    %v4125 = vld [vmem:[#allocation6 + $0x640] sm:$0xff]
    %v4126 = vld [vmem:[#allocation6 + $0x648] sm:$0xff]
    %v4127 = vld [vmem:[#allocation6 + $0x650] sm:$0xff]
    %v4128 = vld [vmem:[#allocation6 + $0x658] sm:$0xff]
    %v4129 = vld [vmem:[#allocation6 + $0x660] sm:$0xff]
    %v4130 = vld [vmem:[#allocation6 + $0x668] sm:$0xff]
    %v4131 = vld [vmem:[#allocation6 + $0x670] sm:$0xff]
    %v4132 = vld [vmem:[#allocation6 + $0x678] sm:$0xff]
    %v4133 = vld [vmem:[#allocation6 + $0x680] sm:$0xff]
    %v4134 = vld [vmem:[#allocation6 + $0x688] sm:$0xff]
    %v4135 = vld [vmem:[#allocation6 + $0x690] sm:$0xff]
    %v4136 = vld [vmem:[#allocation6 + $0x698] sm:$0xff]
    %v4137 = vld [vmem:[#allocation6 + $0x6a0] sm:$0xff]
    %v4138 = vld [vmem:[#allocation6 + $0x6a8] sm:$0xff]
    %v4139 = vld [vmem:[#allocation6 + $0x6b0] sm:$0xff]
    %v4140 = vld [vmem:[#allocation6 + $0x6b8] sm:$0xff]
    %v4141 = vld [vmem:[#allocation6 + $0x6c0] sm:$0xff]
    %v4142 = vld [vmem:[#allocation6 + $0x6c8] sm:$0xff]
    %v4143 = vld [vmem:[#allocation6 + $0x6d0] sm:$0xff]
    %v4144 = vld [vmem:[#allocation6 + $0x6d8] sm:$0xff]
    %v4145 = vld [vmem:[#allocation6 + $0x6e0] sm:$0xff]
    %v4146 = vld [vmem:[#allocation6 + $0x6e8] sm:$0xff]
    %v4147 = vld [vmem:[#allocation6 + $0x6f0] sm:$0xff]
    %v4148 = vld [vmem:[#allocation6 + $0x6f8] sm:$0xff]
    %v4149 = vld [vmem:[#allocation6 + $0x700] sm:$0xff]
    %v4150 = vld [vmem:[#allocation6 + $0x708] sm:$0xff]
    %v4151 = vld [vmem:[#allocation6 + $0x710] sm:$0xff]
    %v4152 = vld [vmem:[#allocation6 + $0x718] sm:$0xff]
    %v4153 = vld [vmem:[#allocation6 + $0x720] sm:$0xff]
    %v4154 = vld [vmem:[#allocation6 + $0x728] sm:$0xff]
    %v4155 = vld [vmem:[#allocation6 + $0x730] sm:$0xff]
    %v4156 = vld [vmem:[#allocation6 + $0x738] sm:$0xff]
    %v4157 = vld [vmem:[#allocation6 + $0x740] sm:$0xff]
    %v4158 = vld [vmem:[#allocation6 + $0x748] sm:$0xff]
    %v4159 = vld [vmem:[#allocation6 + $0x750] sm:$0xff]
    %v4160 = vld [vmem:[#allocation6 + $0x758] sm:$0xff]
    %v4161 = vld [vmem:[#allocation6 + $0x760] sm:$0xff]
    %v4162 = vld [vmem:[#allocation6 + $0x768] sm:$0xff]
    %v4163 = vld [vmem:[#allocation6 + $0x770] sm:$0xff]
    %v4164 = vld [vmem:[#allocation6 + $0x778] sm:$0xff]
    %v4165 = vld [vmem:[#allocation6 + $0x780] sm:$0xff]
    %v4166 = vld [vmem:[#allocation6 + $0x788] sm:$0xff]
    %v4167 = vld [vmem:[#allocation6 + $0x790] sm:$0xff]
    %v4168 = vld [vmem:[#allocation6 + $0x798] sm:$0xff]
    %v4169 = vld [vmem:[#allocation6 + $0x7a0] sm:$0xff]
    %v4170 = vld [vmem:[#allocation6 + $0x7a8] sm:$0xff]
    %v4171 = vld [vmem:[#allocation6 + $0x7b0] sm:$0xff]
    %v4172 = vld [vmem:[#allocation6 + $0x7b8] sm:$0xff]
    %v4173 = vld [vmem:[#allocation6 + $0x7c0] sm:$0xff]
    %v4174 = vld [vmem:[#allocation6 + $0x7c8] sm:$0xff]
    %v4175 = vld [vmem:[#allocation6 + $0x7d0] sm:$0xff]
    %v4176 = vld [vmem:[#allocation6 + $0x7d8] sm:$0xff]
    %v4177 = vld [vmem:[#allocation6 + $0x7e0] sm:$0xff]
    %v4178 = vld [vmem:[#allocation6 + $0x7e8] sm:$0xff]
    %v4179 = vld [vmem:[#allocation6 + $0x7f0] sm:$0xff]
    %v4180 = vld [vmem:[#allocation6 + $0x7f8] sm:$0xff]
    %v4181 = vld [vmem:[#allocation7] sm:$0xf]
    %v4183 = vlaneseq
    %v4184 = vshrl.u32 %v4183, 7
    %v4185 = vsub.s32 0, %v4184
    %v4186 = vrot.slane %v4181, %v4185
    %v4187 = vlaneseq
    %v4188 = vshrl.u32 %v4187, 7
    %v4189 = vsub.s32 1, %v4188
    %v4190 = vrot.slane %v4181, %v4189
    %v4191 = vlaneseq
    %v4192 = vshrl.u32 %v4191, 7
    %v4193 = vsub.s32 2, %v4192
    %v4194 = vrot.slane %v4181, %v4193
    %v4195 = vlaneseq
    %v4196 = vshrl.u32 %v4195, 7
    %v4197 = vsub.s32 3, %v4196
    %v4198 = vrot.slane %v4181, %v4197
    %v4459 = vunpack.c.l.b16 %v3925
    %v4460 = vunpack.c.h.b16 %v3925
    %v4461 = vunpack.c.l.b16 %v3926
    %v4462 = vunpack.c.h.b16 %v3926
    %v4463 = vunpack.c.l.b16 %v3927
    %v4464 = vunpack.c.h.b16 %v3927
    %v4465 = vunpack.c.l.b16 %v3928
    %v4466 = vunpack.c.h.b16 %v3928
    %v4467 = vunpack.c.l.b16 %v3929
    %v4468 = vunpack.c.h.b16 %v3929
    %v4469 = vunpack.c.l.b16 %v3930
    %v4470 = vunpack.c.h.b16 %v3930
    %v4471 = vunpack.c.l.b16 %v3931
    %v4472 = vunpack.c.h.b16 %v3931
    %v4473 = vunpack.c.l.b16 %v3932
    %v4474 = vunpack.c.h.b16 %v3932
    %v4475 = vunpack.c.l.b16 %v3933
    %v4476 = vunpack.c.h.b16 %v3933
    %v4477 = vunpack.c.l.b16 %v3934
    %v4478 = vunpack.c.h.b16 %v3934
    %v4479 = vunpack.c.l.b16 %v3935
    %v4480 = vunpack.c.h.b16 %v3935
    %v4481 = vunpack.c.l.b16 %v3936
    %v4482 = vunpack.c.h.b16 %v3936
    %v4483 = vunpack.c.l.b16 %v3937
    %v4484 = vunpack.c.h.b16 %v3937
    %v4485 = vunpack.c.l.b16 %v3938
    %v4486 = vunpack.c.h.b16 %v3938
    %v4487 = vunpack.c.l.b16 %v3939
    %v4488 = vunpack.c.h.b16 %v3939
    %v4489 = vunpack.c.l.b16 %v3940
    %v4490 = vunpack.c.h.b16 %v3940
    %v4491 = vunpack.c.l.b16 %v3941
    %v4492 = vunpack.c.h.b16 %v3941
    %v4493 = vunpack.c.l.b16 %v3942
    %v4494 = vunpack.c.h.b16 %v3942
    %v4495 = vunpack.c.l.b16 %v3943
    %v4496 = vunpack.c.h.b16 %v3943
    %v4497 = vunpack.c.l.b16 %v3944
    %v4498 = vunpack.c.h.b16 %v3944
    %v4499 = vunpack.c.l.b16 %v3945
    %v4500 = vunpack.c.h.b16 %v3945
    %v4501 = vunpack.c.l.b16 %v3946
    %v4502 = vunpack.c.h.b16 %v3946
    %v4503 = vunpack.c.l.b16 %v3947
    %v4504 = vunpack.c.h.b16 %v3947
    %v4505 = vunpack.c.l.b16 %v3948
    %v4506 = vunpack.c.h.b16 %v3948
    %v4507 = vunpack.c.l.b16 %v3949
    %v4508 = vunpack.c.h.b16 %v3949
    %v4509 = vunpack.c.l.b16 %v3950
    %v4510 = vunpack.c.h.b16 %v3950
    %v4511 = vunpack.c.l.b16 %v3951
    %v4512 = vunpack.c.h.b16 %v3951
    %v4513 = vunpack.c.l.b16 %v3952
    %v4514 = vunpack.c.h.b16 %v3952
    %v4515 = vunpack.c.l.b16 %v3953
    %v4516 = vunpack.c.h.b16 %v3953
    %v4517 = vunpack.c.l.b16 %v3954
    %v4518 = vunpack.c.h.b16 %v3954
    %v4519 = vunpack.c.l.b16 %v3955
    %v4520 = vunpack.c.h.b16 %v3955
    %v4521 = vunpack.c.l.b16 %v3956
    %v4522 = vunpack.c.h.b16 %v3956
    %v4523 = vunpack.c.l.b16 %v3957
    %v4524 = vunpack.c.h.b16 %v3957
    %v4525 = vunpack.c.l.b16 %v3958
    %v4526 = vunpack.c.h.b16 %v3958
    %v4527 = vunpack.c.l.b16 %v3959
    %v4528 = vunpack.c.h.b16 %v3959
    %v4529 = vunpack.c.l.b16 %v3960
    %v4530 = vunpack.c.h.b16 %v3960
    %v4531 = vunpack.c.l.b16 %v3961
    %v4532 = vunpack.c.h.b16 %v3961
    %v4533 = vunpack.c.l.b16 %v3962
    %v4534 = vunpack.c.h.b16 %v3962
    %v4535 = vunpack.c.l.b16 %v3963
    %v4536 = vunpack.c.h.b16 %v3963
    %v4537 = vunpack.c.l.b16 %v3964
    %v4538 = vunpack.c.h.b16 %v3964
    %v4539 = vunpack.c.l.b16 %v3965
    %v4540 = vunpack.c.h.b16 %v3965
    %v4541 = vunpack.c.l.b16 %v3966
    %v4542 = vunpack.c.h.b16 %v3966
    %v4543 = vunpack.c.l.b16 %v3967
    %v4544 = vunpack.c.h.b16 %v3967
    %v4545 = vunpack.c.l.b16 %v3968
    %v4546 = vunpack.c.h.b16 %v3968
    %v4547 = vunpack.c.l.b16 %v3969
    %v4548 = vunpack.c.h.b16 %v3969
    %v4549 = vunpack.c.l.b16 %v3970
    %v4550 = vunpack.c.h.b16 %v3970
    %v4551 = vunpack.c.l.b16 %v3971
    %v4552 = vunpack.c.h.b16 %v3971
    %v4553 = vunpack.c.l.b16 %v3972
    %v4554 = vunpack.c.h.b16 %v3972
    %v4555 = vunpack.c.l.b16 %v3973
    %v4556 = vunpack.c.h.b16 %v3973
    %v4557 = vunpack.c.l.b16 %v3974
    %v4558 = vunpack.c.h.b16 %v3974
    %v4559 = vunpack.c.l.b16 %v3975
    %v4560 = vunpack.c.h.b16 %v3975
    %v4561 = vunpack.c.l.b16 %v3976
    %v4562 = vunpack.c.h.b16 %v3976
    %v4563 = vunpack.c.l.b16 %v3977
    %v4564 = vunpack.c.h.b16 %v3977
    %v4565 = vunpack.c.l.b16 %v3978
    %v4566 = vunpack.c.h.b16 %v3978
    %v4567 = vunpack.c.l.b16 %v3979
    %v4568 = vunpack.c.h.b16 %v3979
    %v4569 = vunpack.c.l.b16 %v3980
    %v4570 = vunpack.c.h.b16 %v3980
    %v4571 = vunpack.c.l.b16 %v3981
    %v4572 = vunpack.c.h.b16 %v3981
    %v4573 = vunpack.c.l.b16 %v3982
    %v4574 = vunpack.c.h.b16 %v3982
    %v4575 = vunpack.c.l.b16 %v3983
    %v4576 = vunpack.c.h.b16 %v3983
    %v4577 = vunpack.c.l.b16 %v3984
    %v4578 = vunpack.c.h.b16 %v3984
    %v4579 = vunpack.c.l.b16 %v3985
    %v4580 = vunpack.c.h.b16 %v3985
    %v4581 = vunpack.c.l.b16 %v3986
    %v4582 = vunpack.c.h.b16 %v3986
    %v4583 = vunpack.c.l.b16 %v3987
    %v4584 = vunpack.c.h.b16 %v3987
    %v4585 = vunpack.c.l.b16 %v3988
    %v4586 = vunpack.c.h.b16 %v3988
    %v4587 = vunpack.c.l.b16 %v3989
    %v4588 = vunpack.c.h.b16 %v3989
    %v4589 = vunpack.c.l.b16 %v3990
    %v4590 = vunpack.c.h.b16 %v3990
    %v4591 = vunpack.c.l.b16 %v3991
    %v4592 = vunpack.c.h.b16 %v3991
    %v4593 = vunpack.c.l.b16 %v3992
    %v4594 = vunpack.c.h.b16 %v3992
    %v4595 = vunpack.c.l.b16 %v3993
    %v4596 = vunpack.c.h.b16 %v3993
    %v4597 = vunpack.c.l.b16 %v3994
    %v4598 = vunpack.c.h.b16 %v3994
    %v4599 = vunpack.c.l.b16 %v3995
    %v4600 = vunpack.c.h.b16 %v3995
    %v4601 = vunpack.c.l.b16 %v3996
    %v4602 = vunpack.c.h.b16 %v3996
    %v4603 = vunpack.c.l.b16 %v3997
    %v4604 = vunpack.c.h.b16 %v3997
    %v4605 = vunpack.c.l.b16 %v3998
    %v4606 = vunpack.c.h.b16 %v3998
    %v4607 = vunpack.c.l.b16 %v3999
    %v4608 = vunpack.c.h.b16 %v3999
    %v4609 = vunpack.c.l.b16 %v4000
    %v4610 = vunpack.c.h.b16 %v4000
    %v4611 = vunpack.c.l.b16 %v4001
    %v4612 = vunpack.c.h.b16 %v4001
    %v4613 = vunpack.c.l.b16 %v4002
    %v4614 = vunpack.c.h.b16 %v4002
    %v4615 = vunpack.c.l.b16 %v4003
    %v4616 = vunpack.c.h.b16 %v4003
    %v4617 = vunpack.c.l.b16 %v4004
    %v4618 = vunpack.c.h.b16 %v4004
    %v4619 = vunpack.c.l.b16 %v4005
    %v4620 = vunpack.c.h.b16 %v4005
    %v4621 = vunpack.c.l.b16 %v4006
    %v4622 = vunpack.c.h.b16 %v4006
    %v4623 = vunpack.c.l.b16 %v4007
    %v4624 = vunpack.c.h.b16 %v4007
    %v4625 = vunpack.c.l.b16 %v4008
    %v4626 = vunpack.c.h.b16 %v4008
    %v4627 = vunpack.c.l.b16 %v4009
    %v4628 = vunpack.c.h.b16 %v4009
    %v4629 = vunpack.c.l.b16 %v4010
    %v4630 = vunpack.c.h.b16 %v4010
    %v4631 = vunpack.c.l.b16 %v4011
    %v4632 = vunpack.c.h.b16 %v4011
    %v4633 = vunpack.c.l.b16 %v4012
    %v4634 = vunpack.c.h.b16 %v4012
    %v4635 = vunpack.c.l.b16 %v4013
    %v4636 = vunpack.c.h.b16 %v4013
    %v4637 = vunpack.c.l.b16 %v4014
    %v4638 = vunpack.c.h.b16 %v4014
    %v4639 = vunpack.c.l.b16 %v4015
    %v4640 = vunpack.c.h.b16 %v4015
    %v4641 = vunpack.c.l.b16 %v4016
    %v4642 = vunpack.c.h.b16 %v4016
    %v4643 = vunpack.c.l.b16 %v4017
    %v4644 = vunpack.c.h.b16 %v4017
    %v4645 = vunpack.c.l.b16 %v4018
    %v4646 = vunpack.c.h.b16 %v4018
    %v4647 = vunpack.c.l.b16 %v4019
    %v4648 = vunpack.c.h.b16 %v4019
    %v4649 = vunpack.c.l.b16 %v4020
    %v4650 = vunpack.c.h.b16 %v4020
    %v4651 = vunpack.c.l.b16 %v4021
    %v4652 = vunpack.c.h.b16 %v4021
    %v4653 = vunpack.c.l.b16 %v4022
    %v4654 = vunpack.c.h.b16 %v4022
    %v4655 = vunpack.c.l.b16 %v4023
    %v4656 = vunpack.c.h.b16 %v4023
    %v4657 = vunpack.c.l.b16 %v4024
    %v4658 = vunpack.c.h.b16 %v4024
    %v4659 = vunpack.c.l.b16 %v4025
    %v4660 = vunpack.c.h.b16 %v4025
    %v4661 = vunpack.c.l.b16 %v4026
    %v4662 = vunpack.c.h.b16 %v4026
    %v4663 = vunpack.c.l.b16 %v4027
    %v4664 = vunpack.c.h.b16 %v4027
    %v4665 = vunpack.c.l.b16 %v4028
    %v4666 = vunpack.c.h.b16 %v4028
    %v4667 = vunpack.c.l.b16 %v4029
    %v4668 = vunpack.c.h.b16 %v4029
    %v4669 = vunpack.c.l.b16 %v4030
    %v4670 = vunpack.c.h.b16 %v4030
    %v4671 = vunpack.c.l.b16 %v4031
    %v4672 = vunpack.c.h.b16 %v4031
    %v4673 = vunpack.c.l.b16 %v4032
    %v4674 = vunpack.c.h.b16 %v4032
    %v4675 = vunpack.c.l.b16 %v4033
    %v4676 = vunpack.c.h.b16 %v4033
    %v4677 = vunpack.c.l.b16 %v4034
    %v4678 = vunpack.c.h.b16 %v4034
    %v4679 = vunpack.c.l.b16 %v4035
    %v4680 = vunpack.c.h.b16 %v4035
    %v4681 = vunpack.c.l.b16 %v4036
    %v4682 = vunpack.c.h.b16 %v4036
    %v4683 = vunpack.c.l.b16 %v4037
    %v4684 = vunpack.c.h.b16 %v4037
    %v4685 = vunpack.c.l.b16 %v4038
    %v4686 = vunpack.c.h.b16 %v4038
    %v4687 = vunpack.c.l.b16 %v4039
    %v4688 = vunpack.c.h.b16 %v4039
    %v4689 = vunpack.c.l.b16 %v4040
    %v4690 = vunpack.c.h.b16 %v4040
    %v4691 = vunpack.c.l.b16 %v4041
    %v4692 = vunpack.c.h.b16 %v4041
    %v4693 = vunpack.c.l.b16 %v4042
    %v4694 = vunpack.c.h.b16 %v4042
    %v4695 = vunpack.c.l.b16 %v4043
    %v4696 = vunpack.c.h.b16 %v4043
    %v4697 = vunpack.c.l.b16 %v4044
    %v4698 = vunpack.c.h.b16 %v4044
    %v4699 = vunpack.c.l.b16 %v4045
    %v4700 = vunpack.c.h.b16 %v4045
    %v4701 = vunpack.c.l.b16 %v4046
    %v4702 = vunpack.c.h.b16 %v4046
    %v4703 = vunpack.c.l.b16 %v4047
    %v4704 = vunpack.c.h.b16 %v4047
    %v4705 = vunpack.c.l.b16 %v4048
    %v4706 = vunpack.c.h.b16 %v4048
    %v4707 = vunpack.c.l.b16 %v4049
    %v4708 = vunpack.c.h.b16 %v4049
    %v4709 = vunpack.c.l.b16 %v4050
    %v4710 = vunpack.c.h.b16 %v4050
    %v4711 = vunpack.c.l.b16 %v4051
    %v4712 = vunpack.c.h.b16 %v4051
    %v4713 = vunpack.c.l.b16 %v4052
    %v4714 = vunpack.c.h.b16 %v4052
    %v4715 = vunpack.c.l.b16 %v4053
    %v4716 = vunpack.c.h.b16 %v4053
    %v4717 = vunpack.c.l.b16 %v4054
    %v4718 = vunpack.c.h.b16 %v4054
    %v4719 = vunpack.c.l.b16 %v4055
    %v4720 = vunpack.c.h.b16 %v4055
    %v4721 = vunpack.c.l.b16 %v4056
    %v4722 = vunpack.c.h.b16 %v4056
    %v4723 = vunpack.c.l.b16 %v4057
    %v4724 = vunpack.c.h.b16 %v4057
    %v4725 = vunpack.c.l.b16 %v4058
    %v4726 = vunpack.c.h.b16 %v4058
    %v4727 = vunpack.c.l.b16 %v4059
    %v4728 = vunpack.c.h.b16 %v4059
    %v4729 = vunpack.c.l.b16 %v4060
    %v4730 = vunpack.c.h.b16 %v4060
    %v4731 = vunpack.c.l.b16 %v4061
    %v4732 = vunpack.c.h.b16 %v4061
    %v4733 = vunpack.c.l.b16 %v4062
    %v4734 = vunpack.c.h.b16 %v4062
    %v4735 = vunpack.c.l.b16 %v4063
    %v4736 = vunpack.c.h.b16 %v4063
    %v4737 = vunpack.c.l.b16 %v4064
    %v4738 = vunpack.c.h.b16 %v4064
    %v4739 = vunpack.c.l.b16 %v4065
    %v4740 = vunpack.c.h.b16 %v4065
    %v4741 = vunpack.c.l.b16 %v4066
    %v4742 = vunpack.c.h.b16 %v4066
    %v4743 = vunpack.c.l.b16 %v4067
    %v4744 = vunpack.c.h.b16 %v4067
    %v4745 = vunpack.c.l.b16 %v4068
    %v4746 = vunpack.c.h.b16 %v4068
    %v4747 = vunpack.c.l.b16 %v4069
    %v4748 = vunpack.c.h.b16 %v4069
    %v4749 = vunpack.c.l.b16 %v4070
    %v4750 = vunpack.c.h.b16 %v4070
    %v4751 = vunpack.c.l.b16 %v4071
    %v4752 = vunpack.c.h.b16 %v4071
    %v4753 = vunpack.c.l.b16 %v4072
    %v4754 = vunpack.c.h.b16 %v4072
    %v4755 = vunpack.c.l.b16 %v4073
    %v4756 = vunpack.c.h.b16 %v4073
    %v4757 = vunpack.c.l.b16 %v4074
    %v4758 = vunpack.c.h.b16 %v4074
    %v4759 = vunpack.c.l.b16 %v4075
    %v4760 = vunpack.c.h.b16 %v4075
    %v4761 = vunpack.c.l.b16 %v4076
    %v4762 = vunpack.c.h.b16 %v4076
    %v4763 = vunpack.c.l.b16 %v4077
    %v4764 = vunpack.c.h.b16 %v4077
    %v4765 = vunpack.c.l.b16 %v4078
    %v4766 = vunpack.c.h.b16 %v4078
    %v4767 = vunpack.c.l.b16 %v4079
    %v4768 = vunpack.c.h.b16 %v4079
    %v4769 = vunpack.c.l.b16 %v4080
    %v4770 = vunpack.c.h.b16 %v4080
    %v4771 = vunpack.c.l.b16 %v4081
    %v4772 = vunpack.c.h.b16 %v4081
    %v4773 = vunpack.c.l.b16 %v4082
    %v4774 = vunpack.c.h.b16 %v4082
    %v4775 = vunpack.c.l.b16 %v4083
    %v4776 = vunpack.c.h.b16 %v4083
    %v4777 = vunpack.c.l.b16 %v4084
    %v4778 = vunpack.c.h.b16 %v4084
    %v4779 = vunpack.c.l.b16 %v4085
    %v4780 = vunpack.c.h.b16 %v4085
    %v4781 = vunpack.c.l.b16 %v4086
    %v4782 = vunpack.c.h.b16 %v4086
    %v4783 = vunpack.c.l.b16 %v4087
    %v4784 = vunpack.c.h.b16 %v4087
    %v4785 = vunpack.c.l.b16 %v4088
    %v4786 = vunpack.c.h.b16 %v4088
    %v4787 = vunpack.c.l.b16 %v4089
    %v4788 = vunpack.c.h.b16 %v4089
    %v4789 = vunpack.c.l.b16 %v4090
    %v4790 = vunpack.c.h.b16 %v4090
    %v4791 = vunpack.c.l.b16 %v4091
    %v4792 = vunpack.c.h.b16 %v4091
    %v4793 = vunpack.c.l.b16 %v4092
    %v4794 = vunpack.c.h.b16 %v4092
    %v4795 = vunpack.c.l.b16 %v4093
    %v4796 = vunpack.c.h.b16 %v4093
    %v4797 = vunpack.c.l.b16 %v4094
    %v4798 = vunpack.c.h.b16 %v4094
    %v4799 = vunpack.c.l.b16 %v4095
    %v4800 = vunpack.c.h.b16 %v4095
    %v4801 = vunpack.c.l.b16 %v4096
    %v4802 = vunpack.c.h.b16 %v4096
    %v4803 = vunpack.c.l.b16 %v4097
    %v4804 = vunpack.c.h.b16 %v4097
    %v4805 = vunpack.c.l.b16 %v4098
    %v4806 = vunpack.c.h.b16 %v4098
    %v4807 = vunpack.c.l.b16 %v4099
    %v4808 = vunpack.c.h.b16 %v4099
    %v4809 = vunpack.c.l.b16 %v4100
    %v4810 = vunpack.c.h.b16 %v4100
    %v4811 = vunpack.c.l.b16 %v4101
    %v4812 = vunpack.c.h.b16 %v4101
    %v4813 = vunpack.c.l.b16 %v4102
    %v4814 = vunpack.c.h.b16 %v4102
    %v4815 = vunpack.c.l.b16 %v4103
    %v4816 = vunpack.c.h.b16 %v4103
    %v4817 = vunpack.c.l.b16 %v4104
    %v4818 = vunpack.c.h.b16 %v4104
    %v4819 = vunpack.c.l.b16 %v4105
    %v4820 = vunpack.c.h.b16 %v4105
    %v4821 = vunpack.c.l.b16 %v4106
    %v4822 = vunpack.c.h.b16 %v4106
    %v4823 = vunpack.c.l.b16 %v4107
    %v4824 = vunpack.c.h.b16 %v4107
    %v4825 = vunpack.c.l.b16 %v4108
    %v4826 = vunpack.c.h.b16 %v4108
    %v4827 = vunpack.c.l.b16 %v4109
    %v4828 = vunpack.c.h.b16 %v4109
    %v4829 = vunpack.c.l.b16 %v4110
    %v4830 = vunpack.c.h.b16 %v4110
    %v4831 = vunpack.c.l.b16 %v4111
    %v4832 = vunpack.c.h.b16 %v4111
    %v4833 = vunpack.c.l.b16 %v4112
    %v4834 = vunpack.c.h.b16 %v4112
    %v4835 = vunpack.c.l.b16 %v4113
    %v4836 = vunpack.c.h.b16 %v4113
    %v4837 = vunpack.c.l.b16 %v4114
    %v4838 = vunpack.c.h.b16 %v4114
    %v4839 = vunpack.c.l.b16 %v4115
    %v4840 = vunpack.c.h.b16 %v4115
    %v4841 = vunpack.c.l.b16 %v4116
    %v4842 = vunpack.c.h.b16 %v4116
    %v4843 = vunpack.c.l.b16 %v4117
    %v4844 = vunpack.c.h.b16 %v4117
    %v4845 = vunpack.c.l.b16 %v4118
    %v4846 = vunpack.c.h.b16 %v4118
    %v4847 = vunpack.c.l.b16 %v4119
    %v4848 = vunpack.c.h.b16 %v4119
    %v4849 = vunpack.c.l.b16 %v4120
    %v4850 = vunpack.c.h.b16 %v4120
    %v4851 = vunpack.c.l.b16 %v4121
    %v4852 = vunpack.c.h.b16 %v4121
    %v4853 = vunpack.c.l.b16 %v4122
    %v4854 = vunpack.c.h.b16 %v4122
    %v4855 = vunpack.c.l.b16 %v4123
    %v4856 = vunpack.c.h.b16 %v4123
    %v4857 = vunpack.c.l.b16 %v4124
    %v4858 = vunpack.c.h.b16 %v4124
    %v4859 = vunpack.c.l.b16 %v4125
    %v4860 = vunpack.c.h.b16 %v4125
    %v4861 = vunpack.c.l.b16 %v4126
    %v4862 = vunpack.c.h.b16 %v4126
    %v4863 = vunpack.c.l.b16 %v4127
    %v4864 = vunpack.c.h.b16 %v4127
    %v4865 = vunpack.c.l.b16 %v4128
    %v4866 = vunpack.c.h.b16 %v4128
    %v4867 = vunpack.c.l.b16 %v4129
    %v4868 = vunpack.c.h.b16 %v4129
    %v4869 = vunpack.c.l.b16 %v4130
    %v4870 = vunpack.c.h.b16 %v4130
    %v4871 = vunpack.c.l.b16 %v4131
    %v4872 = vunpack.c.h.b16 %v4131
    %v4873 = vunpack.c.l.b16 %v4132
    %v4874 = vunpack.c.h.b16 %v4132
    %v4875 = vunpack.c.l.b16 %v4133
    %v4876 = vunpack.c.h.b16 %v4133
    %v4877 = vunpack.c.l.b16 %v4134
    %v4878 = vunpack.c.h.b16 %v4134
    %v4879 = vunpack.c.l.b16 %v4135
    %v4880 = vunpack.c.h.b16 %v4135
    %v4881 = vunpack.c.l.b16 %v4136
    %v4882 = vunpack.c.h.b16 %v4136
    %v4883 = vunpack.c.l.b16 %v4137
    %v4884 = vunpack.c.h.b16 %v4137
    %v4885 = vunpack.c.l.b16 %v4138
    %v4886 = vunpack.c.h.b16 %v4138
    %v4887 = vunpack.c.l.b16 %v4139
    %v4888 = vunpack.c.h.b16 %v4139
    %v4889 = vunpack.c.l.b16 %v4140
    %v4890 = vunpack.c.h.b16 %v4140
    %v4891 = vunpack.c.l.b16 %v4141
    %v4892 = vunpack.c.h.b16 %v4141
    %v4893 = vunpack.c.l.b16 %v4142
    %v4894 = vunpack.c.h.b16 %v4142
    %v4895 = vunpack.c.l.b16 %v4143
    %v4896 = vunpack.c.h.b16 %v4143
    %v4897 = vunpack.c.l.b16 %v4144
    %v4898 = vunpack.c.h.b16 %v4144
    %v4899 = vunpack.c.l.b16 %v4145
    %v4900 = vunpack.c.h.b16 %v4145
    %v4901 = vunpack.c.l.b16 %v4146
    %v4902 = vunpack.c.h.b16 %v4146
    %v4903 = vunpack.c.l.b16 %v4147
    %v4904 = vunpack.c.h.b16 %v4147
    %v4905 = vunpack.c.l.b16 %v4148
    %v4906 = vunpack.c.h.b16 %v4148
    %v4907 = vunpack.c.l.b16 %v4149
    %v4908 = vunpack.c.h.b16 %v4149
    %v4909 = vunpack.c.l.b16 %v4150
    %v4910 = vunpack.c.h.b16 %v4150
    %v4911 = vunpack.c.l.b16 %v4151
    %v4912 = vunpack.c.h.b16 %v4151
    %v4913 = vunpack.c.l.b16 %v4152
    %v4914 = vunpack.c.h.b16 %v4152
    %v4915 = vunpack.c.l.b16 %v4153
    %v4916 = vunpack.c.h.b16 %v4153
    %v4917 = vunpack.c.l.b16 %v4154
    %v4918 = vunpack.c.h.b16 %v4154
    %v4919 = vunpack.c.l.b16 %v4155
    %v4920 = vunpack.c.h.b16 %v4155
    %v4921 = vunpack.c.l.b16 %v4156
    %v4922 = vunpack.c.h.b16 %v4156
    %v4923 = vunpack.c.l.b16 %v4157
    %v4924 = vunpack.c.h.b16 %v4157
    %v4925 = vunpack.c.l.b16 %v4158
    %v4926 = vunpack.c.h.b16 %v4158
    %v4927 = vunpack.c.l.b16 %v4159
    %v4928 = vunpack.c.h.b16 %v4159
    %v4929 = vunpack.c.l.b16 %v4160
    %v4930 = vunpack.c.h.b16 %v4160
    %v4931 = vunpack.c.l.b16 %v4161
    %v4932 = vunpack.c.h.b16 %v4161
    %v4933 = vunpack.c.l.b16 %v4162
    %v4934 = vunpack.c.h.b16 %v4162
    %v4935 = vunpack.c.l.b16 %v4163
    %v4936 = vunpack.c.h.b16 %v4163
    %v4937 = vunpack.c.l.b16 %v4164
    %v4938 = vunpack.c.h.b16 %v4164
    %v4939 = vunpack.c.l.b16 %v4165
    %v4940 = vunpack.c.h.b16 %v4165
    %v4941 = vunpack.c.l.b16 %v4166
    %v4942 = vunpack.c.h.b16 %v4166
    %v4943 = vunpack.c.l.b16 %v4167
    %v4944 = vunpack.c.h.b16 %v4167
    %v4945 = vunpack.c.l.b16 %v4168
    %v4946 = vunpack.c.h.b16 %v4168
    %v4947 = vunpack.c.l.b16 %v4169
    %v4948 = vunpack.c.h.b16 %v4169
    %v4949 = vunpack.c.l.b16 %v4170
    %v4950 = vunpack.c.h.b16 %v4170
    %v4951 = vunpack.c.l.b16 %v4171
    %v4952 = vunpack.c.h.b16 %v4171
    %v4953 = vunpack.c.l.b16 %v4172
    %v4954 = vunpack.c.h.b16 %v4172
    %v4955 = vunpack.c.l.b16 %v4173
    %v4956 = vunpack.c.h.b16 %v4173
    %v4957 = vunpack.c.l.b16 %v4174
    %v4958 = vunpack.c.h.b16 %v4174
    %v4959 = vunpack.c.l.b16 %v4175
    %v4960 = vunpack.c.h.b16 %v4175
    %v4961 = vunpack.c.l.b16 %v4176
    %v4962 = vunpack.c.h.b16 %v4176
    %v4963 = vunpack.c.l.b16 %v4177
    %v4964 = vunpack.c.h.b16 %v4177
    %v4965 = vunpack.c.l.b16 %v4178
    %v4966 = vunpack.c.h.b16 %v4178
    %v4967 = vunpack.c.l.b16 %v4179
    %v4968 = vunpack.c.h.b16 %v4179
    %v4969 = vunpack.c.l.b16 %v4180
    %v4970 = vunpack.c.h.b16 %v4180
    %v4971 = vpack.c.b16 %v4463, %v4459
    %v4972 = vpack.c.b16 %v4464, %v4460
    %v4973 = vpack.c.b16 %v4465, %v4461
    %v4974 = vpack.c.b16 %v4466, %v4462
    %v4975 = vpack.c.b16 %v4471, %v4467
    %v4976 = vpack.c.b16 %v4472, %v4468
    %v4977 = vpack.c.b16 %v4473, %v4469
    %v4978 = vpack.c.b16 %v4474, %v4470
    %v4979 = vpack.c.b16 %v4479, %v4475
    %v4980 = vpack.c.b16 %v4480, %v4476
    %v4981 = vpack.c.b16 %v4481, %v4477
    %v4982 = vpack.c.b16 %v4482, %v4478
    %v4983 = vpack.c.b16 %v4487, %v4483
    %v4984 = vpack.c.b16 %v4488, %v4484
    %v4985 = vpack.c.b16 %v4489, %v4485
    %v4986 = vpack.c.b16 %v4490, %v4486
    %v4987 = vpack.c.b16 %v4495, %v4491
    %v4988 = vpack.c.b16 %v4496, %v4492
    %v4989 = vpack.c.b16 %v4497, %v4493
    %v4990 = vpack.c.b16 %v4498, %v4494
    %v4991 = vpack.c.b16 %v4503, %v4499
    %v4992 = vpack.c.b16 %v4504, %v4500
    %v4993 = vpack.c.b16 %v4505, %v4501
    %v4994 = vpack.c.b16 %v4506, %v4502
    %v4995 = vpack.c.b16 %v4511, %v4507
    %v4996 = vpack.c.b16 %v4512, %v4508
    %v4997 = vpack.c.b16 %v4513, %v4509
    %v4998 = vpack.c.b16 %v4514, %v4510
    %v4999 = vpack.c.b16 %v4519, %v4515
    %v5000 = vpack.c.b16 %v4520, %v4516
    %v5001 = vpack.c.b16 %v4521, %v4517
    %v5002 = vpack.c.b16 %v4522, %v4518
    %v5003 = vpack.c.b16 %v4527, %v4523
    %v5004 = vpack.c.b16 %v4528, %v4524
    %v5005 = vpack.c.b16 %v4529, %v4525
    %v5006 = vpack.c.b16 %v4530, %v4526
    %v5007 = vpack.c.b16 %v4535, %v4531
    %v5008 = vpack.c.b16 %v4536, %v4532
    %v5009 = vpack.c.b16 %v4537, %v4533
    %v5010 = vpack.c.b16 %v4538, %v4534
    %v5011 = vpack.c.b16 %v4543, %v4539
    %v5012 = vpack.c.b16 %v4544, %v4540
    %v5013 = vpack.c.b16 %v4545, %v4541
    %v5014 = vpack.c.b16 %v4546, %v4542
    %v5015 = vpack.c.b16 %v4551, %v4547
    %v5016 = vpack.c.b16 %v4552, %v4548
    %v5017 = vpack.c.b16 %v4553, %v4549
    %v5018 = vpack.c.b16 %v4554, %v4550
    %v5019 = vpack.c.b16 %v4559, %v4555
    %v5020 = vpack.c.b16 %v4560, %v4556
    %v5021 = vpack.c.b16 %v4561, %v4557
    %v5022 = vpack.c.b16 %v4562, %v4558
    %v5023 = vpack.c.b16 %v4567, %v4563
    %v5024 = vpack.c.b16 %v4568, %v4564
    %v5025 = vpack.c.b16 %v4569, %v4565
    %v5026 = vpack.c.b16 %v4570, %v4566
    %v5027 = vpack.c.b16 %v4575, %v4571
    %v5028 = vpack.c.b16 %v4576, %v4572
    %v5029 = vpack.c.b16 %v4577, %v4573
    %v5030 = vpack.c.b16 %v4578, %v4574
    %v5031 = vpack.c.b16 %v4583, %v4579
    %v5032 = vpack.c.b16 %v4584, %v4580
    %v5033 = vpack.c.b16 %v4585, %v4581
    %v5034 = vpack.c.b16 %v4586, %v4582
    %v5035 = vpack.c.b16 %v4591, %v4587
    %v5036 = vpack.c.b16 %v4592, %v4588
    %v5037 = vpack.c.b16 %v4593, %v4589
    %v5038 = vpack.c.b16 %v4594, %v4590
    %v5039 = vpack.c.b16 %v4599, %v4595
    %v5040 = vpack.c.b16 %v4600, %v4596
    %v5041 = vpack.c.b16 %v4601, %v4597
    %v5042 = vpack.c.b16 %v4602, %v4598
    %v5043 = vpack.c.b16 %v4607, %v4603
    %v5044 = vpack.c.b16 %v4608, %v4604
    %v5045 = vpack.c.b16 %v4609, %v4605
    %v5046 = vpack.c.b16 %v4610, %v4606
    %v5047 = vpack.c.b16 %v4615, %v4611
    %v5048 = vpack.c.b16 %v4616, %v4612
    %v5049 = vpack.c.b16 %v4617, %v4613
    %v5050 = vpack.c.b16 %v4618, %v4614
    %v5051 = vpack.c.b16 %v4623, %v4619
    %v5052 = vpack.c.b16 %v4624, %v4620
    %v5053 = vpack.c.b16 %v4625, %v4621
    %v5054 = vpack.c.b16 %v4626, %v4622
    %v5055 = vpack.c.b16 %v4631, %v4627
    %v5056 = vpack.c.b16 %v4632, %v4628
    %v5057 = vpack.c.b16 %v4633, %v4629
    %v5058 = vpack.c.b16 %v4634, %v4630
    %v5059 = vpack.c.b16 %v4639, %v4635
    %v5060 = vpack.c.b16 %v4640, %v4636
    %v5061 = vpack.c.b16 %v4641, %v4637
    %v5062 = vpack.c.b16 %v4642, %v4638
    %v5063 = vpack.c.b16 %v4647, %v4643
    %v5064 = vpack.c.b16 %v4648, %v4644
    %v5065 = vpack.c.b16 %v4649, %v4645
    %v5066 = vpack.c.b16 %v4650, %v4646
    %v5067 = vpack.c.b16 %v4655, %v4651
    %v5068 = vpack.c.b16 %v4656, %v4652
    %v5069 = vpack.c.b16 %v4657, %v4653
    %v5070 = vpack.c.b16 %v4658, %v4654
    %v5071 = vpack.c.b16 %v4663, %v4659
    %v5072 = vpack.c.b16 %v4664, %v4660
    %v5073 = vpack.c.b16 %v4665, %v4661
    %v5074 = vpack.c.b16 %v4666, %v4662
    %v5075 = vpack.c.b16 %v4671, %v4667
    %v5076 = vpack.c.b16 %v4672, %v4668
    %v5077 = vpack.c.b16 %v4673, %v4669
    %v5078 = vpack.c.b16 %v4674, %v4670
    %v5079 = vpack.c.b16 %v4679, %v4675
    %v5080 = vpack.c.b16 %v4680, %v4676
    %v5081 = vpack.c.b16 %v4681, %v4677
    %v5082 = vpack.c.b16 %v4682, %v4678
    %v5083 = vpack.c.b16 %v4687, %v4683
    %v5084 = vpack.c.b16 %v4688, %v4684
    %v5085 = vpack.c.b16 %v4689, %v4685
    %v5086 = vpack.c.b16 %v4690, %v4686
    %v5087 = vpack.c.b16 %v4695, %v4691
    %v5088 = vpack.c.b16 %v4696, %v4692
    %v5089 = vpack.c.b16 %v4697, %v4693
    %v5090 = vpack.c.b16 %v4698, %v4694
    %v5091 = vpack.c.b16 %v4703, %v4699
    %v5092 = vpack.c.b16 %v4704, %v4700
    %v5093 = vpack.c.b16 %v4705, %v4701
    %v5094 = vpack.c.b16 %v4706, %v4702
    %v5095 = vpack.c.b16 %v4711, %v4707
    %v5096 = vpack.c.b16 %v4712, %v4708
    %v5097 = vpack.c.b16 %v4713, %v4709
    %v5098 = vpack.c.b16 %v4714, %v4710
    %v5099 = vpack.c.b16 %v4719, %v4715
    %v5100 = vpack.c.b16 %v4720, %v4716
    %v5101 = vpack.c.b16 %v4721, %v4717
    %v5102 = vpack.c.b16 %v4722, %v4718
    %v5103 = vpack.c.b16 %v4727, %v4723
    %v5104 = vpack.c.b16 %v4728, %v4724
    %v5105 = vpack.c.b16 %v4729, %v4725
    %v5106 = vpack.c.b16 %v4730, %v4726
    %v5107 = vpack.c.b16 %v4735, %v4731
    %v5108 = vpack.c.b16 %v4736, %v4732
    %v5109 = vpack.c.b16 %v4737, %v4733
    %v5110 = vpack.c.b16 %v4738, %v4734
    %v5111 = vpack.c.b16 %v4743, %v4739
    %v5112 = vpack.c.b16 %v4744, %v4740
    %v5113 = vpack.c.b16 %v4745, %v4741
    %v5114 = vpack.c.b16 %v4746, %v4742
    %v5115 = vpack.c.b16 %v4751, %v4747
    %v5116 = vpack.c.b16 %v4752, %v4748
    %v5117 = vpack.c.b16 %v4753, %v4749
    %v5118 = vpack.c.b16 %v4754, %v4750
    %v5119 = vpack.c.b16 %v4759, %v4755
    %v5120 = vpack.c.b16 %v4760, %v4756
    %v5121 = vpack.c.b16 %v4761, %v4757
    %v5122 = vpack.c.b16 %v4762, %v4758
    %v5123 = vpack.c.b16 %v4767, %v4763
    %v5124 = vpack.c.b16 %v4768, %v4764
    %v5125 = vpack.c.b16 %v4769, %v4765
    %v5126 = vpack.c.b16 %v4770, %v4766
    %v5127 = vpack.c.b16 %v4775, %v4771
    %v5128 = vpack.c.b16 %v4776, %v4772
    %v5129 = vpack.c.b16 %v4777, %v4773
    %v5130 = vpack.c.b16 %v4778, %v4774
    %v5131 = vpack.c.b16 %v4783, %v4779
    %v5132 = vpack.c.b16 %v4784, %v4780
    %v5133 = vpack.c.b16 %v4785, %v4781
    %v5134 = vpack.c.b16 %v4786, %v4782
    %v5135 = vpack.c.b16 %v4791, %v4787
    %v5136 = vpack.c.b16 %v4792, %v4788
    %v5137 = vpack.c.b16 %v4793, %v4789
    %v5138 = vpack.c.b16 %v4794, %v4790
    %v5139 = vpack.c.b16 %v4799, %v4795
    %v5140 = vpack.c.b16 %v4800, %v4796
    %v5141 = vpack.c.b16 %v4801, %v4797
    %v5142 = vpack.c.b16 %v4802, %v4798
    %v5143 = vpack.c.b16 %v4807, %v4803
    %v5144 = vpack.c.b16 %v4808, %v4804
    %v5145 = vpack.c.b16 %v4809, %v4805
    %v5146 = vpack.c.b16 %v4810, %v4806
    %v5147 = vpack.c.b16 %v4815, %v4811
    %v5148 = vpack.c.b16 %v4816, %v4812
    %v5149 = vpack.c.b16 %v4817, %v4813
    %v5150 = vpack.c.b16 %v4818, %v4814
    %v5151 = vpack.c.b16 %v4823, %v4819
    %v5152 = vpack.c.b16 %v4824, %v4820
    %v5153 = vpack.c.b16 %v4825, %v4821
    %v5154 = vpack.c.b16 %v4826, %v4822
    %v5155 = vpack.c.b16 %v4831, %v4827
    %v5156 = vpack.c.b16 %v4832, %v4828
    %v5157 = vpack.c.b16 %v4833, %v4829
    %v5158 = vpack.c.b16 %v4834, %v4830
    %v5159 = vpack.c.b16 %v4839, %v4835
    %v5160 = vpack.c.b16 %v4840, %v4836
    %v5161 = vpack.c.b16 %v4841, %v4837
    %v5162 = vpack.c.b16 %v4842, %v4838
    %v5163 = vpack.c.b16 %v4847, %v4843
    %v5164 = vpack.c.b16 %v4848, %v4844
    %v5165 = vpack.c.b16 %v4849, %v4845
    %v5166 = vpack.c.b16 %v4850, %v4846
    %v5167 = vpack.c.b16 %v4855, %v4851
    %v5168 = vpack.c.b16 %v4856, %v4852
    %v5169 = vpack.c.b16 %v4857, %v4853
    %v5170 = vpack.c.b16 %v4858, %v4854
    %v5171 = vpack.c.b16 %v4863, %v4859
    %v5172 = vpack.c.b16 %v4864, %v4860
    %v5173 = vpack.c.b16 %v4865, %v4861
    %v5174 = vpack.c.b16 %v4866, %v4862
    %v5175 = vpack.c.b16 %v4871, %v4867
    %v5176 = vpack.c.b16 %v4872, %v4868
    %v5177 = vpack.c.b16 %v4873, %v4869
    %v5178 = vpack.c.b16 %v4874, %v4870
    %v5179 = vpack.c.b16 %v4879, %v4875
    %v5180 = vpack.c.b16 %v4880, %v4876
    %v5181 = vpack.c.b16 %v4881, %v4877
    %v5182 = vpack.c.b16 %v4882, %v4878
    %v5183 = vpack.c.b16 %v4887, %v4883
    %v5184 = vpack.c.b16 %v4888, %v4884
    %v5185 = vpack.c.b16 %v4889, %v4885
    %v5186 = vpack.c.b16 %v4890, %v4886
    %v5187 = vpack.c.b16 %v4895, %v4891
    %v5188 = vpack.c.b16 %v4896, %v4892
    %v5189 = vpack.c.b16 %v4897, %v4893
    %v5190 = vpack.c.b16 %v4898, %v4894
    %v5191 = vpack.c.b16 %v4903, %v4899
    %v5192 = vpack.c.b16 %v4904, %v4900
    %v5193 = vpack.c.b16 %v4905, %v4901
    %v5194 = vpack.c.b16 %v4906, %v4902
    %v5195 = vpack.c.b16 %v4911, %v4907
    %v5196 = vpack.c.b16 %v4912, %v4908
    %v5197 = vpack.c.b16 %v4913, %v4909
    %v5198 = vpack.c.b16 %v4914, %v4910
    %v5199 = vpack.c.b16 %v4919, %v4915
    %v5200 = vpack.c.b16 %v4920, %v4916
    %v5201 = vpack.c.b16 %v4921, %v4917
    %v5202 = vpack.c.b16 %v4922, %v4918
    %v5203 = vpack.c.b16 %v4927, %v4923
    %v5204 = vpack.c.b16 %v4928, %v4924
    %v5205 = vpack.c.b16 %v4929, %v4925
    %v5206 = vpack.c.b16 %v4930, %v4926
    %v5207 = vpack.c.b16 %v4935, %v4931
    %v5208 = vpack.c.b16 %v4936, %v4932
    %v5209 = vpack.c.b16 %v4937, %v4933
    %v5210 = vpack.c.b16 %v4938, %v4934
    %v5211 = vpack.c.b16 %v4943, %v4939
    %v5212 = vpack.c.b16 %v4944, %v4940
    %v5213 = vpack.c.b16 %v4945, %v4941
    %v5214 = vpack.c.b16 %v4946, %v4942
    %v5215 = vpack.c.b16 %v4951, %v4947
    %v5216 = vpack.c.b16 %v4952, %v4948
    %v5217 = vpack.c.b16 %v4953, %v4949
    %v5218 = vpack.c.b16 %v4954, %v4950
    %v5219 = vpack.c.b16 %v4959, %v4955
    %v5220 = vpack.c.b16 %v4960, %v4956
    %v5221 = vpack.c.b16 %v4961, %v4957
    %v5222 = vpack.c.b16 %v4962, %v4958
    %v5223 = vpack.c.b16 %v4967, %v4963
    %v5224 = vpack.c.b16 %v4968, %v4964
    %v5225 = vpack.c.b16 %v4969, %v4965
    %v5226 = vpack.c.b16 %v4970, %v4966
    %5483 = vmatprep.subr.bf16.mxu0 %v4972
    %5484 = vmatpush1.bf16.msra.mxu0 %v4971
    %5485 = vmatprep.subr.bf16.mxu0 %v4976
    %5486 = vmatpush1.bf16.msra.mxu0 %v4975
    %5487 = vmatprep.subr.bf16.mxu0 %v4980
    %5488 = vmatpush1.bf16.msra.mxu0 %v4979
    %5489 = vmatprep.subr.bf16.mxu0 %v4984
    %5490 = vmatpush1.bf16.msra.mxu0 %v4983
    %5491 = vmatprep.subr.bf16.mxu0 %v4988
    %5492 = vmatpush1.bf16.msra.mxu0 %v4987
    %5493 = vmatprep.subr.bf16.mxu0 %v4992
    %5494 = vmatpush1.bf16.msra.mxu0 %v4991
    %5495 = vmatprep.subr.bf16.mxu0 %v4996
    %5496 = vmatpush1.bf16.msra.mxu0 %v4995
    %5497 = vmatprep.subr.bf16.mxu0 %v5000
    %5498 = vmatpush1.bf16.msra.mxu0 %v4999
    %5499 = vmatprep.subr.bf16.mxu0 %v5004
    %5500 = vmatpush1.bf16.msra.mxu0 %v5003
    %5501 = vmatprep.subr.bf16.mxu0 %v5008
    %5502 = vmatpush1.bf16.msra.mxu0 %v5007
    %5503 = vmatprep.subr.bf16.mxu0 %v5012
    %5504 = vmatpush1.bf16.msra.mxu0 %v5011
    %5505 = vmatprep.subr.bf16.mxu0 %v5016
    %5506 = vmatpush1.bf16.msra.mxu0 %v5015
    %5507 = vmatprep.subr.bf16.mxu0 %v5020
    %5508 = vmatpush1.bf16.msra.mxu0 %v5019
    %5509 = vmatprep.subr.bf16.mxu0 %v5024
    %5510 = vmatpush1.bf16.msra.mxu0 %v5023
    %5511 = vmatprep.subr.bf16.mxu0 %v5028
    %5512 = vmatpush1.bf16.msra.mxu0 %v5027
    %5513 = vmatprep.subr.bf16.mxu0 %v5032
    %5514 = vmatpush1.bf16.msra.mxu0 %v5031
    %5515 = vmatprep.mubr.bf16.mxu0 %v3918
    %5516 = vmatmul.mubr.bf16.gmra.mrb[0].mxu0 %v3917
    %v5517 = vpop.f32.mrb[0].mxu0
    %v5518 = vadd.f32 %v4186, %v5517
    %v5519 = vpop.f32.mrb[0].mxu0
    %v5520 = vadd.f32 %v4190, %v5519
    %v5521 = vpop.f32.mrb[0].mxu0
    %v5522 = vpop.f32.mrb[0].mxu0
    %5523 = vdwg.mxu0
    %5524 = vmatprep.subr.bf16.mxu0 %v5036
    %5525 = vmatpush1.bf16.msra.mxu0 %v5035
    %5526 = vmatprep.subr.bf16.mxu0 %v5040
    %5527 = vmatpush1.bf16.msra.mxu0 %v5039
    %5528 = vmatprep.subr.bf16.mxu0 %v5044
    %5529 = vmatpush1.bf16.msra.mxu0 %v5043
    %5530 = vmatprep.subr.bf16.mxu0 %v5048
    %5531 = vmatpush1.bf16.msra.mxu0 %v5047
    %5532 = vmatprep.subr.bf16.mxu0 %v5052
    %5533 = vmatpush1.bf16.msra.mxu0 %v5051
    %5534 = vmatprep.subr.bf16.mxu0 %v5056
    %5535 = vmatpush1.bf16.msra.mxu0 %v5055
    %5536 = vmatprep.subr.bf16.mxu0 %v5060
    %5537 = vmatpush1.bf16.msra.mxu0 %v5059
    %5538 = vmatprep.subr.bf16.mxu0 %v5064
    %5539 = vmatpush1.bf16.msra.mxu0 %v5063
    %5540 = vmatprep.subr.bf16.mxu0 %v5068
    %5541 = vmatpush1.bf16.msra.mxu0 %v5067
    %5542 = vmatprep.subr.bf16.mxu0 %v5072
    %5543 = vmatpush1.bf16.msra.mxu0 %v5071
    %5544 = vmatprep.subr.bf16.mxu0 %v5076
    %5545 = vmatpush1.bf16.msra.mxu0 %v5075
    %5546 = vmatprep.subr.bf16.mxu0 %v5080
    %5547 = vmatpush1.bf16.msra.mxu0 %v5079
    %5548 = vmatprep.subr.bf16.mxu0 %v5084
    %5549 = vmatpush1.bf16.msra.mxu0 %v5083
    %5550 = vmatprep.subr.bf16.mxu0 %v5088
    %5551 = vmatpush1.bf16.msra.mxu0 %v5087
    %5552 = vmatprep.subr.bf16.mxu0 %v5092
    %5553 = vmatpush1.bf16.msra.mxu0 %v5091
    %5554 = vmatprep.subr.bf16.mxu0 %v5096
    %5555 = vmatpush1.bf16.msra.mxu0 %v5095
    %5556 = vmatprep.mubr.bf16.mxu0 %v3920
    %5557 = vmatmul.mubr.bf16.gmra.mrb[0].mxu0 %v3919
    %v5558 = vpop.f32.mrb[0].mxu0
    %v5559 = vadd.f32 %v5518, %v5558
    %v5560 = vpop.f32.mrb[0].mxu0
    %v5561 = vadd.f32 %v5520, %v5560
    %v5562 = vpop.f32.mrb[0].mxu0
    %v5563 = vpop.f32.mrb[0].mxu0
    %5564 = vdwg.mxu0
    %5565 = vmatprep.subr.bf16.mxu0 %v5100
    %5566 = vmatpush1.bf16.msra.mxu0 %v5099
    %5567 = vmatprep.subr.bf16.mxu0 %v5104
    %5568 = vmatpush1.bf16.msra.mxu0 %v5103
    %5569 = vmatprep.subr.bf16.mxu0 %v5108
    %5570 = vmatpush1.bf16.msra.mxu0 %v5107
    %5571 = vmatprep.subr.bf16.mxu0 %v5112
    %5572 = vmatpush1.bf16.msra.mxu0 %v5111
    %5573 = vmatprep.subr.bf16.mxu0 %v5116
    %5574 = vmatpush1.bf16.msra.mxu0 %v5115
    %5575 = vmatprep.subr.bf16.mxu0 %v5120
    %5576 = vmatpush1.bf16.msra.mxu0 %v5119
    %5577 = vmatprep.subr.bf16.mxu0 %v5124
    %5578 = vmatpush1.bf16.msra.mxu0 %v5123
    %5579 = vmatprep.subr.bf16.mxu0 %v5128
    %5580 = vmatpush1.bf16.msra.mxu0 %v5127
    %5581 = vmatprep.subr.bf16.mxu0 %v5132
    %5582 = vmatpush1.bf16.msra.mxu0 %v5131
    %5583 = vmatprep.subr.bf16.mxu0 %v5136
    %5584 = vmatpush1.bf16.msra.mxu0 %v5135
    %5585 = vmatprep.subr.bf16.mxu0 %v5140
    %5586 = vmatpush1.bf16.msra.mxu0 %v5139
    %5587 = vmatprep.subr.bf16.mxu0 %v5144
    %5588 = vmatpush1.bf16.msra.mxu0 %v5143
    %5589 = vmatprep.subr.bf16.mxu0 %v5148
    %5590 = vmatpush1.bf16.msra.mxu0 %v5147
    %5591 = vmatprep.subr.bf16.mxu0 %v5152
    %5592 = vmatpush1.bf16.msra.mxu0 %v5151
    %5593 = vmatprep.subr.bf16.mxu0 %v5156
    %5594 = vmatpush1.bf16.msra.mxu0 %v5155
    %5595 = vmatprep.subr.bf16.mxu0 %v5160
    %5596 = vmatpush1.bf16.msra.mxu0 %v5159
    %5597 = vmatprep.mubr.bf16.mxu0 %v3922
    %5598 = vmatmul.mubr.bf16.gmra.mrb[0].mxu0 %v3921
    %v5599 = vpop.f32.mrb[0].mxu0
    %v5600 = vadd.f32 %v5559, %v5599
    %v5601 = vpop.f32.mrb[0].mxu0
    %v5602 = vadd.f32 %v5561, %v5601
    %v5603 = vpop.f32.mrb[0].mxu0
    %v5604 = vpop.f32.mrb[0].mxu0
    %5605 = vdwg.mxu0
    %5606 = vmatprep.subr.bf16.mxu0 %v5164
    %5607 = vmatpush1.bf16.msra.mxu0 %v5163
    %5608 = vmatprep.subr.bf16.mxu0 %v5168
    %5609 = vmatpush1.bf16.msra.mxu0 %v5167
    %5610 = vmatprep.subr.bf16.mxu0 %v5172
    %5611 = vmatpush1.bf16.msra.mxu0 %v5171
    %5612 = vmatprep.subr.bf16.mxu0 %v5176
    %5613 = vmatpush1.bf16.msra.mxu0 %v5175
    %5614 = vmatprep.subr.bf16.mxu0 %v5180
    %5615 = vmatpush1.bf16.msra.mxu0 %v5179
    %5616 = vmatprep.subr.bf16.mxu0 %v5184
    %5617 = vmatpush1.bf16.msra.mxu0 %v5183
    %5618 = vmatprep.subr.bf16.mxu0 %v5188
    %5619 = vmatpush1.bf16.msra.mxu0 %v5187
    %5620 = vmatprep.subr.bf16.mxu0 %v5192
    %5621 = vmatpush1.bf16.msra.mxu0 %v5191
    %5622 = vmatprep.subr.bf16.mxu0 %v5196
    %5623 = vmatpush1.bf16.msra.mxu0 %v5195
    %5624 = vmatprep.subr.bf16.mxu0 %v5200
    %5625 = vmatpush1.bf16.msra.mxu0 %v5199
    %5626 = vmatprep.subr.bf16.mxu0 %v5204
    %5627 = vmatpush1.bf16.msra.mxu0 %v5203
    %5628 = vmatprep.subr.bf16.mxu0 %v5208
    %5629 = vmatpush1.bf16.msra.mxu0 %v5207
    %5630 = vmatprep.subr.bf16.mxu0 %v5212
    %5631 = vmatpush1.bf16.msra.mxu0 %v5211
    %5632 = vmatprep.subr.bf16.mxu0 %v5216
    %5633 = vmatpush1.bf16.msra.mxu0 %v5215
    %5634 = vmatprep.subr.bf16.mxu0 %v5220
    %5635 = vmatpush1.bf16.msra.mxu0 %v5219
    %5636 = vmatprep.subr.bf16.mxu0 %v5224
    %5637 = vmatpush1.bf16.msra.mxu0 %v5223
    %5638 = vmatprep.mubr.bf16.mxu0 %v3924
    %5639 = vmatmul.mubr.bf16.gmra.mrb[0].mxu0 %v3923
    %v5640 = vpop.f32.mrb[0].mxu0
    %v5641 = vadd.f32 %v5600, %v5640
    %v5642 = vpop.f32.mrb[0].mxu0
    %v5643 = vadd.f32 %v5602, %v5642
    %v5644 = vpop.f32.mrb[0].mxu0
    %v5645 = vpop.f32.mrb[0].mxu0
    %5646 = vdwg.mxu0
    %5647 = vmatprep.subr.bf16.mxu0 %v4974
    %5648 = vmatpush1.bf16.msra.mxu0 %v4973
    %5649 = vmatprep.subr.bf16.mxu0 %v4978
    %5650 = vmatpush1.bf16.msra.mxu0 %v4977
    %5651 = vmatprep.subr.bf16.mxu0 %v4982
    %5652 = vmatpush1.bf16.msra.mxu0 %v4981
    %5653 = vmatprep.subr.bf16.mxu0 %v4986
    %5654 = vmatpush1.bf16.msra.mxu0 %v4985
    %5655 = vmatprep.subr.bf16.mxu0 %v4990
    %5656 = vmatpush1.bf16.msra.mxu0 %v4989
    %5657 = vmatprep.subr.bf16.mxu0 %v4994
    %5658 = vmatpush1.bf16.msra.mxu0 %v4993
    %5659 = vmatprep.subr.bf16.mxu0 %v4998
    %5660 = vmatpush1.bf16.msra.mxu0 %v4997
    %5661 = vmatprep.subr.bf16.mxu0 %v5002
    %5662 = vmatpush1.bf16.msra.mxu0 %v5001
    %5663 = vmatprep.subr.bf16.mxu0 %v5006
    %5664 = vmatpush1.bf16.msra.mxu0 %v5005
    %5665 = vmatprep.subr.bf16.mxu0 %v5010
    %5666 = vmatpush1.bf16.msra.mxu0 %v5009
    %5667 = vmatprep.subr.bf16.mxu0 %v5014
    %5668 = vmatpush1.bf16.msra.mxu0 %v5013
    %5669 = vmatprep.subr.bf16.mxu0 %v5018
    %5670 = vmatpush1.bf16.msra.mxu0 %v5017
    %5671 = vmatprep.subr.bf16.mxu0 %v5022
    %5672 = vmatpush1.bf16.msra.mxu0 %v5021
    %5673 = vmatprep.subr.bf16.mxu0 %v5026
    %5674 = vmatpush1.bf16.msra.mxu0 %v5025
    %5675 = vmatprep.subr.bf16.mxu0 %v5030
    %5676 = vmatpush1.bf16.msra.mxu0 %v5029
    %5677 = vmatprep.subr.bf16.mxu0 %v5034
    %5678 = vmatpush1.bf16.msra.mxu0 %v5033
    %5679 = vmatprep.mubr.bf16.mxu0 %v3918
    %5680 = vmatmul.mubr.bf16.gmra.mrb[0].mxu0 %v3917
    %v5681 = vpop.f32.mrb[0].mxu0
    %v5682 = vadd.f32 %v4194, %v5681
    %v5683 = vpop.f32.mrb[0].mxu0
    %v5684 = vadd.f32 %v4198, %v5683
    %v5685 = vpop.f32.mrb[0].mxu0
    %v5686 = vpop.f32.mrb[0].mxu0
    %5687 = vdwg.mxu0
    %5688 = vmatprep.subr.bf16.mxu0 %v5038
    %5689 = vmatpush1.bf16.msra.mxu0 %v5037
    %5690 = vmatprep.subr.bf16.mxu0 %v5042
    %5691 = vmatpush1.bf16.msra.mxu0 %v5041
    %5692 = vmatprep.subr.bf16.mxu0 %v5046
    %5693 = vmatpush1.bf16.msra.mxu0 %v5045
    %5694 = vmatprep.subr.bf16.mxu0 %v5050
    %5695 = vmatpush1.bf16.msra.mxu0 %v5049
    %5696 = vmatprep.subr.bf16.mxu0 %v5054
    %5697 = vmatpush1.bf16.msra.mxu0 %v5053
    %5698 = vmatprep.subr.bf16.mxu0 %v5058
    %5699 = vmatpush1.bf16.msra.mxu0 %v5057
    %5700 = vmatprep.subr.bf16.mxu0 %v5062
    %5701 = vmatpush1.bf16.msra.mxu0 %v5061
    %5702 = vmatprep.subr.bf16.mxu0 %v5066
    %5703 = vmatpush1.bf16.msra.mxu0 %v5065
    %5704 = vmatprep.subr.bf16.mxu0 %v5070
    %5705 = vmatpush1.bf16.msra.mxu0 %v5069
    %5706 = vmatprep.subr.bf16.mxu0 %v5074
    %5707 = vmatpush1.bf16.msra.mxu0 %v5073
    %5708 = vmatprep.subr.bf16.mxu0 %v5078
    %5709 = vmatpush1.bf16.msra.mxu0 %v5077
    %5710 = vmatprep.subr.bf16.mxu0 %v5082
    %5711 = vmatpush1.bf16.msra.mxu0 %v5081
    %5712 = vmatprep.subr.bf16.mxu0 %v5086
    %5713 = vmatpush1.bf16.msra.mxu0 %v5085
    %5714 = vmatprep.subr.bf16.mxu0 %v5090
    %5715 = vmatpush1.bf16.msra.mxu0 %v5089
    %5716 = vmatprep.subr.bf16.mxu0 %v5094
    %5717 = vmatpush1.bf16.msra.mxu0 %v5093
    %5718 = vmatprep.subr.bf16.mxu0 %v5098
    %5719 = vmatpush1.bf16.msra.mxu0 %v5097
    %5720 = vmatprep.mubr.bf16.mxu0 %v3920
    %5721 = vmatmul.mubr.bf16.gmra.mrb[0].mxu0 %v3919
    %v5722 = vpop.f32.mrb[0].mxu0
    %v5723 = vadd.f32 %v5682, %v5722
    %v5724 = vpop.f32.mrb[0].mxu0
    %v5725 = vadd.f32 %v5684, %v5724
    %v5726 = vpop.f32.mrb[0].mxu0
    %v5727 = vpop.f32.mrb[0].mxu0
    %5728 = vdwg.mxu0
    %5729 = vmatprep.subr.bf16.mxu0 %v5102
    %5730 = vmatpush1.bf16.msra.mxu0 %v5101
    %5731 = vmatprep.subr.bf16.mxu0 %v5106
    %5732 = vmatpush1.bf16.msra.mxu0 %v5105
    %5733 = vmatprep.subr.bf16.mxu0 %v5110
    %5734 = vmatpush1.bf16.msra.mxu0 %v5109
    %5735 = vmatprep.subr.bf16.mxu0 %v5114
    %5736 = vmatpush1.bf16.msra.mxu0 %v5113
    %5737 = vmatprep.subr.bf16.mxu0 %v5118
    %5738 = vmatpush1.bf16.msra.mxu0 %v5117
    %5739 = vmatprep.subr.bf16.mxu0 %v5122
    %5740 = vmatpush1.bf16.msra.mxu0 %v5121
    %5741 = vmatprep.subr.bf16.mxu0 %v5126
    %5742 = vmatpush1.bf16.msra.mxu0 %v5125
    %5743 = vmatprep.subr.bf16.mxu0 %v5130
    %5744 = vmatpush1.bf16.msra.mxu0 %v5129
    %5745 = vmatprep.subr.bf16.mxu0 %v5134
    %5746 = vmatpush1.bf16.msra.mxu0 %v5133
    %5747 = vmatprep.subr.bf16.mxu0 %v5138
    %5748 = vmatpush1.bf16.msra.mxu0 %v5137
    %5749 = vmatprep.subr.bf16.mxu0 %v5142
    %5750 = vmatpush1.bf16.msra.mxu0 %v5141
    %5751 = vmatprep.subr.bf16.mxu0 %v5146
    %5752 = vmatpush1.bf16.msra.mxu0 %v5145
    %5753 = vmatprep.subr.bf16.mxu0 %v5150
    %5754 = vmatpush1.bf16.msra.mxu0 %v5149
    %5755 = vmatprep.subr.bf16.mxu0 %v5154
    %5756 = vmatpush1.bf16.msra.mxu0 %v5153
    %5757 = vmatprep.subr.bf16.mxu0 %v5158
    %5758 = vmatpush1.bf16.msra.mxu0 %v5157
    %5759 = vmatprep.subr.bf16.mxu0 %v5162
    %5760 = vmatpush1.bf16.msra.mxu0 %v5161
    %5761 = vmatprep.mubr.bf16.mxu0 %v3922
    %5762 = vmatmul.mubr.bf16.gmra.mrb[0].mxu0 %v3921
    %v5763 = vpop.f32.mrb[0].mxu0
    %v5764 = vadd.f32 %v5723, %v5763
    %v5765 = vpop.f32.mrb[0].mxu0
    %v5766 = vadd.f32 %v5725, %v5765
    %v5767 = vpop.f32.mrb[0].mxu0
    %v5768 = vpop.f32.mrb[0].mxu0
    %5769 = vdwg.mxu0
    %5770 = vmatprep.subr.bf16.mxu0 %v5166
    %5771 = vmatpush1.bf16.msra.mxu0 %v5165
    %5772 = vmatprep.subr.bf16.mxu0 %v5170
    %5773 = vmatpush1.bf16.msra.mxu0 %v5169
    %5774 = vmatprep.subr.bf16.mxu0 %v5174
    %5775 = vmatpush1.bf16.msra.mxu0 %v5173
    %5776 = vmatprep.subr.bf16.mxu0 %v5178
    %5777 = vmatpush1.bf16.msra.mxu0 %v5177
    %5778 = vmatprep.subr.bf16.mxu0 %v5182
    %5779 = vmatpush1.bf16.msra.mxu0 %v5181
    %5780 = vmatprep.subr.bf16.mxu0 %v5186
    %5781 = vmatpush1.bf16.msra.mxu0 %v5185
    %5782 = vmatprep.subr.bf16.mxu0 %v5190
    %5783 = vmatpush1.bf16.msra.mxu0 %v5189
    %5784 = vmatprep.subr.bf16.mxu0 %v5194
    %5785 = vmatpush1.bf16.msra.mxu0 %v5193
    %5786 = vmatprep.subr.bf16.mxu0 %v5198
    %5787 = vmatpush1.bf16.msra.mxu0 %v5197
    %5788 = vmatprep.subr.bf16.mxu0 %v5202
    %5789 = vmatpush1.bf16.msra.mxu0 %v5201
    %5790 = vmatprep.subr.bf16.mxu0 %v5206
    %5791 = vmatpush1.bf16.msra.mxu0 %v5205
    %5792 = vmatprep.subr.bf16.mxu0 %v5210
    %5793 = vmatpush1.bf16.msra.mxu0 %v5209
    %5794 = vmatprep.subr.bf16.mxu0 %v5214
    %5795 = vmatpush1.bf16.msra.mxu0 %v5213
    %5796 = vmatprep.subr.bf16.mxu0 %v5218
    %5797 = vmatpush1.bf16.msra.mxu0 %v5217
    %5798 = vmatprep.subr.bf16.mxu0 %v5222
    %5799 = vmatpush1.bf16.msra.mxu0 %v5221
    %5800 = vmatprep.subr.bf16.mxu0 %v5226
    %5801 = vmatpush1.bf16.msra.mxu0 %v5225
    %5802 = vmatprep.mubr.bf16.mxu0 %v3924
    %5803 = vmatmul.mubr.bf16.gmra.mrb[0].mxu0 %v3923
    %v5804 = vpop.f32.mrb[0].mxu0
    %v5805 = vadd.f32 %v5764, %v5804
    %v5806 = vpop.f32.mrb[0].mxu0
    %v5807 = vadd.f32 %v5766, %v5806
    %v5808 = vpop.f32.mrb[0].mxu0
    %v5809 = vpop.f32.mrb[0].mxu0
    %5810 = vdwg.mxu0
    %v5811 = vld [vmem:[#allocation9] sm:$0xf]
    %v5812 = vld [vmem:[#allocation10] sm:$0xf]
    %v5813 = vadd.f32 %v5641, %v5643
    %v5814 = vadd.f32 %v5813, %v5805
    %v5815 = vadd.f32 %v5814, %v5807
    %5816 = vadd.xlane.f32.xlu0 %v5815
    %v5817 = vpop.xlane.xlu0 %5816
    %v5818 = vrcp.pop 512.0
    %v5819 = vmul.f32 %v5817, %v5818
    %v5820 = vsub.f32 %v5641, %v5819
    %v5821 = vsub.f32 %v5643, %v5819
    %v5822 = vsub.f32 %v5805, %v5819
    %v5823 = vsub.f32 %v5807, %v5819
    %v5824 = vmul.f32 %v5820, %v5820
    %v5825 = vmul.f32 %v5821, %v5821
    %v5826 = vmul.f32 %v5822, %v5822
    %v5827 = vmul.f32 %v5823, %v5823
    %v5828 = vadd.f32 %v5824, %v5825
    %v5829 = vadd.f32 %v5828, %v5826
    %v5830 = vadd.f32 %v5829, %v5827
    %5831 = vadd.xlane.f32.xlu0 %v5830
    %v5832 = vpop.xlane.xlu0 %5831
    %v5833 = vmul.f32 %v5832, %v5818
    %v5834 = vadd.f32 %v5833, 1e-05
    %v5835 = vrsqrt.pop %v5834
    %v5836 = vmul.f32 %v5820, %v5835
    %v5837 = vmul.f32 %v5821, %v5835
    %v5838 = vmul.f32 %v5822, %v5835
    %v5839 = vmul.f32 %v5823, %v5835
    %v5841 = vlaneseq
    %v5842 = vshrl.u32 %v5841, 7
    %v5843 = vsub.s32 0, %v5842
    %v5844 = vrot.slane %v5811, %v5843
    %v5845 = vlaneseq
    %v5846 = vshrl.u32 %v5845, 7
    %v5847 = vsub.s32 1, %v5846
    %v5848 = vrot.slane %v5811, %v5847
    %v5849 = vlaneseq
    %v5850 = vshrl.u32 %v5849, 7
    %v5851 = vsub.s32 2, %v5850
    %v5852 = vrot.slane %v5811, %v5851
    %v5853 = vlaneseq
    %v5854 = vshrl.u32 %v5853, 7
    %v5855 = vsub.s32 3, %v5854
    %v5856 = vrot.slane %v5811, %v5855
    %v5861 = vmul.f32 %v5836, %v5844
    %v5862 = vmul.f32 %v5837, %v5848
    %v5863 = vmul.f32 %v5838, %v5852
    %v5864 = vmul.f32 %v5839, %v5856
    %v5866 = vlaneseq
    %v5867 = vshrl.u32 %v5866, 7
    %v5868 = vsub.s32 0, %v5867
    %v5869 = vrot.slane %v5812, %v5868
    %v5870 = vlaneseq
    %v5871 = vshrl.u32 %v5870, 7
    %v5872 = vsub.s32 1, %v5871
    %v5873 = vrot.slane %v5812, %v5872
    %v5874 = vlaneseq
    %v5875 = vshrl.u32 %v5874, 7
    %v5876 = vsub.s32 2, %v5875
    %v5877 = vrot.slane %v5812, %v5876
    %v5878 = vlaneseq
    %v5879 = vshrl.u32 %v5878, 7
    %v5880 = vsub.s32 3, %v5879
    %v5881 = vrot.slane %v5812, %v5880
    %v5886 = vadd.f32 %v5861, %v5869
    %v5887 = vadd.f32 %v5862, %v5873
    %v5888 = vadd.f32 %v5863, %v5877
    %v5889 = vadd.f32 %v5864, %v5881
    %v5890 = vmax.f32 %v5886, 0.0
    %v5891 = vmax.f32 %v5887, 0.0
    %v5892 = vmax.f32 %v5888, 0.0
    %v5893 = vmax.f32 %v5889, 0.0
    %v5894 = vpack.c.bf16 %v5890, %v5890
    %v5895 = vpack.c.bf16 %v5891, %v5891
    %v5896 = vpack.c.bf16 %v5892, %v5892
    %v5897 = vpack.c.bf16 %v5893, %v5893
    %v5898 = vld [vmem:[#allocation12] sm:$0xff]
    %v5899 = vld [vmem:[#allocation12 + $0x8] sm:$0xff]
    %v5900 = vld [vmem:[#allocation12 + $0x10] sm:$0xff]
    %v5901 = vld [vmem:[#allocation12 + $0x18] sm:$0xff]
    %v5902 = vld [vmem:[#allocation12 + $0x20] sm:$0xff]
    %v5903 = vld [vmem:[#allocation12 + $0x28] sm:$0xff]
    %v5904 = vld [vmem:[#allocation12 + $0x30] sm:$0xff]
    %v5905 = vld [vmem:[#allocation12 + $0x38] sm:$0xff]
    %v5906 = vld [vmem:[#allocation12 + $0x40] sm:$0xff]
    %v5907 = vld [vmem:[#allocation12 + $0x48] sm:$0xff]
    %v5908 = vld [vmem:[#allocation12 + $0x50] sm:$0xff]
    %v5909 = vld [vmem:[#allocation12 + $0x58] sm:$0xff]
    %v5910 = vld [vmem:[#allocation12 + $0x60] sm:$0xff]
    %v5911 = vld [vmem:[#allocation12 + $0x68] sm:$0xff]
    %v5912 = vld [vmem:[#allocation12 + $0x70] sm:$0xff]
    %v5913 = vld [vmem:[#allocation12 + $0x78] sm:$0xff]
    %v5914 = vld [vmem:[#allocation12 + $0x80] sm:$0xff]
    %v5915 = vld [vmem:[#allocation12 + $0x88] sm:$0xff]
    %v5916 = vld [vmem:[#allocation12 + $0x90] sm:$0xff]
    %v5917 = vld [vmem:[#allocation12 + $0x98] sm:$0xff]
    %v5918 = vld [vmem:[#allocation12 + $0xa0] sm:$0xff]
    %v5919 = vld [vmem:[#allocation12 + $0xa8] sm:$0xff]
    %v5920 = vld [vmem:[#allocation12 + $0xb0] sm:$0xff]
    %v5921 = vld [vmem:[#allocation12 + $0xb8] sm:$0xff]
    %v5922 = vld [vmem:[#allocation12 + $0xc0] sm:$0xff]
    %v5923 = vld [vmem:[#allocation12 + $0xc8] sm:$0xff]
    %v5924 = vld [vmem:[#allocation12 + $0xd0] sm:$0xff]
    %v5925 = vld [vmem:[#allocation12 + $0xd8] sm:$0xff]
    %v5926 = vld [vmem:[#allocation12 + $0xe0] sm:$0xff]
    %v5927 = vld [vmem:[#allocation12 + $0xe8] sm:$0xff]
    %v5928 = vld [vmem:[#allocation12 + $0xf0] sm:$0xff]
    %v5929 = vld [vmem:[#allocation12 + $0xf8] sm:$0xff]
    %v5930 = vld [vmem:[#allocation12 + $0x100] sm:$0xff]
    %v5931 = vld [vmem:[#allocation12 + $0x108] sm:$0xff]
    %v5932 = vld [vmem:[#allocation12 + $0x110] sm:$0xff]
    %v5933 = vld [vmem:[#allocation12 + $0x118] sm:$0xff]
    %v5934 = vld [vmem:[#allocation12 + $0x120] sm:$0xff]
    %v5935 = vld [vmem:[#allocation12 + $0x128] sm:$0xff]
    %v5936 = vld [vmem:[#allocation12 + $0x130] sm:$0xff]
    %v5937 = vld [vmem:[#allocation12 + $0x138] sm:$0xff]
    %v5938 = vld [vmem:[#allocation12 + $0x140] sm:$0xff]
    %v5939 = vld [vmem:[#allocation12 + $0x148] sm:$0xff]
    %v5940 = vld [vmem:[#allocation12 + $0x150] sm:$0xff]
    %v5941 = vld [vmem:[#allocation12 + $0x158] sm:$0xff]
    %v5942 = vld [vmem:[#allocation12 + $0x160] sm:$0xff]
    %v5943 = vld [vmem:[#allocation12 + $0x168] sm:$0xff]
    %v5944 = vld [vmem:[#allocation12 + $0x170] sm:$0xff]
    %v5945 = vld [vmem:[#allocation12 + $0x178] sm:$0xff]
    %v5946 = vld [vmem:[#allocation12 + $0x180] sm:$0xff]
    %v5947 = vld [vmem:[#allocation12 + $0x188] sm:$0xff]
    %v5948 = vld [vmem:[#allocation12 + $0x190] sm:$0xff]
    %v5949 = vld [vmem:[#allocation12 + $0x198] sm:$0xff]
    %v5950 = vld [vmem:[#allocation12 + $0x1a0] sm:$0xff]
    %v5951 = vld [vmem:[#allocation12 + $0x1a8] sm:$0xff]
    %v5952 = vld [vmem:[#allocation12 + $0x1b0] sm:$0xff]
    %v5953 = vld [vmem:[#allocation12 + $0x1b8] sm:$0xff]
    %v5954 = vld [vmem:[#allocation12 + $0x1c0] sm:$0xff]
    %v5955 = vld [vmem:[#allocation12 + $0x1c8] sm:$0xff]
    %v5956 = vld [vmem:[#allocation12 + $0x1d0] sm:$0xff]
    %v5957 = vld [vmem:[#allocation12 + $0x1d8] sm:$0xff]
    %v5958 = vld [vmem:[#allocation12 + $0x1e0] sm:$0xff]
    %v5959 = vld [vmem:[#allocation12 + $0x1e8] sm:$0xff]
    %v5960 = vld [vmem:[#allocation12 + $0x1f0] sm:$0xff]
    %v5961 = vld [vmem:[#allocation12 + $0x1f8] sm:$0xff]
    %v5962 = vld [vmem:[#allocation13] sm:$0x3]
    %v5964 = vlaneseq
    %v5965 = vshrl.u32 %v5964, 7
    %v5966 = vsub.s32 0, %v5965
    %v5967 = vrot.slane %v5962, %v5966
    %v5968 = vlaneseq
    %v5969 = vshrl.u32 %v5968, 7
    %v5970 = vsub.s32 1, %v5969
    %v5971 = vrot.slane %v5962, %v5970
    %v6038 = vunpack.c.l.b16 %v5898
    %v6039 = vunpack.c.h.b16 %v5898
    %v6040 = vunpack.c.l.b16 %v5899
    %v6041 = vunpack.c.h.b16 %v5899
    %v6042 = vunpack.c.l.b16 %v5900
    %v6043 = vunpack.c.h.b16 %v5900
    %v6044 = vunpack.c.l.b16 %v5901
    %v6045 = vunpack.c.h.b16 %v5901
    %v6046 = vunpack.c.l.b16 %v5902
    %v6047 = vunpack.c.h.b16 %v5902
    %v6048 = vunpack.c.l.b16 %v5903
    %v6049 = vunpack.c.h.b16 %v5903
    %v6050 = vunpack.c.l.b16 %v5904
    %v6051 = vunpack.c.h.b16 %v5904
    %v6052 = vunpack.c.l.b16 %v5905
    %v6053 = vunpack.c.h.b16 %v5905
    %v6054 = vunpack.c.l.b16 %v5906
    %v6055 = vunpack.c.h.b16 %v5906
    %v6056 = vunpack.c.l.b16 %v5907
    %v6057 = vunpack.c.h.b16 %v5907
    %v6058 = vunpack.c.l.b16 %v5908
    %v6059 = vunpack.c.h.b16 %v5908
    %v6060 = vunpack.c.l.b16 %v5909
    %v6061 = vunpack.c.h.b16 %v5909
    %v6062 = vunpack.c.l.b16 %v5910
    %v6063 = vunpack.c.h.b16 %v5910
    %v6064 = vunpack.c.l.b16 %v5911
    %v6065 = vunpack.c.h.b16 %v5911
    %v6066 = vunpack.c.l.b16 %v5912
    %v6067 = vunpack.c.h.b16 %v5912
    %v6068 = vunpack.c.l.b16 %v5913
    %v6069 = vunpack.c.h.b16 %v5913
    %v6070 = vunpack.c.l.b16 %v5914
    %v6071 = vunpack.c.h.b16 %v5914
    %v6072 = vunpack.c.l.b16 %v5915
    %v6073 = vunpack.c.h.b16 %v5915
    %v6074 = vunpack.c.l.b16 %v5916
    %v6075 = vunpack.c.h.b16 %v5916
    %v6076 = vunpack.c.l.b16 %v5917
    %v6077 = vunpack.c.h.b16 %v5917
    %v6078 = vunpack.c.l.b16 %v5918
    %v6079 = vunpack.c.h.b16 %v5918
    %v6080 = vunpack.c.l.b16 %v5919
    %v6081 = vunpack.c.h.b16 %v5919
    %v6082 = vunpack.c.l.b16 %v5920
    %v6083 = vunpack.c.h.b16 %v5920
    %v6084 = vunpack.c.l.b16 %v5921
    %v6085 = vunpack.c.h.b16 %v5921
    %v6086 = vunpack.c.l.b16 %v5922
    %v6087 = vunpack.c.h.b16 %v5922
    %v6088 = vunpack.c.l.b16 %v5923
    %v6089 = vunpack.c.h.b16 %v5923
    %v6090 = vunpack.c.l.b16 %v5924
    %v6091 = vunpack.c.h.b16 %v5924
    %v6092 = vunpack.c.l.b16 %v5925
    %v6093 = vunpack.c.h.b16 %v5925
    %v6094 = vunpack.c.l.b16 %v5926
    %v6095 = vunpack.c.h.b16 %v5926
    %v6096 = vunpack.c.l.b16 %v5927
    %v6097 = vunpack.c.h.b16 %v5927
    %v6098 = vunpack.c.l.b16 %v5928
    %v6099 = vunpack.c.h.b16 %v5928
    %v6100 = vunpack.c.l.b16 %v5929
    %v6101 = vunpack.c.h.b16 %v5929
    %v6102 = vunpack.c.l.b16 %v5930
    %v6103 = vunpack.c.h.b16 %v5930
    %v6104 = vunpack.c.l.b16 %v5931
    %v6105 = vunpack.c.h.b16 %v5931
    %v6106 = vunpack.c.l.b16 %v5932
    %v6107 = vunpack.c.h.b16 %v5932
    %v6108 = vunpack.c.l.b16 %v5933
    %v6109 = vunpack.c.h.b16 %v5933
    %v6110 = vunpack.c.l.b16 %v5934
    %v6111 = vunpack.c.h.b16 %v5934
    %v6112 = vunpack.c.l.b16 %v5935
    %v6113 = vunpack.c.h.b16 %v5935
    %v6114 = vunpack.c.l.b16 %v5936
    %v6115 = vunpack.c.h.b16 %v5936
    %v6116 = vunpack.c.l.b16 %v5937
    %v6117 = vunpack.c.h.b16 %v5937
    %v6118 = vunpack.c.l.b16 %v5938
    %v6119 = vunpack.c.h.b16 %v5938
    %v6120 = vunpack.c.l.b16 %v5939
    %v6121 = vunpack.c.h.b16 %v5939
    %v6122 = vunpack.c.l.b16 %v5940
    %v6123 = vunpack.c.h.b16 %v5940
    %v6124 = vunpack.c.l.b16 %v5941
    %v6125 = vunpack.c.h.b16 %v5941
    %v6126 = vunpack.c.l.b16 %v5942
    %v6127 = vunpack.c.h.b16 %v5942
    %v6128 = vunpack.c.l.b16 %v5943
    %v6129 = vunpack.c.h.b16 %v5943
    %v6130 = vunpack.c.l.b16 %v5944
    %v6131 = vunpack.c.h.b16 %v5944
    %v6132 = vunpack.c.l.b16 %v5945
    %v6133 = vunpack.c.h.b16 %v5945
    %v6134 = vunpack.c.l.b16 %v5946
    %v6135 = vunpack.c.h.b16 %v5946
    %v6136 = vunpack.c.l.b16 %v5947
    %v6137 = vunpack.c.h.b16 %v5947
    %v6138 = vunpack.c.l.b16 %v5948
    %v6139 = vunpack.c.h.b16 %v5948
    %v6140 = vunpack.c.l.b16 %v5949
    %v6141 = vunpack.c.h.b16 %v5949
    %v6142 = vunpack.c.l.b16 %v5950
    %v6143 = vunpack.c.h.b16 %v5950
    %v6144 = vunpack.c.l.b16 %v5951
    %v6145 = vunpack.c.h.b16 %v5951
    %v6146 = vunpack.c.l.b16 %v5952
    %v6147 = vunpack.c.h.b16 %v5952
    %v6148 = vunpack.c.l.b16 %v5953
    %v6149 = vunpack.c.h.b16 %v5953
    %v6150 = vunpack.c.l.b16 %v5954
    %v6151 = vunpack.c.h.b16 %v5954
    %v6152 = vunpack.c.l.b16 %v5955
    %v6153 = vunpack.c.h.b16 %v5955
    %v6154 = vunpack.c.l.b16 %v5956
    %v6155 = vunpack.c.h.b16 %v5956
    %v6156 = vunpack.c.l.b16 %v5957
    %v6157 = vunpack.c.h.b16 %v5957
    %v6158 = vunpack.c.l.b16 %v5958
    %v6159 = vunpack.c.h.b16 %v5958
    %v6160 = vunpack.c.l.b16 %v5959
    %v6161 = vunpack.c.h.b16 %v5959
    %v6162 = vunpack.c.l.b16 %v5960
    %v6163 = vunpack.c.h.b16 %v5960
    %v6164 = vunpack.c.l.b16 %v5961
    %v6165 = vunpack.c.h.b16 %v5961
    %v6166 = vpack.c.b16 %v6040, %v6038
    %v6167 = vpack.c.b16 %v6041, %v6039
    %v6168 = vpack.c.b16 %v6044, %v6042
    %v6169 = vpack.c.b16 %v6045, %v6043
    %v6170 = vpack.c.b16 %v6048, %v6046
    %v6171 = vpack.c.b16 %v6049, %v6047
    %v6172 = vpack.c.b16 %v6052, %v6050
    %v6173 = vpack.c.b16 %v6053, %v6051
    %v6174 = vpack.c.b16 %v6056, %v6054
    %v6175 = vpack.c.b16 %v6057, %v6055
    %v6176 = vpack.c.b16 %v6060, %v6058
    %v6177 = vpack.c.b16 %v6061, %v6059
    %v6178 = vpack.c.b16 %v6064, %v6062
    %v6179 = vpack.c.b16 %v6065, %v6063
    %v6180 = vpack.c.b16 %v6068, %v6066
    %v6181 = vpack.c.b16 %v6069, %v6067
    %v6182 = vpack.c.b16 %v6072, %v6070
    %v6183 = vpack.c.b16 %v6073, %v6071
    %v6184 = vpack.c.b16 %v6076, %v6074
    %v6185 = vpack.c.b16 %v6077, %v6075
    %v6186 = vpack.c.b16 %v6080, %v6078
    %v6187 = vpack.c.b16 %v6081, %v6079
    %v6188 = vpack.c.b16 %v6084, %v6082
    %v6189 = vpack.c.b16 %v6085, %v6083
    %v6190 = vpack.c.b16 %v6088, %v6086
    %v6191 = vpack.c.b16 %v6089, %v6087
    %v6192 = vpack.c.b16 %v6092, %v6090
    %v6193 = vpack.c.b16 %v6093, %v6091
    %v6194 = vpack.c.b16 %v6096, %v6094
    %v6195 = vpack.c.b16 %v6097, %v6095
    %v6196 = vpack.c.b16 %v6100, %v6098
    %v6197 = vpack.c.b16 %v6101, %v6099
    %v6198 = vpack.c.b16 %v6104, %v6102
    %v6199 = vpack.c.b16 %v6105, %v6103
    %v6200 = vpack.c.b16 %v6108, %v6106
    %v6201 = vpack.c.b16 %v6109, %v6107
    %v6202 = vpack.c.b16 %v6112, %v6110
    %v6203 = vpack.c.b16 %v6113, %v6111
    %v6204 = vpack.c.b16 %v6116, %v6114
    %v6205 = vpack.c.b16 %v6117, %v6115
    %v6206 = vpack.c.b16 %v6120, %v6118
    %v6207 = vpack.c.b16 %v6121, %v6119
    %v6208 = vpack.c.b16 %v6124, %v6122
    %v6209 = vpack.c.b16 %v6125, %v6123
    %v6210 = vpack.c.b16 %v6128, %v6126
    %v6211 = vpack.c.b16 %v6129, %v6127
    %v6212 = vpack.c.b16 %v6132, %v6130
    %v6213 = vpack.c.b16 %v6133, %v6131
    %v6214 = vpack.c.b16 %v6136, %v6134
    %v6215 = vpack.c.b16 %v6137, %v6135
    %v6216 = vpack.c.b16 %v6140, %v6138
    %v6217 = vpack.c.b16 %v6141, %v6139
    %v6218 = vpack.c.b16 %v6144, %v6142
    %v6219 = vpack.c.b16 %v6145, %v6143
    %v6220 = vpack.c.b16 %v6148, %v6146
    %v6221 = vpack.c.b16 %v6149, %v6147
    %v6222 = vpack.c.b16 %v6152, %v6150
    %v6223 = vpack.c.b16 %v6153, %v6151
    %v6224 = vpack.c.b16 %v6156, %v6154
    %v6225 = vpack.c.b16 %v6157, %v6155
    %v6226 = vpack.c.b16 %v6160, %v6158
    %v6227 = vpack.c.b16 %v6161, %v6159
    %v6228 = vpack.c.b16 %v6164, %v6162
    %v6229 = vpack.c.b16 %v6165, %v6163
    %6294 = vmatprep.subr.bf16.mxu0 %v6167
    %6295 = vmatpush1.bf16.msra.mxu0 %v6166
    %6296 = vmatprep.subr.bf16.mxu0 %v6169
    %6297 = vmatpush1.bf16.msra.mxu0 %v6168
    %6298 = vmatprep.subr.bf16.mxu0 %v6171
    %6299 = vmatpush1.bf16.msra.mxu0 %v6170
    %6300 = vmatprep.subr.bf16.mxu0 %v6173
    %6301 = vmatpush1.bf16.msra.mxu0 %v6172
    %6302 = vmatprep.subr.bf16.mxu0 %v6175
    %6303 = vmatpush1.bf16.msra.mxu0 %v6174
    %6304 = vmatprep.subr.bf16.mxu0 %v6177
    %6305 = vmatpush1.bf16.msra.mxu0 %v6176
    %6306 = vmatprep.subr.bf16.mxu0 %v6179
    %6307 = vmatpush1.bf16.msra.mxu0 %v6178
    %6308 = vmatprep.subr.bf16.mxu0 %v6181
    %6309 = vmatpush1.bf16.msra.mxu0 %v6180
    %6310 = vmatprep.subr.bf16.mxu0 %v6183
    %6311 = vmatpush1.bf16.msra.mxu0 %v6182
    %6312 = vmatprep.subr.bf16.mxu0 %v6185
    %6313 = vmatpush1.bf16.msra.mxu0 %v6184
    %6314 = vmatprep.subr.bf16.mxu0 %v6187
    %6315 = vmatpush1.bf16.msra.mxu0 %v6186
    %6316 = vmatprep.subr.bf16.mxu0 %v6189
    %6317 = vmatpush1.bf16.msra.mxu0 %v6188
    %6318 = vmatprep.subr.bf16.mxu0 %v6191
    %6319 = vmatpush1.bf16.msra.mxu0 %v6190
    %6320 = vmatprep.subr.bf16.mxu0 %v6193
    %6321 = vmatpush1.bf16.msra.mxu0 %v6192
    %6322 = vmatprep.subr.bf16.mxu0 %v6195
    %6323 = vmatpush1.bf16.msra.mxu0 %v6194
    %6324 = vmatprep.subr.bf16.mxu0 %v6197
    %6325 = vmatpush1.bf16.msra.mxu0 %v6196
    %6326 = vmatprep.mubr.bf16.mxu0 %v5895
    %6327 = vmatmul.mubr.bf16.gmra.mrb[0].mxu0 %v5894
    %v6328 = vpop.f32.mrb[0].mxu0
    %v6329 = vadd.f32 %v5967, %v6328
    %v6330 = vpop.f32.mrb[0].mxu0
    %v6331 = vadd.f32 %v5971, %v6330
    %v6332 = vpop.f32.mrb[0].mxu0
    %v6333 = vpop.f32.mrb[0].mxu0
    %6334 = vdwg.mxu0
    %6335 = vmatprep.subr.bf16.mxu0 %v6199
    %6336 = vmatpush1.bf16.msra.mxu0 %v6198
    %6337 = vmatprep.subr.bf16.mxu0 %v6201
    %6338 = vmatpush1.bf16.msra.mxu0 %v6200
    %6339 = vmatprep.subr.bf16.mxu0 %v6203
    %6340 = vmatpush1.bf16.msra.mxu0 %v6202
    %6341 = vmatprep.subr.bf16.mxu0 %v6205
    %6342 = vmatpush1.bf16.msra.mxu0 %v6204
    %6343 = vmatprep.subr.bf16.mxu0 %v6207
    %6344 = vmatpush1.bf16.msra.mxu0 %v6206
    %6345 = vmatprep.subr.bf16.mxu0 %v6209
    %6346 = vmatpush1.bf16.msra.mxu0 %v6208
    %6347 = vmatprep.subr.bf16.mxu0 %v6211
    %6348 = vmatpush1.bf16.msra.mxu0 %v6210
    %6349 = vmatprep.subr.bf16.mxu0 %v6213
    %6350 = vmatpush1.bf16.msra.mxu0 %v6212
    %6351 = vmatprep.subr.bf16.mxu0 %v6215
    %6352 = vmatpush1.bf16.msra.mxu0 %v6214
    %6353 = vmatprep.subr.bf16.mxu0 %v6217
    %6354 = vmatpush1.bf16.msra.mxu0 %v6216
    %6355 = vmatprep.subr.bf16.mxu0 %v6219
    %6356 = vmatpush1.bf16.msra.mxu0 %v6218
    %6357 = vmatprep.subr.bf16.mxu0 %v6221
    %6358 = vmatpush1.bf16.msra.mxu0 %v6220
    %6359 = vmatprep.subr.bf16.mxu0 %v6223
    %6360 = vmatpush1.bf16.msra.mxu0 %v6222
    %6361 = vmatprep.subr.bf16.mxu0 %v6225
    %6362 = vmatpush1.bf16.msra.mxu0 %v6224
    %6363 = vmatprep.subr.bf16.mxu0 %v6227
    %6364 = vmatpush1.bf16.msra.mxu0 %v6226
    %6365 = vmatprep.subr.bf16.mxu0 %v6229
    %6366 = vmatpush1.bf16.msra.mxu0 %v6228
    %6367 = vmatprep.mubr.bf16.mxu0 %v5897
    %6368 = vmatmul.mubr.bf16.gmra.mrb[0].mxu0 %v5896
    %v6369 = vpop.f32.mrb[0].mxu0
    %v6370 = vadd.f32 %v6329, %v6369
    %v6371 = vpop.f32.mrb[0].mxu0
    %v6372 = vadd.f32 %v6331, %v6371
    %v6373 = vpop.f32.mrb[0].mxu0
    %v6374 = vpop.f32.mrb[0].mxu0
    %6375 = vdwg.mxu0
    %6376 = vst [vmem:[%s9] sm:$0xff] %v6370
    %6377 = vst [vmem:[%s9 + $0x8] sm:$0xff] %v6372
    // Predicated region
    $region70: #{dense_tokenizer_forward.1} parent=1 // pred_check
      _
    $region71: #{dense_tokenizer_forward.1} parent=1 // pred_check_branch
      %6379 = sbr.rel (0) target = $region73
    $region72: #{dense_tokenizer_forward.1} parent=1 // pred_region
      _
    $region73: #{dense_tokenizer_forward.1} parent=1 // pred_fallthru
      _
    // Predicated region
    $region74: #{dense_tokenizer_forward.1} parent=1 // pred_check
      _
    $region75: #{dense_tokenizer_forward.1} parent=1 // pred_check_branch
      %6381 = sbr.rel (0) target = $region77
    $region76: #{dense_tokenizer_forward.1} parent=1 // pred_region
      _
    $region77: #{dense_tokenizer_forward.1} parent=1 // pred_fallthru
      _
    %6382 = vsyncpa [#allocation3], 1
    %6383 = vsyncpa [#allocation5], 1
    %6384 = vsyncpa [#allocation8], 1
    %6385 = vsyncpa [#allocation11], 1
    %6386 = vsyncpa [#allocation14], 1

</llo_original>
